<compile_context>
chip_gen: v7x
topology: tpu7x:2x2x1
jax: 0.10.0
libtpu: 0.0.40
codegen_flags: <defaults>
</compile_context>

<pallas_src>
import functools

import jax
import jax.numpy as jnp
import numpy as np
from jax import lax
from jax.experimental import pallas as pl
from jax.experimental.pallas import tpu as pltpu

_BN_EPS = 1e-5
_PARAMS = pltpu.CompilerParams(
    dimension_semantics=("arbitrary",),
    vmem_limit_bytes=32 * 1024 * 1024,
)


def _full_spec(shape):
    nd = len(shape)
    return pl.BlockSpec(shape, lambda i, _nd=nd: (0,) * _nd)


def _cost_for(args, out_bytes, flops, transcendentals=0):
    bytes_accessed = sum(int(a.size) * a.dtype.itemsize for a in args) + int(out_bytes)
    return pl.CostEstimate(flops=int(flops), transcendentals=int(transcendentals),
                           bytes_accessed=int(bytes_accessed))


def _row_masks(N, L):
    """(N*L, 1) f32 masks: 1.0 everywhere except the first / last row of each length-L sample."""
    pos = np.tile(np.arange(L), N)
    nf = (pos != 0).astype(np.float32).reshape(N * L, 1)       # "not first row of sample"
    nl = (pos != L - 1).astype(np.float32).reshape(N * L, 1)   # "not last row of sample"
    return jnp.asarray(nf), jnp.asarray(nl)


# ---------------------------------------------------------------------------
# In-kernel helpers
# ---------------------------------------------------------------------------

def _bn_scale_shift(h, gamma, beta, inv_count, eps):
    """Training-mode BatchNorm1d (per-batch stats, biased variance) in a single pass.
    Returns per-channel (scale, shift) so bn(h) = h * scale + shift."""
    mean = jnp.sum(h, axis=0, keepdims=True) * inv_count
    ex2 = jnp.sum(h * h, axis=0, keepdims=True) * inv_count
    var = ex2 - mean * mean
    scale = lax.rsqrt(var + eps) * gamma
    shift = beta - mean * scale
    return scale, shift


def _conv3(prev, center, nxt, w_ref):
    """k=3 'same' conv as three batch-flattened MXU matmuls (bf16 operands, f32 accumulation)."""
    bf = jnp.bfloat16
    f32 = jnp.float32
    return (jnp.dot(prev.astype(bf), w_ref[0], preferred_element_type=f32)
            + jnp.dot(center.astype(bf), w_ref[1], preferred_element_type=f32)
            + jnp.dot(nxt.astype(bf), w_ref[2], preferred_element_type=f32))


# ---------------------------------------------------------------------------
# Fused Pallas kernels
# ---------------------------------------------------------------------------

def _stem_kernel(NL, L, C, eps, xp_ref, nf_ref, nl_ref, w_ref, g_ref, b_ref, o_ref, stage_ref):
    """stem: conv(k=3,s=1) -> BN -> ReLU -> centred 3-tap max (stride 1).
    The wrapper's [::2] row subsample completes MaxPool1d(3, 2, 1)."""
    inv_count = 1.0 / float(NL)
    nf = nf_ref[...]
    nl = nl_ref[...]

    # conv taps read straight from the zero-row-padded input ref (no im2col, no scratch).
    xc = xp_ref[pl.ds(8, NL), :]
    xm = xp_ref[pl.ds(7, NL), :] * nf
    xp1 = xp_ref[pl.ds(9, NL), :] * nl
    h = _conv3(xm, xc, xp1, w_ref)

    scale, shift = _bn_scale_shift(h, g_ref[...], b_ref[...], inv_count, eps)
    y = jnp.maximum(h * scale + shift, 0.0)                       # (NL, C), y >= 0

    # 3-tap max: one aligned store of y at sublane offset 8, shifted re-reads at 7 / 9.
    # y >= 0, so zeroed boundary taps are equivalent to -inf padding.
    zeros8 = jnp.zeros((8, C), jnp.float32)
    stage_ref[pl.ds(0, 8), :] = zeros8
    stage_ref[pl.ds(NL + 8, 8), :] = zeros8
    stage_ref[pl.ds(8, NL), :] = y
    ym = stage_ref[pl.ds(7, NL), :] * nf
    yp = stage_ref[pl.ds(9, NL), :] * nl
    o_ref[...] = jnp.maximum(jnp.maximum(ym, y), yp)


def _block_kernel_s1(NL, L, C, eps, has_down, *refs):
    """ResidualBlock1d, stride 1: conv1+BN1+ReLU -> conv2+BN2 -> (+optional 1x1+BN residual)
    -> add -> ReLU, all in one kernel; conv taps via shifted slice reads."""
    if has_down:
        (xp_ref, nf_ref, nl_ref, w1_ref, g1_ref, b1_ref, w2_ref, g2_ref, b2_ref,
         wd_ref, gd_ref, bd_ref, o_ref, stage_ref) = refs
    else:
        (xp_ref, nf_ref, nl_ref, w1_ref, g1_ref, b1_ref, w2_ref, g2_ref, b2_ref,
         o_ref, stage_ref) = refs
    inv_count = 1.0 / float(NL)
    nf = nf_ref[...]
    nl = nl_ref[...]

    # --- conv1 + BN1 + ReLU ---
    xc = xp_ref[pl.ds(8, NL), :]
    h1 = _conv3(xp_ref[pl.ds(7, NL), :] * nf, xc, xp_ref[pl.ds(9, NL), :] * nl, w1_ref)
    sc1, sh1 = _bn_scale_shift(h1, g1_ref[...], b1_ref[...], inv_count, eps)
    y1 = jnp.maximum(h1 * sc1 + sh1, 0.0)

    # --- conv2 via staging scratch (single aligned interior store, edge rows zeroed) ---
    zeros8 = jnp.zeros((8, C), jnp.float32)
    stage_ref[pl.ds(0, 8), :] = zeros8
    stage_ref[pl.ds(NL + 8, 8), :] = zeros8
    stage_ref[pl.ds(8, NL), :] = y1
    h2 = _conv3(stage_ref[pl.ds(7, NL), :] * nf, y1, stage_ref[pl.ds(9, NL), :] * nl, w2_ref)
    sc2, sh2 = _bn_scale_shift(h2, g2_ref[...], b2_ref[...], inv_count, eps)

    # --- residual branch ---
    if has_down:   # 1x1 conv + BN (only if in_channels != out_channels at stride 1)
        r = jnp.dot(xc.astype(jnp.bfloat16), wd_ref[...], preferred_element_type=jnp.float32)
        scd, shd = _bn_scale_shift(r, gd_ref[...], bd_ref[...], inv_count, eps)
        res = r * scd + shd
    else:
        res = xc
    o_ref[...] = jnp.maximum(h2 * sc2 + sh2 + res, 0.0)


def _block_kernel_s2(NL, L, C, eps, xe_ref, xop_ref, nf_ref, nl_ref,
                     w1_ref, g1_ref, b1_ref, w2_ref, g2_ref, b2_ref,
                     wd_ref, gd_ref, bd_ref, o_ref, stage_ref):
    """ResidualBlock1d, stride 2 (with 1x1 stride-2 downsample):
    conv1 uses the even/odd row split from the wrapper: out[j] = W0*x[2j-1] + W1*x[2j] + W2*x[2j+1]."""
    inv_count = 1.0 / float(NL)
    nf = nf_ref[...]
    nl = nl_ref[...]

    xe = xe_ref[...]                                # x[2j]   (even rows, also the residual input)
    xo = xop_ref[pl.ds(8, NL), :]                   # x[2j+1] (odd rows)
    xom1 = xop_ref[pl.ds(7, NL), :] * nf            # x[2j-1]
    h1 = _conv3(xom1, xe, xo, w1_ref)
    sc1, sh1 = _bn_scale_shift(h1, g1_ref[...], b1_ref[...], inv_count, eps)
    y1 = jnp.maximum(h1 * sc1 + sh1, 0.0)

    zeros8 = jnp.zeros((8, C), jnp.float32)
    stage_ref[pl.ds(0, 8), :] = zeros8
    stage_ref[pl.ds(NL + 8, 8), :] = zeros8
    stage_ref[pl.ds(8, NL), :] = y1
    h2 = _conv3(stage_ref[pl.ds(7, NL), :] * nf, y1, stage_ref[pl.ds(9, NL), :] * nl, w2_ref)
    sc2, sh2 = _bn_scale_shift(h2, g2_ref[...], b2_ref[...], inv_count, eps)

    # downsample residual: 1x1 stride-2 conv == matmul on the even rows, then BN.
    r = jnp.dot(xe.astype(jnp.bfloat16), wd_ref[...], preferred_element_type=jnp.float32)
    scd, shd = _bn_scale_shift(r, gd_ref[...], bd_ref[...], inv_count, eps)
    o_ref[...] = jnp.maximum(h2 * sc2 + sh2 + (r * scd + shd), 0.0)


def _head_kernel(inv_L, x_ref, w1_ref, b1_ref, w2_ref, b2_ref, o_ref):
    """AdaptiveAvgPool1d(1) -> SupCon mlp head (Linear, ReLU, Linear) -> F.normalize(dim=1)."""
    bf = jnp.bfloat16
    pooled = jnp.sum(x_ref[...], axis=1) * inv_L                               # (N, C)
    h = jnp.dot(pooled.astype(bf), w1_ref[...], preferred_element_type=jnp.float32) + b1_ref[...]
    h = jnp.maximum(h, 0.0)
    f = jnp.dot(h.astype(bf), w2_ref[...], preferred_element_type=jnp.float32) + b2_ref[...]
    sq = jnp.sum(f * f, axis=1, keepdims=True)
    o_ref[...] = f * lax.rsqrt(jnp.maximum(sq, 1e-24))                          # eps = 1e-12 on the norm


# ---------------------------------------------------------------------------
# Wrappers (XLA glue inside jit) around the fused kernels
# ---------------------------------------------------------------------------

def stem_forward(x_nlc, p):
    N, L, Cin = x_nlc.shape
    C = p["gamma"].shape[-1]
    NL = N * L
    xp = jnp.pad(x_nlc.reshape(NL, Cin), ((8, 8), (0, 0)))      # fuses into the kernel's input DMA
    nf, nl = _row_masks(N, L)
    args = (xp, nf, nl, p["w"], p["gamma"], p["beta"])
    flops = 2 * NL * 3 * Cin * C
    m = pl.pallas_call(
        functools.partial(_stem_kernel, NL, L, C, _BN_EPS),
        out_shape=jax.ShapeDtypeStruct((NL, C), jnp.float32),
        grid=(1,),
        in_specs=[_full_spec(a.shape) for a in args],
        out_specs=_full_spec((NL, C)),
        scratch_shapes=[pltpu.VMEM((NL + 16, C), jnp.float32)],
        compiler_params=_PARAMS,
        cost_estimate=_cost_for(args, 4 * NL * C, flops, transcendentals=C),
    )(*args)
    return m.reshape(N, L, C)[:, ::2, :]    # stride-2 row subsample completes MaxPool1d(3, 2, 1)


def block_forward(x_nlc, blk, stride):
    N, L, Cin = x_nlc.shape
    C = blk["bn1"]["gamma"].shape[-1]
    has_down = "wd" in blk

    if stride == 1:
        Lo = L
        NL = N * Lo
        xp = jnp.pad(x_nlc.reshape(NL, Cin), ((8, 8), (0, 0)))
        nf, nl = _row_masks(N, Lo)
        args = [xp, nf, nl, blk["w1"], blk["bn1"]["gamma"], blk["bn1"]["beta"],
                blk["w2"], blk["bn2"]["gamma"], blk["bn2"]["beta"]]
        if has_down:
            args += [blk["wd"], blk["bnd"]["gamma"], blk["bnd"]["beta"]]
        kernel = functools.partial(_block_kernel_s1, NL, Lo, C, _BN_EPS, has_down)
    else:  # stride == 2 (always carries the 1x1 downsample conv in this architecture)
        Lo = L // 2
        NL = N * Lo
        x_e = x_nlc[:, 0::2, :].reshape(NL, Cin)
        x_o = jnp.pad(x_nlc[:, 1::2, :].reshape(NL, Cin), ((8, 0), (0, 0)))
        nf, nl = _row_masks(N, Lo)
        args = [x_e, x_o, nf, nl, blk["w1"], blk["bn1"]["gamma"], blk["bn1"]["beta"],
                blk["w2"], blk["bn2"]["gamma"], blk["bn2"]["beta"],
                blk["wd"], blk["bnd"]["gamma"], blk["bnd"]["beta"]]
        kernel = functools.partial(_block_kernel_s2, NL, Lo, C, _BN_EPS)

    flops = 2 * NL * 3 * Cin * C + 2 * NL * 3 * C * C + (2 * NL * Cin * C if has_down else 0)
    out = pl.pallas_call(
        kernel,
        out_shape=jax.ShapeDtypeStruct((NL, C), jnp.float32),
        grid=(1,),
        in_specs=[_full_spec(a.shape) for a in args],
        out_specs=_full_spec((NL, C)),
        scratch_shapes=[pltpu.VMEM((NL + 16, C), jnp.float32)],
        compiler_params=_PARAMS,
        cost_estimate=_cost_for(args, 4 * NL * C, flops, transcendentals=3 * C),
    )(*args)
    return out.reshape(N, Lo, C)


def head_forward(x_nlc, h1, h2):
    N, L, C = x_nlc.shape
    D = h2["w"].shape[-1]
    args = (x_nlc, h1["w"], h1["b"], h2["w"], h2["b"])
    flops = 2 * N * C * C + 2 * N * C * D
    return pl.pallas_call(
        functools.partial(_head_kernel, 1.0 / float(L)),
        out_shape=jax.ShapeDtypeStruct((N, D), jnp.float32),
        grid=(1,),
        in_specs=[_full_spec(a.shape) for a in args],
        out_specs=_full_spec((N, D)),
        compiler_params=_PARAMS,
        cost_estimate=_cost_for(args, 4 * N * D, flops, transcendentals=N),
    )(*args)


# ---------------------------------------------------------------------------
# Parameters + jitted forward
# ---------------------------------------------------------------------------

def init_params(key, in_channels, channel_dims, depths, classes, feat_dim, ksize=3):
    # TODO(synk): the in-kernel shifted-tap conv scheme is written for kernel_size == 3 only.
    assert ksize == 3, "only kernel_size=3 is implemented"
    keys = iter(jax.random.split(key, 256))

    def conv_w(cin, cout, k):
        # per-tap (k, cin, cout) weight stack for the in-kernel shifted matmuls, stored bf16.
        w = jax.random.normal(next(keys), (k, cin, cout), jnp.float32) / np.sqrt(k * cin)
        return w.astype(jnp.bfloat16)

    def conv_w1(cin, cout):
        w = jax.random.normal(next(keys), (cin, cout), jnp.float32) / np.sqrt(cin)
        return w.astype(jnp.bfloat16)

    def bn_p(c):
        return {"gamma": jnp.ones((1, c), jnp.float32), "beta": jnp.zeros((1, c), jnp.float32)}

    def lin_p(din, dout):
        w = (jax.random.normal(next(keys), (din, dout), jnp.float32) / np.sqrt(din)).astype(jnp.bfloat16)
        b = jax.random.normal(next(keys), (1, dout), jnp.float32) * 0.01
        return {"w": w, "b": b}

    # Conv biases are intentionally omitted: every conv is immediately followed by a
    # training-mode BatchNorm whose mean subtraction cancels a per-channel constant exactly.
    params = {
        "stem": {"w": conv_w(in_channels, channel_dims[0], ksize), **bn_p(channel_dims[0])},
        "layers": [],
        "fc": lin_p(channel_dims[-1], classes),   # encoder.fc — dead code for the SupCon feature
        "head1": lin_p(channel_dims[-1], channel_dims[-1]),
        "head2": lin_p(channel_dims[-1], feat_dim),
    }
    config = {"ksize": ksize, "strides": []}
    in_c = channel_dims[0]
    for li, (out_c, depth) in enumerate(zip(channel_dims, depths)):
        layer_stride = 1 if li == 0 else 2
        blocks, strides = [], []
        for bi in range(depth):
            s = layer_stride if bi == 0 else 1
            cin = in_c if bi == 0 else out_c
            blk = {
                "w1": conv_w(cin, out_c, ksize),
                "bn1": bn_p(out_c),
                "w2": conv_w(out_c, out_c, ksize),
                "bn2": bn_p(out_c),
            }
            if s != 1 or cin != out_c:
                blk["wd"] = conv_w1(cin, out_c)
                blk["bnd"] = bn_p(out_c)
            blocks.append(blk)
            strides.append(s)
        params["layers"].append(blocks)
        config["strides"].append(strides)
        in_c = out_c
    return params, config


def build_forward(config):
    strides = config["strides"]

    @jax.jit
    def forward(params, x_ncl):
        x = jnp.transpose(x_ncl, (0, 2, 1))                # NCL -> NLC (channels-last)
        x = stem_forward(x, params["stem"])                # conv+BN+ReLU+maxpool (one fused kernel)
        for layer, layer_strides in zip(params["layers"], strides):
            for blk, s in zip(layer, layer_strides):
                x = block_forward(x, blk, s)               # one fused kernel per residual block
        # encoder.fc (logits) is dead code for the SupCon feature and is skipped.
        return head_forward(x, params["head1"], params["head2"])

    return forward


# ---------------------------------------------------------------------------

if __name__ == "__main__":
    key = jax.random.PRNGKey(0)
    pkey, xkey = jax.random.split(key)

    in_channels = 4
    channel_dims = [8, 16, 32, 64]
    depths = [1, 1, 1, 1]
    classes = 10
    feat_dim = 32
    batch, seq_len = 2, 32

    params, config = init_params(pkey, in_channels, channel_dims, depths, classes, feat_dim)
    forward = build_forward(config)

    x = jax.random.normal(xkey, (batch, in_channels, seq_len), jnp.float32)  # PyTorch NCL layout
    feat = jax.block_until_ready(forward(params, x))

    assert feat.shape == (batch, feat_dim), feat.shape
    assert bool(jnp.all(jnp.isfinite(feat)))
    norms = jnp.sqrt(jnp.sum(feat * feat, axis=1))
    assert bool(jnp.allclose(norms, 1.0, atol=1e-3)), norms
    print("KERNEL_OK")
</pallas_src>

<mosaic_0001>
module attributes {stable_mosaic.version = 11 : i64} {
  func.func @_stem_kernel(%arg0: i32, %arg1: memref<80x4xf32, #tpu.memory_space<vmem>>, %arg2: memref<64x1xf32, #tpu.memory_space<vmem>>, %arg3: memref<64x1xf32, #tpu.memory_space<vmem>>, %arg4: memref<3x4x8xbf16, #tpu.memory_space<vmem>>, %arg5: memref<1x8xf32, #tpu.memory_space<vmem>>, %arg6: memref<1x8xf32, #tpu.memory_space<vmem>>, %arg7: memref<64x8xf32, #tpu.memory_space<vmem>>, %arg8: memref<80x8xf32, #tpu.memory_space<vmem>>) attributes {dimension_semantics = [#tpu.dimension_semantics<arbitrary>], iteration_bounds = array<i64: 1>, scalar_prefetch = 0 : i64, scratch_operands = 1 : i64, tpu.core_type = #tpu.core_type<tc>, window_params = [{pipeline_mode = #tpu.pipeline_mode<synchronous>, transform_indices = @transform_0, window_bounds = array<i64: 80, 4>}, {pipeline_mode = #tpu.pipeline_mode<synchronous>, transform_indices = @transform_1, window_bounds = array<i64: 64, 1>}, {pipeline_mode = #tpu.pipeline_mode<synchronous>, transform_indices = @transform_2, window_bounds = array<i64: 64, 1>}, {pipeline_mode = #tpu.pipeline_mode<synchronous>, transform_indices = @transform_3, window_bounds = array<i64: 3, 4, 8>}, {pipeline_mode = #tpu.pipeline_mode<synchronous>, transform_indices = @transform_4, window_bounds = array<i64: 1, 8>}, {pipeline_mode = #tpu.pipeline_mode<synchronous>, transform_indices = @transform_5, window_bounds = array<i64: 1, 8>}, {pipeline_mode = #tpu.pipeline_mode<synchronous>, transform_indices = @transform_6, window_bounds = array<i64: 64, 8>}]} {
    %c0 = arith.constant 0 : index
    %c0_0 = arith.constant 0 : index
    %0 = vector.load %arg2[%c0, %c0_0] : memref<64x1xf32, #tpu.memory_space<vmem>>, vector<64x1xf32>
    %c0_1 = arith.constant 0 : index
    %c0_2 = arith.constant 0 : index
    %1 = vector.load %arg3[%c0_1, %c0_2] : memref<64x1xf32, #tpu.memory_space<vmem>>, vector<64x1xf32>
    %c8 = arith.constant 8 : index
    %c0_3 = arith.constant 0 : index
    %2 = vector.load %arg1[%c8, %c0_3] : memref<80x4xf32, #tpu.memory_space<vmem>>, vector<64x4xf32>
    %c7 = arith.constant 7 : index
    %c0_4 = arith.constant 0 : index
    %3 = vector.load %arg1[%c7, %c0_4] : memref<80x4xf32, #tpu.memory_space<vmem>>, vector<64x4xf32>
    %4 = vector.broadcast %0 : vector<64x1xf32> to vector<64x4xf32>
    %5 = arith.mulf %3, %4 : vector<64x4xf32>
    %c9 = arith.constant 9 : index
    %c0_5 = arith.constant 0 : index
    %6 = vector.load %arg1[%c9, %c0_5] : memref<80x4xf32, #tpu.memory_space<vmem>>, vector<64x4xf32>
    %7 = vector.broadcast %1 : vector<64x1xf32> to vector<64x4xf32>
    %8 = arith.mulf %6, %7 : vector<64x4xf32>
    %9 = arith.truncf %5 : vector<64x4xf32> to vector<64x4xbf16>
    %c0_6 = arith.constant 0 : index
    %c0_7 = arith.constant 0 : index
    %c0_8 = arith.constant 0 : index
    %10 = vector.load %arg4[%c0_6, %c0_7, %c0_8] : memref<3x4x8xbf16, #tpu.memory_space<vmem>>, vector<1x4x8xbf16>
    %11 = vector.shape_cast %10 : vector<1x4x8xbf16> to vector<4x8xbf16>
    %cst = arith.constant dense<0.000000e+00> : vector<64x8xf32>
    %12 = tpu.matmul %9, %11, %cst {dimension_numbers = #tpu.dot_dimension_numbers<[1], [0], [0], [1], [0, 0, 1, 1], [], []>} : vector<64x4xbf16>, vector<4x8xbf16>, vector<64x8xf32> -> vector<64x8xf32>
    %13 = arith.truncf %2 : vector<64x4xf32> to vector<64x4xbf16>
    %c1 = arith.constant 1 : index
    %c0_9 = arith.constant 0 : index
    %c0_10 = arith.constant 0 : index
    %14 = vector.load %arg4[%c1, %c0_9, %c0_10] : memref<3x4x8xbf16, #tpu.memory_space<vmem>>, vector<1x4x8xbf16>
    %15 = vector.shape_cast %14 : vector<1x4x8xbf16> to vector<4x8xbf16>
    %cst_11 = arith.constant dense<0.000000e+00> : vector<64x8xf32>
    %16 = tpu.matmul %13, %15, %cst_11 {dimension_numbers = #tpu.dot_dimension_numbers<[1], [0], [0], [1], [0, 0, 1, 1], [], []>} : vector<64x4xbf16>, vector<4x8xbf16>, vector<64x8xf32> -> vector<64x8xf32>
    %17 = arith.addf %12, %16 : vector<64x8xf32>
    %18 = arith.truncf %8 : vector<64x4xf32> to vector<64x4xbf16>
    %c2 = arith.constant 2 : index
    %c0_12 = arith.constant 0 : index
    %c0_13 = arith.constant 0 : index
    %19 = vector.load %arg4[%c2, %c0_12, %c0_13] : memref<3x4x8xbf16, #tpu.memory_space<vmem>>, vector<1x4x8xbf16>
    %20 = vector.shape_cast %19 : vector<1x4x8xbf16> to vector<4x8xbf16>
    %cst_14 = arith.constant dense<0.000000e+00> : vector<64x8xf32>
    %21 = tpu.matmul %18, %20, %cst_14 {dimension_numbers = #tpu.dot_dimension_numbers<[1], [0], [0], [1], [0, 0, 1, 1], [], []>} : vector<64x4xbf16>, vector<4x8xbf16>, vector<64x8xf32> -> vector<64x8xf32>
    %22 = arith.addf %17, %21 : vector<64x8xf32>
    %c0_15 = arith.constant 0 : index
    %c0_16 = arith.constant 0 : index
    %23 = vector.load %arg5[%c0_15, %c0_16] : memref<1x8xf32, #tpu.memory_space<vmem>>, vector<1x8xf32>
    %c0_17 = arith.constant 0 : index
    %c0_18 = arith.constant 0 : index
    %24 = vector.load %arg6[%c0_17, %c0_18] : memref<1x8xf32, #tpu.memory_space<vmem>>, vector<1x8xf32>
    %cst_19 = arith.constant dense<0.000000e+00> : vector<8xf32>
    %25 = vector.multi_reduction <add>, %22, %cst_19 [0] : vector<64x8xf32> to vector<8xf32>
    %26 = vector.shape_cast %25 : vector<8xf32> to vector<1x8xf32>
    %cst_20 = arith.constant 1.562500e-02 : f32
    %27 = vector.broadcast %cst_20 : f32 to vector<1x8xf32>
    %28 = arith.mulf %26, %27 : vector<1x8xf32>
    %29 = arith.mulf %22, %22 : vector<64x8xf32>
    %cst_21 = arith.constant dense<0.000000e+00> : vector<8xf32>
    %30 = vector.multi_reduction <add>, %29, %cst_21 [0] : vector<64x8xf32> to vector<8xf32>
    %31 = vector.shape_cast %30 : vector<8xf32> to vector<1x8xf32>
    %cst_22 = arith.constant 1.562500e-02 : f32
    %32 = vector.broadcast %cst_22 : f32 to vector<1x8xf32>
    %33 = arith.mulf %31, %32 : vector<1x8xf32>
    %34 = arith.mulf %28, %28 : vector<1x8xf32>
    %35 = arith.subf %33, %34 : vector<1x8xf32>
    %cst_23 = arith.constant 9.99999974E-6 : f32
    %36 = vector.broadcast %cst_23 : f32 to vector<1x8xf32>
    %37 = arith.addf %35, %36 : vector<1x8xf32>
    %38 = math.rsqrt %37 : vector<1x8xf32>
    %39 = arith.mulf %38, %23 : vector<1x8xf32>
    %40 = arith.mulf %28, %39 : vector<1x8xf32>
    %41 = arith.subf %24, %40 : vector<1x8xf32>
    %42 = vector.broadcast %39 : vector<1x8xf32> to vector<64x8xf32>
    %43 = arith.mulf %22, %42 : vector<64x8xf32>
    %44 = vector.broadcast %41 : vector<1x8xf32> to vector<64x8xf32>
    %45 = arith.addf %43, %44 : vector<64x8xf32>
    %cst_24 = arith.constant 0.000000e+00 : f32
    %46 = vector.broadcast %cst_24 : f32 to vector<64x8xf32>
    %47 = arith.maximumf %45, %46 : vector<64x8xf32>
    %cst_25 = arith.constant 0.000000e+00 : f32
    %48 = vector.broadcast %cst_25 : f32 to vector<8x8xf32>
    %c0_26 = arith.constant 0 : index
    %c0_27 = arith.constant 0 : index
    %49 = vector.load %arg8[%c0_26, %c0_27] : memref<80x8xf32, #tpu.memory_space<vmem>>, vector<8x8xf32>
    tpu.vector_store %arg8[%c0_26, %c0_27], %48 {strides = array<i32>} : memref<80x8xf32, #tpu.memory_space<vmem>>, vector<8x8xf32>,
    %c72 = arith.constant 72 : index
    %c0_28 = arith.constant 0 : index
    %50 = vector.load %arg8[%c72, %c0_28] : memref<80x8xf32, #tpu.memory_space<vmem>>, vector<8x8xf32>
    tpu.vector_store %arg8[%c72, %c0_28], %48 {strides = array<i32>} : memref<80x8xf32, #tpu.memory_space<vmem>>, vector<8x8xf32>,
    %c8_29 = arith.constant 8 : index
    %c0_30 = arith.constant 0 : index
    %51 = vector.load %arg8[%c8_29, %c0_30] : memref<80x8xf32, #tpu.memory_space<vmem>>, vector<64x8xf32>
    tpu.vector_store %arg8[%c8_29, %c0_30], %47 {strides = array<i32>} : memref<80x8xf32, #tpu.memory_space<vmem>>, vector<64x8xf32>,
    %c7_31 = arith.constant 7 : index
    %c0_32 = arith.constant 0 : index
    %52 = vector.load %arg8[%c7_31, %c0_32] : memref<80x8xf32, #tpu.memory_space<vmem>>, vector<64x8xf32>
    %53 = vector.broadcast %0 : vector<64x1xf32> to vector<64x8xf32>
    %54 = arith.mulf %52, %53 : vector<64x8xf32>
    %c9_33 = arith.constant 9 : index
    %c0_34 = arith.constant 0 : index
    %55 = vector.load %arg8[%c9_33, %c0_34] : memref<80x8xf32, #tpu.memory_space<vmem>>, vector<64x8xf32>
    %56 = vector.broadcast %1 : vector<64x1xf32> to vector<64x8xf32>
    %57 = arith.mulf %55, %56 : vector<64x8xf32>
    %58 = arith.maximumf %54, %47 : vector<64x8xf32>
    %59 = arith.maximumf %58, %57 : vector<64x8xf32>
    %c0_35 = arith.constant 0 : index
    %c0_36 = arith.constant 0 : index
    %60 = vector.load %arg7[%c0_35, %c0_36] : memref<64x8xf32, #tpu.memory_space<vmem>>, vector<64x8xf32>
    tpu.vector_store %arg7[%c0_35, %c0_36], %59 {strides = array<i32>} : memref<64x8xf32, #tpu.memory_space<vmem>>, vector<64x8xf32>,
    return
  }
  func.func @transform_0(%arg0: i32) -> (i32, i32) {
    %c0_i32 = arith.constant 0 : i32
    %c0_i32_0 = arith.constant 0 : i32
    %c0_i32_1 = arith.constant 0 : i32
    return %c0_i32, %c0_i32_0 : i32, i32
  }
  func.func @transform_1(%arg0: i32) -> (i32, i32) {
    %c0_i32 = arith.constant 0 : i32
    %c0_i32_0 = arith.constant 0 : i32
    %c0_i32_1 = arith.constant 0 : i32
    return %c0_i32, %c0_i32_0 : i32, i32
  }
  func.func @transform_2(%arg0: i32) -> (i32, i32) {
    %c0_i32 = arith.constant 0 : i32
    %c0_i32_0 = arith.constant 0 : i32
    %c0_i32_1 = arith.constant 0 : i32
    return %c0_i32, %c0_i32_0 : i32, i32
  }
  func.func @transform_3(%arg0: i32) -> (i32, i32, i32) {
    %c0_i32 = arith.constant 0 : i32
    %c0_i32_0 = arith.constant 0 : i32
    %c0_i32_1 = arith.constant 0 : i32
    %c0_i32_2 = arith.constant 0 : i32
    return %c0_i32, %c0_i32_0, %c0_i32_1 : i32, i32, i32
  }
  func.func @transform_4(%arg0: i32) -> (i32, i32) {
    %c0_i32 = arith.constant 0 : i32
    %c0_i32_0 = arith.constant 0 : i32
    %c0_i32_1 = arith.constant 0 : i32
    return %c0_i32, %c0_i32_0 : i32, i32
  }
  func.func @transform_5(%arg0: i32) -> (i32, i32) {
    %c0_i32 = arith.constant 0 : i32
    %c0_i32_0 = arith.constant 0 : i32
    %c0_i32_1 = arith.constant 0 : i32
    return %c0_i32, %c0_i32_0 : i32, i32
  }
  func.func @transform_6(%arg0: i32) -> (i32, i32) {
    %c0_i32 = arith.constant 0 : i32
    %c0_i32_0 = arith.constant 0 : i32
    %c0_i32_1 = arith.constant 0 : i32
    return %c0_i32, %c0_i32_0 : i32, i32
  }
}

module attributes {stable_mosaic.version = 11 : i64} {
  func.func @_block_kernel_s1(%arg0: i32, %arg1: memref<48x8xf32, #tpu.memory_space<vmem>>, %arg2: memref<32x1xf32, #tpu.memory_space<vmem>>, %arg3: memref<32x1xf32, #tpu.memory_space<vmem>>, %arg4: memref<3x8x8xbf16, #tpu.memory_space<vmem>>, %arg5: memref<1x8xf32, #tpu.memory_space<vmem>>, %arg6: memref<1x8xf32, #tpu.memory_space<vmem>>, %arg7: memref<3x8x8xbf16, #tpu.memory_space<vmem>>, %arg8: memref<1x8xf32, #tpu.memory_space<vmem>>, %arg9: memref<1x8xf32, #tpu.memory_space<vmem>>, %arg10: memref<32x8xf32, #tpu.memory_space<vmem>>, %arg11: memref<48x8xf32, #tpu.memory_space<vmem>>) attributes {dimension_semantics = [#tpu.dimension_semantics<arbitrary>], iteration_bounds = array<i64: 1>, scalar_prefetch = 0 : i64, scratch_operands = 1 : i64, tpu.core_type = #tpu.core_type<tc>, window_params = [{pipeline_mode = #tpu.pipeline_mode<synchronous>, transform_indices = @transform_0, window_bounds = array<i64: 48, 8>}, {pipeline_mode = #tpu.pipeline_mode<synchronous>, transform_indices = @transform_1, window_bounds = array<i64: 32, 1>}, {pipeline_mode = #tpu.pipeline_mode<synchronous>, transform_indices = @transform_2, window_bounds = array<i64: 32, 1>}, {pipeline_mode = #tpu.pipeline_mode<synchronous>, transform_indices = @transform_3, window_bounds = array<i64: 3, 8, 8>}, {pipeline_mode = #tpu.pipeline_mode<synchronous>, transform_indices = @transform_4, window_bounds = array<i64: 1, 8>}, {pipeline_mode = #tpu.pipeline_mode<synchronous>, transform_indices = @transform_5, window_bounds = array<i64: 1, 8>}, {pipeline_mode = #tpu.pipeline_mode<synchronous>, transform_indices = @transform_6, window_bounds = array<i64: 3, 8, 8>}, {pipeline_mode = #tpu.pipeline_mode<synchronous>, transform_indices = @transform_7, window_bounds = array<i64: 1, 8>}, {pipeline_mode = #tpu.pipeline_mode<synchronous>, transform_indices = @transform_8, window_bounds = array<i64: 1, 8>}, {pipeline_mode = #tpu.pipeline_mode<synchronous>, transform_indices = @transform_9, window_bounds = array<i64: 32, 8>}]} {
    %c0 = arith.constant 0 : index
    %c0_0 = arith.constant 0 : index
    %0 = vector.load %arg2[%c0, %c0_0] : memref<32x1xf32, #tpu.memory_space<vmem>>, vector<32x1xf32>
    %c0_1 = arith.constant 0 : index
    %c0_2 = arith.constant 0 : index
    %1 = vector.load %arg3[%c0_1, %c0_2] : memref<32x1xf32, #tpu.memory_space<vmem>>, vector<32x1xf32>
    %c8 = arith.constant 8 : index
    %c0_3 = arith.constant 0 : index
    %2 = vector.load %arg1[%c8, %c0_3] : memref<48x8xf32, #tpu.memory_space<vmem>>, vector<32x8xf32>
    %c7 = arith.constant 7 : index
    %c0_4 = arith.constant 0 : index
    %3 = vector.load %arg1[%c7, %c0_4] : memref<48x8xf32, #tpu.memory_space<vmem>>, vector<32x8xf32>
    %4 = vector.broadcast %0 : vector<32x1xf32> to vector<32x8xf32>
    %5 = arith.mulf %3, %4 : vector<32x8xf32>
    %c9 = arith.constant 9 : index
    %c0_5 = arith.constant 0 : index
    %6 = vector.load %arg1[%c9, %c0_5] : memref<48x8xf32, #tpu.memory_space<vmem>>, vector<32x8xf32>
    %7 = vector.broadcast %1 : vector<32x1xf32> to vector<32x8xf32>
    %8 = arith.mulf %6, %7 : vector<32x8xf32>
    %9 = arith.truncf %5 : vector<32x8xf32> to vector<32x8xbf16>
    %c0_6 = arith.constant 0 : index
    %c0_7 = arith.constant 0 : index
    %c0_8 = arith.constant 0 : index
    %10 = vector.load %arg4[%c0_6, %c0_7, %c0_8] : memref<3x8x8xbf16, #tpu.memory_space<vmem>>, vector<1x8x8xbf16>
    %11 = vector.shape_cast %10 : vector<1x8x8xbf16> to vector<8x8xbf16>
    %cst = arith.constant dense<0.000000e+00> : vector<32x8xf32>
    %12 = tpu.matmul %9, %11, %cst {dimension_numbers = #tpu.dot_dimension_numbers<[1], [0], [0], [1], [0, 0, 1, 1], [], []>} : vector<32x8xbf16>, vector<8x8xbf16>, vector<32x8xf32> -> vector<32x8xf32>
    %13 = arith.truncf %2 : vector<32x8xf32> to vector<32x8xbf16>
    %c1 = arith.constant 1 : index
    %c0_9 = arith.constant 0 : index
    %c0_10 = arith.constant 0 : index
    %14 = vector.load %arg4[%c1, %c0_9, %c0_10] : memref<3x8x8xbf16, #tpu.memory_space<vmem>>, vector<1x8x8xbf16>
    %15 = vector.shape_cast %14 : vector<1x8x8xbf16> to vector<8x8xbf16>
    %cst_11 = arith.constant dense<0.000000e+00> : vector<32x8xf32>
    %16 = tpu.matmul %13, %15, %cst_11 {dimension_numbers = #tpu.dot_dimension_numbers<[1], [0], [0], [1], [0, 0, 1, 1], [], []>} : vector<32x8xbf16>, vector<8x8xbf16>, vector<32x8xf32> -> vector<32x8xf32>
    %17 = arith.addf %12, %16 : vector<32x8xf32>
    %18 = arith.truncf %8 : vector<32x8xf32> to vector<32x8xbf16>
    %c2 = arith.constant 2 : index
    %c0_12 = arith.constant 0 : index
    %c0_13 = arith.constant 0 : index
    %19 = vector.load %arg4[%c2, %c0_12, %c0_13] : memref<3x8x8xbf16, #tpu.memory_space<vmem>>, vector<1x8x8xbf16>
    %20 = vector.shape_cast %19 : vector<1x8x8xbf16> to vector<8x8xbf16>
    %cst_14 = arith.constant dense<0.000000e+00> : vector<32x8xf32>
    %21 = tpu.matmul %18, %20, %cst_14 {dimension_numbers = #tpu.dot_dimension_numbers<[1], [0], [0], [1], [0, 0, 1, 1], [], []>} : vector<32x8xbf16>, vector<8x8xbf16>, vector<32x8xf32> -> vector<32x8xf32>
    %22 = arith.addf %17, %21 : vector<32x8xf32>
    %c0_15 = arith.constant 0 : index
    %c0_16 = arith.constant 0 : index
    %23 = vector.load %arg5[%c0_15, %c0_16] : memref<1x8xf32, #tpu.memory_space<vmem>>, vector<1x8xf32>
    %c0_17 = arith.constant 0 : index
    %c0_18 = arith.constant 0 : index
    %24 = vector.load %arg6[%c0_17, %c0_18] : memref<1x8xf32, #tpu.memory_space<vmem>>, vector<1x8xf32>
    %cst_19 = arith.constant dense<0.000000e+00> : vector<8xf32>
    %25 = vector.multi_reduction <add>, %22, %cst_19 [0] : vector<32x8xf32> to vector<8xf32>
    %26 = vector.shape_cast %25 : vector<8xf32> to vector<1x8xf32>
    %cst_20 = arith.constant 3.125000e-02 : f32
    %27 = vector.broadcast %cst_20 : f32 to vector<1x8xf32>
    %28 = arith.mulf %26, %27 : vector<1x8xf32>
    %29 = arith.mulf %22, %22 : vector<32x8xf32>
    %cst_21 = arith.constant dense<0.000000e+00> : vector<8xf32>
    %30 = vector.multi_reduction <add>, %29, %cst_21 [0] : vector<32x8xf32> to vector<8xf32>
    %31 = vector.shape_cast %30 : vector<8xf32> to vector<1x8xf32>
    %cst_22 = arith.constant 3.125000e-02 : f32
    %32 = vector.broadcast %cst_22 : f32 to vector<1x8xf32>
    %33 = arith.mulf %31, %32 : vector<1x8xf32>
    %34 = arith.mulf %28, %28 : vector<1x8xf32>
    %35 = arith.subf %33, %34 : vector<1x8xf32>
    %cst_23 = arith.constant 9.99999974E-6 : f32
    %36 = vector.broadcast %cst_23 : f32 to vector<1x8xf32>
    %37 = arith.addf %35, %36 : vector<1x8xf32>
    %38 = math.rsqrt %37 : vector<1x8xf32>
    %39 = arith.mulf %38, %23 : vector<1x8xf32>
    %40 = arith.mulf %28, %39 : vector<1x8xf32>
    %41 = arith.subf %24, %40 : vector<1x8xf32>
    %42 = vector.broadcast %39 : vector<1x8xf32> to vector<32x8xf32>
    %43 = arith.mulf %22, %42 : vector<32x8xf32>
    %44 = vector.broadcast %41 : vector<1x8xf32> to vector<32x8xf32>
    %45 = arith.addf %43, %44 : vector<32x8xf32>
    %cst_24 = arith.constant 0.000000e+00 : f32
    %46 = vector.broadcast %cst_24 : f32 to vector<32x8xf32>
    %47 = arith.maximumf %45, %46 : vector<32x8xf32>
    %cst_25 = arith.constant 0.000000e+00 : f32
    %48 = vector.broadcast %cst_25 : f32 to vector<8x8xf32>
    %c0_26 = arith.constant 0 : index
    %c0_27 = arith.constant 0 : index
    %49 = vector.load %arg11[%c0_26, %c0_27] : memref<48x8xf32, #tpu.memory_space<vmem>>, vector<8x8xf32>
    tpu.vector_store %arg11[%c0_26, %c0_27], %48 {strides = array<i32>} : memref<48x8xf32, #tpu.memory_space<vmem>>, vector<8x8xf32>,
    %c40 = arith.constant 40 : index
    %c0_28 = arith.constant 0 : index
    %50 = vector.load %arg11[%c40, %c0_28] : memref<48x8xf32, #tpu.memory_space<vmem>>, vector<8x8xf32>
    tpu.vector_store %arg11[%c40, %c0_28], %48 {strides = array<i32>} : memref<48x8xf32, #tpu.memory_space<vmem>>, vector<8x8xf32>,
    %c8_29 = arith.constant 8 : index
    %c0_30 = arith.constant 0 : index
    %51 = vector.load %arg11[%c8_29, %c0_30] : memref<48x8xf32, #tpu.memory_space<vmem>>, vector<32x8xf32>
    tpu.vector_store %arg11[%c8_29, %c0_30], %47 {strides = array<i32>} : memref<48x8xf32, #tpu.memory_space<vmem>>, vector<32x8xf32>,
    %c7_31 = arith.constant 7 : index
    %c0_32 = arith.constant 0 : index
    %52 = vector.load %arg11[%c7_31, %c0_32] : memref<48x8xf32, #tpu.memory_space<vmem>>, vector<32x8xf32>
    %53 = vector.broadcast %0 : vector<32x1xf32> to vector<32x8xf32>
    %54 = arith.mulf %52, %53 : vector<32x8xf32>
    %c9_33 = arith.constant 9 : index
    %c0_34 = arith.constant 0 : index
    %55 = vector.load %arg11[%c9_33, %c0_34] : memref<48x8xf32, #tpu.memory_space<vmem>>, vector<32x8xf32>
    %56 = vector.broadcast %1 : vector<32x1xf32> to vector<32x8xf32>
    %57 = arith.mulf %55, %56 : vector<32x8xf32>
    %58 = arith.truncf %54 : vector<32x8xf32> to vector<32x8xbf16>
    %c0_35 = arith.constant 0 : index
    %c0_36 = arith.constant 0 : index
    %c0_37 = arith.constant 0 : index
    %59 = vector.load %arg7[%c0_35, %c0_36, %c0_37] : memref<3x8x8xbf16, #tpu.memory_space<vmem>>, vector<1x8x8xbf16>
    %60 = vector.shape_cast %59 : vector<1x8x8xbf16> to vector<8x8xbf16>
    %cst_38 = arith.constant dense<0.000000e+00> : vector<32x8xf32>
    %61 = tpu.matmul %58, %60, %cst_38 {dimension_numbers = #tpu.dot_dimension_numbers<[1], [0], [0], [1], [0, 0, 1, 1], [], []>} : vector<32x8xbf16>, vector<8x8xbf16>, vector<32x8xf32> -> vector<32x8xf32>
    %62 = arith.truncf %47 : vector<32x8xf32> to vector<32x8xbf16>
    %c1_39 = arith.constant 1 : index
    %c0_40 = arith.constant 0 : index
    %c0_41 = arith.constant 0 : index
    %63 = vector.load %arg7[%c1_39, %c0_40, %c0_41] : memref<3x8x8xbf16, #tpu.memory_space<vmem>>, vector<1x8x8xbf16>
    %64 = vector.shape_cast %63 : vector<1x8x8xbf16> to vector<8x8xbf16>
    %cst_42 = arith.constant dense<0.000000e+00> : vector<32x8xf32>
    %65 = tpu.matmul %62, %64, %cst_42 {dimension_numbers = #tpu.dot_dimension_numbers<[1], [0], [0], [1], [0, 0, 1, 1], [], []>} : vector<32x8xbf16>, vector<8x8xbf16>, vector<32x8xf32> -> vector<32x8xf32>
    %66 = arith.addf %61, %65 : vector<32x8xf32>
    %67 = arith.truncf %57 : vector<32x8xf32> to vector<32x8xbf16>
    %c2_43 = arith.constant 2 : index
    %c0_44 = arith.constant 0 : index
    %c0_45 = arith.constant 0 : index
    %68 = vector.load %arg7[%c2_43, %c0_44, %c0_45] : memref<3x8x8xbf16, #tpu.memory_space<vmem>>, vector<1x8x8xbf16>
    %69 = vector.shape_cast %68 : vector<1x8x8xbf16> to vector<8x8xbf16>
    %cst_46 = arith.constant dense<0.000000e+00> : vector<32x8xf32>
    %70 = tpu.matmul %67, %69, %cst_46 {dimension_numbers = #tpu.dot_dimension_numbers<[1], [0], [0], [1], [0, 0, 1, 1], [], []>} : vector<32x8xbf16>, vector<8x8xbf16>, vector<32x8xf32> -> vector<32x8xf32>
    %71 = arith.addf %66, %70 : vector<32x8xf32>
    %c0_47 = arith.constant 0 : index
    %c0_48 = arith.constant 0 : index
    %72 = vector.load %arg8[%c0_47, %c0_48] : memref<1x8xf32, #tpu.memory_space<vmem>>, vector<1x8xf32>
    %c0_49 = arith.constant 0 : index
    %c0_50 = arith.constant 0 : index
    %73 = vector.load %arg9[%c0_49, %c0_50] : memref<1x8xf32, #tpu.memory_space<vmem>>, vector<1x8xf32>
    %cst_51 = arith.constant dense<0.000000e+00> : vector<8xf32>
    %74 = vector.multi_reduction <add>, %71, %cst_51 [0] : vector<32x8xf32> to vector<8xf32>
    %75 = vector.shape_cast %74 : vector<8xf32> to vector<1x8xf32>
    %cst_52 = arith.constant 3.125000e-02 : f32
    %76 = vector.broadcast %cst_52 : f32 to vector<1x8xf32>
    %77 = arith.mulf %75, %76 : vector<1x8xf32>
    %78 = arith.mulf %71, %71 : vector<32x8xf32>
    %cst_53 = arith.constant dense<0.000000e+00> : vector<8xf32>
    %79 = vector.multi_reduction <add>, %78, %cst_53 [0] : vector<32x8xf32> to vector<8xf32>
    %80 = vector.shape_cast %79 : vector<8xf32> to vector<1x8xf32>
    %cst_54 = arith.constant 3.125000e-02 : f32
    %81 = vector.broadcast %cst_54 : f32 to vector<1x8xf32>
    %82 = arith.mulf %80, %81 : vector<1x8xf32>
    %83 = arith.mulf %77, %77 : vector<1x8xf32>
    %84 = arith.subf %82, %83 : vector<1x8xf32>
    %cst_55 = arith.constant 9.99999974E-6 : f32
    %85 = vector.broadcast %cst_55 : f32 to vector<1x8xf32>
    %86 = arith.addf %84, %85 : vector<1x8xf32>
    %87 = math.rsqrt %86 : vector<1x8xf32>
    %88 = arith.mulf %87, %72 : vector<1x8xf32>
    %89 = arith.mulf %77, %88 : vector<1x8xf32>
    %90 = arith.subf %73, %89 : vector<1x8xf32>
    %91 = vector.broadcast %88 : vector<1x8xf32> to vector<32x8xf32>
    %92 = arith.mulf %71, %91 : vector<32x8xf32>
    %93 = vector.broadcast %90 : vector<1x8xf32> to vector<32x8xf32>
    %94 = arith.addf %92, %93 : vector<32x8xf32>
    %95 = arith.addf %94, %2 : vector<32x8xf32>
    %cst_56 = arith.constant 0.000000e+00 : f32
    %96 = vector.broadcast %cst_56 : f32 to vector<32x8xf32>
    %97 = arith.maximumf %95, %96 : vector<32x8xf32>
    %c0_57 = arith.constant 0 : index
    %c0_58 = arith.constant 0 : index
    %98 = vector.load %arg10[%c0_57, %c0_58] : memref<32x8xf32, #tpu.memory_space<vmem>>, vector<32x8xf32>
    tpu.vector_store %arg10[%c0_57, %c0_58], %97 {strides = array<i32>} : memref<32x8xf32, #tpu.memory_space<vmem>>, vector<32x8xf32>,
    return
  }
  func.func @transform_0(%arg0: i32) -> (i32, i32) {
    %c0_i32 = arith.constant 0 : i32
    %c0_i32_0 = arith.constant 0 : i32
    %c0_i32_1 = arith.constant 0 : i32
    return %c0_i32, %c0_i32_0 : i32, i32
  }
  func.func @transform_1(%arg0: i32) -> (i32, i32) {
    %c0_i32 = arith.constant 0 : i32
    %c0_i32_0 = arith.constant 0 : i32
    %c0_i32_1 = arith.constant 0 : i32
    return %c0_i32, %c0_i32_0 : i32, i32
  }
  func.func @transform_2(%arg0: i32) -> (i32, i32) {
    %c0_i32 = arith.constant 0 : i32
    %c0_i32_0 = arith.constant 0 : i32
    %c0_i32_1 = arith.constant 0 : i32
    return %c0_i32, %c0_i32_0 : i32, i32
  }
  func.func @transform_3(%arg0: i32) -> (i32, i32, i32) {
    %c0_i32 = arith.constant 0 : i32
    %c0_i32_0 = arith.constant 0 : i32
    %c0_i32_1 = arith.constant 0 : i32
    %c0_i32_2 = arith.constant 0 : i32
    return %c0_i32, %c0_i32_0, %c0_i32_1 : i32, i32, i32
  }
  func.func @transform_4(%arg0: i32) -> (i32, i32) {
    %c0_i32 = arith.constant 0 : i32
    %c0_i32_0 = arith.constant 0 : i32
    %c0_i32_1 = arith.constant 0 : i32
    return %c0_i32, %c0_i32_0 : i32, i32
  }
  func.func @transform_5(%arg0: i32) -> (i32, i32) {
    %c0_i32 = arith.constant 0 : i32
    %c0_i32_0 = arith.constant 0 : i32
    %c0_i32_1 = arith.constant 0 : i32
    return %c0_i32, %c0_i32_0 : i32, i32
  }
  func.func @transform_6(%arg0: i32) -> (i32, i32, i32) {
    %c0_i32 = arith.constant 0 : i32
    %c0_i32_0 = arith.constant 0 : i32
    %c0_i32_1 = arith.constant 0 : i32
    %c0_i32_2 = arith.constant 0 : i32
    return %c0_i32, %c0_i32_0, %c0_i32_1 : i32, i32, i32
  }
  func.func @transform_7(%arg0: i32) -> (i32, i32) {
    %c0_i32 = arith.constant 0 : i32
    %c0_i32_0 = arith.constant 0 : i32
    %c0_i32_1 = arith.constant 0 : i32
    return %c0_i32, %c0_i32_0 : i32, i32
  }
  func.func @transform_8(%arg0: i32) -> (i32, i32) {
    %c0_i32 = arith.constant 0 : i32
    %c0_i32_0 = arith.constant 0 : i32
    %c0_i32_1 = arith.constant 0 : i32
    return %c0_i32, %c0_i32_0 : i32, i32
  }
  func.func @transform_9(%arg0: i32) -> (i32, i32) {
    %c0_i32 = arith.constant 0 : i32
    %c0_i32_0 = arith.constant 0 : i32
    %c0_i32_1 = arith.constant 0 : i32
    return %c0_i32, %c0_i32_0 : i32, i32
  }
}

module attributes {stable_mosaic.version = 11 : i64} {
  func.func @_block_kernel_s2(%arg0: i32, %arg1: memref<16x8xf32, #tpu.memory_space<vmem>>, %arg2: memref<24x8xf32, #tpu.memory_space<vmem>>, %arg3: memref<16x1xf32, #tpu.memory_space<vmem>>, %arg4: memref<16x1xf32, #tpu.memory_space<vmem>>, %arg5: memref<3x8x16xbf16, #tpu.memory_space<vmem>>, %arg6: memref<1x16xf32, #tpu.memory_space<vmem>>, %arg7: memref<1x16xf32, #tpu.memory_space<vmem>>, %arg8: memref<3x16x16xbf16, #tpu.memory_space<vmem>>, %arg9: memref<1x16xf32, #tpu.memory_space<vmem>>, %arg10: memref<1x16xf32, #tpu.memory_space<vmem>>, %arg11: memref<8x16xbf16, #tpu.memory_space<vmem>>, %arg12: memref<1x16xf32, #tpu.memory_space<vmem>>, %arg13: memref<1x16xf32, #tpu.memory_space<vmem>>, %arg14: memref<16x16xf32, #tpu.memory_space<vmem>>, %arg15: memref<32x16xf32, #tpu.memory_space<vmem>>) attributes {dimension_semantics = [#tpu.dimension_semantics<arbitrary>], iteration_bounds = array<i64: 1>, scalar_prefetch = 0 : i64, scratch_operands = 1 : i64, tpu.core_type = #tpu.core_type<tc>, window_params = [{pipeline_mode = #tpu.pipeline_mode<synchronous>, transform_indices = @transform_0, window_bounds = array<i64: 16, 8>}, {pipeline_mode = #tpu.pipeline_mode<synchronous>, transform_indices = @transform_1, window_bounds = array<i64: 24, 8>}, {pipeline_mode = #tpu.pipeline_mode<synchronous>, transform_indices = @transform_2, window_bounds = array<i64: 16, 1>}, {pipeline_mode = #tpu.pipeline_mode<synchronous>, transform_indices = @transform_3, window_bounds = array<i64: 16, 1>}, {pipeline_mode = #tpu.pipeline_mode<synchronous>, transform_indices = @transform_4, window_bounds = array<i64: 3, 8, 16>}, {pipeline_mode = #tpu.pipeline_mode<synchronous>, transform_indices = @transform_5, window_bounds = array<i64: 1, 16>}, {pipeline_mode = #tpu.pipeline_mode<synchronous>, transform_indices = @transform_6, window_bounds = array<i64: 1, 16>}, {pipeline_mode = #tpu.pipeline_mode<synchronous>, transform_indices = @transform_7, window_bounds = array<i64: 3, 16, 16>}, {pipeline_mode = #tpu.pipeline_mode<synchronous>, transform_indices = @transform_8, window_bounds = array<i64: 1, 16>}, {pipeline_mode = #tpu.pipeline_mode<synchronous>, transform_indices = @transform_9, window_bounds = array<i64: 1, 16>}, {pipeline_mode = #tpu.pipeline_mode<synchronous>, transform_indices = @transform_10, window_bounds = array<i64: 8, 16>}, {pipeline_mode = #tpu.pipeline_mode<synchronous>, transform_indices = @transform_11, window_bounds = array<i64: 1, 16>}, {pipeline_mode = #tpu.pipeline_mode<synchronous>, transform_indices = @transform_12, window_bounds = array<i64: 1, 16>}, {pipeline_mode = #tpu.pipeline_mode<synchronous>, transform_indices = @transform_13, window_bounds = array<i64: 16, 16>}]} {
    %c0 = arith.constant 0 : index
    %c0_0 = arith.constant 0 : index
    %0 = vector.load %arg3[%c0, %c0_0] : memref<16x1xf32, #tpu.memory_space<vmem>>, vector<16x1xf32>
    %c0_1 = arith.constant 0 : index
    %c0_2 = arith.constant 0 : index
    %1 = vector.load %arg4[%c0_1, %c0_2] : memref<16x1xf32, #tpu.memory_space<vmem>>, vector<16x1xf32>
    %c0_3 = arith.constant 0 : index
    %c0_4 = arith.constant 0 : index
    %2 = vector.load %arg1[%c0_3, %c0_4] : memref<16x8xf32, #tpu.memory_space<vmem>>, vector<16x8xf32>
    %c8 = arith.constant 8 : index
    %c0_5 = arith.constant 0 : index
    %3 = vector.load %arg2[%c8, %c0_5] : memref<24x8xf32, #tpu.memory_space<vmem>>, vector<16x8xf32>
    %c7 = arith.constant 7 : index
    %c0_6 = arith.constant 0 : index
    %4 = vector.load %arg2[%c7, %c0_6] : memref<24x8xf32, #tpu.memory_space<vmem>>, vector<16x8xf32>
    %5 = vector.broadcast %0 : vector<16x1xf32> to vector<16x8xf32>
    %6 = arith.mulf %4, %5 : vector<16x8xf32>
    %7 = arith.truncf %6 : vector<16x8xf32> to vector<16x8xbf16>
    %c0_7 = arith.constant 0 : index
    %c0_8 = arith.constant 0 : index
    %c0_9 = arith.constant 0 : index
    %8 = vector.load %arg5[%c0_7, %c0_8, %c0_9] : memref<3x8x16xbf16, #tpu.memory_space<vmem>>, vector<1x8x16xbf16>
    %9 = vector.shape_cast %8 : vector<1x8x16xbf16> to vector<8x16xbf16>
    %cst = arith.constant dense<0.000000e+00> : vector<16x16xf32>
    %10 = tpu.matmul %7, %9, %cst {dimension_numbers = #tpu.dot_dimension_numbers<[1], [0], [0], [1], [0, 0, 1, 1], [], []>} : vector<16x8xbf16>, vector<8x16xbf16>, vector<16x16xf32> -> vector<16x16xf32>
    %11 = arith.truncf %2 : vector<16x8xf32> to vector<16x8xbf16>
    %c1 = arith.constant 1 : index
    %c0_10 = arith.constant 0 : index
    %c0_11 = arith.constant 0 : index
    %12 = vector.load %arg5[%c1, %c0_10, %c0_11] : memref<3x8x16xbf16, #tpu.memory_space<vmem>>, vector<1x8x16xbf16>
    %13 = vector.shape_cast %12 : vector<1x8x16xbf16> to vector<8x16xbf16>
    %cst_12 = arith.constant dense<0.000000e+00> : vector<16x16xf32>
    %14 = tpu.matmul %11, %13, %cst_12 {dimension_numbers = #tpu.dot_dimension_numbers<[1], [0], [0], [1], [0, 0, 1, 1], [], []>} : vector<16x8xbf16>, vector<8x16xbf16>, vector<16x16xf32> -> vector<16x16xf32>
    %15 = arith.addf %10, %14 : vector<16x16xf32>
    %16 = arith.truncf %3 : vector<16x8xf32> to vector<16x8xbf16>
    %c2 = arith.constant 2 : index
    %c0_13 = arith.constant 0 : index
    %c0_14 = arith.constant 0 : index
    %17 = vector.load %arg5[%c2, %c0_13, %c0_14] : memref<3x8x16xbf16, #tpu.memory_space<vmem>>, vector<1x8x16xbf16>
    %18 = vector.shape_cast %17 : vector<1x8x16xbf16> to vector<8x16xbf16>
    %cst_15 = arith.constant dense<0.000000e+00> : vector<16x16xf32>
    %19 = tpu.matmul %16, %18, %cst_15 {dimension_numbers = #tpu.dot_dimension_numbers<[1], [0], [0], [1], [0, 0, 1, 1], [], []>} : vector<16x8xbf16>, vector<8x16xbf16>, vector<16x16xf32> -> vector<16x16xf32>
    %20 = arith.addf %15, %19 : vector<16x16xf32>
    %c0_16 = arith.constant 0 : index
    %c0_17 = arith.constant 0 : index
    %21 = vector.load %arg6[%c0_16, %c0_17] : memref<1x16xf32, #tpu.memory_space<vmem>>, vector<1x16xf32>
    %c0_18 = arith.constant 0 : index
    %c0_19 = arith.constant 0 : index
    %22 = vector.load %arg7[%c0_18, %c0_19] : memref<1x16xf32, #tpu.memory_space<vmem>>, vector<1x16xf32>
    %cst_20 = arith.constant dense<0.000000e+00> : vector<16xf32>
    %23 = vector.multi_reduction <add>, %20, %cst_20 [0] : vector<16x16xf32> to vector<16xf32>
    %24 = vector.shape_cast %23 : vector<16xf32> to vector<1x16xf32>
    %cst_21 = arith.constant 6.250000e-02 : f32
    %25 = vector.broadcast %cst_21 : f32 to vector<1x16xf32>
    %26 = arith.mulf %24, %25 : vector<1x16xf32>
    %27 = arith.mulf %20, %20 : vector<16x16xf32>
    %cst_22 = arith.constant dense<0.000000e+00> : vector<16xf32>
    %28 = vector.multi_reduction <add>, %27, %cst_22 [0] : vector<16x16xf32> to vector<16xf32>
    %29 = vector.shape_cast %28 : vector<16xf32> to vector<1x16xf32>
    %cst_23 = arith.constant 6.250000e-02 : f32
    %30 = vector.broadcast %cst_23 : f32 to vector<1x16xf32>
    %31 = arith.mulf %29, %30 : vector<1x16xf32>
    %32 = arith.mulf %26, %26 : vector<1x16xf32>
    %33 = arith.subf %31, %32 : vector<1x16xf32>
    %cst_24 = arith.constant 9.99999974E-6 : f32
    %34 = vector.broadcast %cst_24 : f32 to vector<1x16xf32>
    %35 = arith.addf %33, %34 : vector<1x16xf32>
    %36 = math.rsqrt %35 : vector<1x16xf32>
    %37 = arith.mulf %36, %21 : vector<1x16xf32>
    %38 = arith.mulf %26, %37 : vector<1x16xf32>
    %39 = arith.subf %22, %38 : vector<1x16xf32>
    %40 = vector.broadcast %37 : vector<1x16xf32> to vector<16x16xf32>
    %41 = arith.mulf %20, %40 : vector<16x16xf32>
    %42 = vector.broadcast %39 : vector<1x16xf32> to vector<16x16xf32>
    %43 = arith.addf %41, %42 : vector<16x16xf32>
    %cst_25 = arith.constant 0.000000e+00 : f32
    %44 = vector.broadcast %cst_25 : f32 to vector<16x16xf32>
    %45 = arith.maximumf %43, %44 : vector<16x16xf32>
    %cst_26 = arith.constant 0.000000e+00 : f32
    %46 = vector.broadcast %cst_26 : f32 to vector<8x16xf32>
    %c0_27 = arith.constant 0 : index
    %c0_28 = arith.constant 0 : index
    %47 = vector.load %arg15[%c0_27, %c0_28] : memref<32x16xf32, #tpu.memory_space<vmem>>, vector<8x16xf32>
    tpu.vector_store %arg15[%c0_27, %c0_28], %46 {strides = array<i32>} : memref<32x16xf32, #tpu.memory_space<vmem>>, vector<8x16xf32>,
    %c24 = arith.constant 24 : index
    %c0_29 = arith.constant 0 : index
    %48 = vector.load %arg15[%c24, %c0_29] : memref<32x16xf32, #tpu.memory_space<vmem>>, vector<8x16xf32>
    tpu.vector_store %arg15[%c24, %c0_29], %46 {strides = array<i32>} : memref<32x16xf32, #tpu.memory_space<vmem>>, vector<8x16xf32>,
    %c8_30 = arith.constant 8 : index
    %c0_31 = arith.constant 0 : index
    %49 = vector.load %arg15[%c8_30, %c0_31] : memref<32x16xf32, #tpu.memory_space<vmem>>, vector<16x16xf32>
    tpu.vector_store %arg15[%c8_30, %c0_31], %45 {strides = array<i32>} : memref<32x16xf32, #tpu.memory_space<vmem>>, vector<16x16xf32>,
    %c7_32 = arith.constant 7 : index
    %c0_33 = arith.constant 0 : index
    %50 = vector.load %arg15[%c7_32, %c0_33] : memref<32x16xf32, #tpu.memory_space<vmem>>, vector<16x16xf32>
    %51 = vector.broadcast %0 : vector<16x1xf32> to vector<16x16xf32>
    %52 = arith.mulf %50, %51 : vector<16x16xf32>
    %c9 = arith.constant 9 : index
    %c0_34 = arith.constant 0 : index
    %53 = vector.load %arg15[%c9, %c0_34] : memref<32x16xf32, #tpu.memory_space<vmem>>, vector<16x16xf32>
    %54 = vector.broadcast %1 : vector<16x1xf32> to vector<16x16xf32>
    %55 = arith.mulf %53, %54 : vector<16x16xf32>
    %56 = arith.truncf %52 : vector<16x16xf32> to vector<16x16xbf16>
    %c0_35 = arith.constant 0 : index
    %c0_36 = arith.constant 0 : index
    %c0_37 = arith.constant 0 : index
    %57 = vector.load %arg8[%c0_35, %c0_36, %c0_37] : memref<3x16x16xbf16, #tpu.memory_space<vmem>>, vector<1x16x16xbf16>
    %58 = vector.shape_cast %57 : vector<1x16x16xbf16> to vector<16x16xbf16>
    %cst_38 = arith.constant dense<0.000000e+00> : vector<16x16xf32>
    %59 = tpu.matmul %56, %58, %cst_38 {dimension_numbers = #tpu.dot_dimension_numbers<[1], [0], [0], [1], [0, 0, 1, 1], [], []>} : vector<16x16xbf16>, vector<16x16xbf16>, vector<16x16xf32> -> vector<16x16xf32>
    %60 = arith.truncf %45 : vector<16x16xf32> to vector<16x16xbf16>
    %c1_39 = arith.constant 1 : index
    %c0_40 = arith.constant 0 : index
    %c0_41 = arith.constant 0 : index
    %61 = vector.load %arg8[%c1_39, %c0_40, %c0_41] : memref<3x16x16xbf16, #tpu.memory_space<vmem>>, vector<1x16x16xbf16>
    %62 = vector.shape_cast %61 : vector<1x16x16xbf16> to vector<16x16xbf16>
    %cst_42 = arith.constant dense<0.000000e+00> : vector<16x16xf32>
    %63 = tpu.matmul %60, %62, %cst_42 {dimension_numbers = #tpu.dot_dimension_numbers<[1], [0], [0], [1], [0, 0, 1, 1], [], []>} : vector<16x16xbf16>, vector<16x16xbf16>, vector<16x16xf32> -> vector<16x16xf32>
    %64 = arith.addf %59, %63 : vector<16x16xf32>
    %65 = arith.truncf %55 : vector<16x16xf32> to vector<16x16xbf16>
    %c2_43 = arith.constant 2 : index
    %c0_44 = arith.constant 0 : index
    %c0_45 = arith.constant 0 : index
    %66 = vector.load %arg8[%c2_43, %c0_44, %c0_45] : memref<3x16x16xbf16, #tpu.memory_space<vmem>>, vector<1x16x16xbf16>
    %67 = vector.shape_cast %66 : vector<1x16x16xbf16> to vector<16x16xbf16>
    %cst_46 = arith.constant dense<0.000000e+00> : vector<16x16xf32>
    %68 = tpu.matmul %65, %67, %cst_46 {dimension_numbers = #tpu.dot_dimension_numbers<[1], [0], [0], [1], [0, 0, 1, 1], [], []>} : vector<16x16xbf16>, vector<16x16xbf16>, vector<16x16xf32> -> vector<16x16xf32>
    %69 = arith.addf %64, %68 : vector<16x16xf32>
    %c0_47 = arith.constant 0 : index
    %c0_48 = arith.constant 0 : index
    %70 = vector.load %arg9[%c0_47, %c0_48] : memref<1x16xf32, #tpu.memory_space<vmem>>, vector<1x16xf32>
    %c0_49 = arith.constant 0 : index
    %c0_50 = arith.constant 0 : index
    %71 = vector.load %arg10[%c0_49, %c0_50] : memref<1x16xf32, #tpu.memory_space<vmem>>, vector<1x16xf32>
    %cst_51 = arith.constant dense<0.000000e+00> : vector<16xf32>
    %72 = vector.multi_reduction <add>, %69, %cst_51 [0] : vector<16x16xf32> to vector<16xf32>
    %73 = vector.shape_cast %72 : vector<16xf32> to vector<1x16xf32>
    %cst_52 = arith.constant 6.250000e-02 : f32
    %74 = vector.broadcast %cst_52 : f32 to vector<1x16xf32>
    %75 = arith.mulf %73, %74 : vector<1x16xf32>
    %76 = arith.mulf %69, %69 : vector<16x16xf32>
    %cst_53 = arith.constant dense<0.000000e+00> : vector<16xf32>
    %77 = vector.multi_reduction <add>, %76, %cst_53 [0] : vector<16x16xf32> to vector<16xf32>
    %78 = vector.shape_cast %77 : vector<16xf32> to vector<1x16xf32>
    %cst_54 = arith.constant 6.250000e-02 : f32
    %79 = vector.broadcast %cst_54 : f32 to vector<1x16xf32>
    %80 = arith.mulf %78, %79 : vector<1x16xf32>
    %81 = arith.mulf %75, %75 : vector<1x16xf32>
    %82 = arith.subf %80, %81 : vector<1x16xf32>
    %cst_55 = arith.constant 9.99999974E-6 : f32
    %83 = vector.broadcast %cst_55 : f32 to vector<1x16xf32>
    %84 = arith.addf %82, %83 : vector<1x16xf32>
    %85 = math.rsqrt %84 : vector<1x16xf32>
    %86 = arith.mulf %85, %70 : vector<1x16xf32>
    %87 = arith.mulf %75, %86 : vector<1x16xf32>
    %88 = arith.subf %71, %87 : vector<1x16xf32>
    %89 = arith.truncf %2 : vector<16x8xf32> to vector<16x8xbf16>
    %c0_56 = arith.constant 0 : index
    %c0_57 = arith.constant 0 : index
    %90 = vector.load %arg11[%c0_56, %c0_57] : memref<8x16xbf16, #tpu.memory_space<vmem>>, vector<8x16xbf16>
    %cst_58 = arith.constant dense<0.000000e+00> : vector<16x16xf32>
    %91 = tpu.matmul %89, %90, %cst_58 {dimension_numbers = #tpu.dot_dimension_numbers<[1], [0], [0], [1], [0, 0, 1, 1], [], []>} : vector<16x8xbf16>, vector<8x16xbf16>, vector<16x16xf32> -> vector<16x16xf32>
    %c0_59 = arith.constant 0 : index
    %c0_60 = arith.constant 0 : index
    %92 = vector.load %arg12[%c0_59, %c0_60] : memref<1x16xf32, #tpu.memory_space<vmem>>, vector<1x16xf32>
    %c0_61 = arith.constant 0 : index
    %c0_62 = arith.constant 0 : index
    %93 = vector.load %arg13[%c0_61, %c0_62] : memref<1x16xf32, #tpu.memory_space<vmem>>, vector<1x16xf32>
    %cst_63 = arith.constant dense<0.000000e+00> : vector<16xf32>
    %94 = vector.multi_reduction <add>, %91, %cst_63 [0] : vector<16x16xf32> to vector<16xf32>
    %95 = vector.shape_cast %94 : vector<16xf32> to vector<1x16xf32>
    %cst_64 = arith.constant 6.250000e-02 : f32
    %96 = vector.broadcast %cst_64 : f32 to vector<1x16xf32>
    %97 = arith.mulf %95, %96 : vector<1x16xf32>
    %98 = arith.mulf %91, %91 : vector<16x16xf32>
    %cst_65 = arith.constant dense<0.000000e+00> : vector<16xf32>
    %99 = vector.multi_reduction <add>, %98, %cst_65 [0] : vector<16x16xf32> to vector<16xf32>
    %100 = vector.shape_cast %99 : vector<16xf32> to vector<1x16xf32>
    %cst_66 = arith.constant 6.250000e-02 : f32
    %101 = vector.broadcast %cst_66 : f32 to vector<1x16xf32>
    %102 = arith.mulf %100, %101 : vector<1x16xf32>
    %103 = arith.mulf %97, %97 : vector<1x16xf32>
    %104 = arith.subf %102, %103 : vector<1x16xf32>
    %cst_67 = arith.constant 9.99999974E-6 : f32
    %105 = vector.broadcast %cst_67 : f32 to vector<1x16xf32>
    %106 = arith.addf %104, %105 : vector<1x16xf32>
    %107 = math.rsqrt %106 : vector<1x16xf32>
    %108 = arith.mulf %107, %92 : vector<1x16xf32>
    %109 = arith.mulf %97, %108 : vector<1x16xf32>
    %110 = arith.subf %93, %109 : vector<1x16xf32>
    %111 = vector.broadcast %86 : vector<1x16xf32> to vector<16x16xf32>
    %112 = arith.mulf %69, %111 : vector<16x16xf32>
    %113 = vector.broadcast %88 : vector<1x16xf32> to vector<16x16xf32>
    %114 = arith.addf %112, %113 : vector<16x16xf32>
    %115 = vector.broadcast %108 : vector<1x16xf32> to vector<16x16xf32>
    %116 = arith.mulf %91, %115 : vector<16x16xf32>
    %117 = vector.broadcast %110 : vector<1x16xf32> to vector<16x16xf32>
    %118 = arith.addf %116, %117 : vector<16x16xf32>
    %119 = arith.addf %114, %118 : vector<16x16xf32>
    %cst_68 = arith.constant 0.000000e+00 : f32
    %120 = vector.broadcast %cst_68 : f32 to vector<16x16xf32>
    %121 = arith.maximumf %119, %120 : vector<16x16xf32>
    %c0_69 = arith.constant 0 : index
    %c0_70 = arith.constant 0 : index
    %122 = vector.load %arg14[%c0_69, %c0_70] : memref<16x16xf32, #tpu.memory_space<vmem>>, vector<16x16xf32>
    tpu.vector_store %arg14[%c0_69, %c0_70], %121 {strides = array<i32>} : memref<16x16xf32, #tpu.memory_space<vmem>>, vector<16x16xf32>,
    return
  }
  func.func @transform_0(%arg0: i32) -> (i32, i32) {
    %c0_i32 = arith.constant 0 : i32
    %c0_i32_0 = arith.constant 0 : i32
    %c0_i32_1 = arith.constant 0 : i32
    return %c0_i32, %c0_i32_0 : i32, i32
  }
  func.func @transform_1(%arg0: i32) -> (i32, i32) {
    %c0_i32 = arith.constant 0 : i32
    %c0_i32_0 = arith.constant 0 : i32
    %c0_i32_1 = arith.constant 0 : i32
    return %c0_i32, %c0_i32_0 : i32, i32
  }
  func.func @transform_2(%arg0: i32) -> (i32, i32) {
    %c0_i32 = arith.constant 0 : i32
    %c0_i32_0 = arith.constant 0 : i32
    %c0_i32_1 = arith.constant 0 : i32
    return %c0_i32, %c0_i32_0 : i32, i32
  }
  func.func @transform_3(%arg0: i32) -> (i32, i32) {
    %c0_i32 = arith.constant 0 : i32
    %c0_i32_0 = arith.constant 0 : i32
    %c0_i32_1 = arith.constant 0 : i32
    return %c0_i32, %c0_i32_0 : i32, i32
  }
  func.func @transform_4(%arg0: i32) -> (i32, i32, i32) {
    %c0_i32 = arith.constant 0 : i32
    %c0_i32_0 = arith.constant 0 : i32
    %c0_i32_1 = arith.constant 0 : i32
    %c0_i32_2 = arith.constant 0 : i32
    return %c0_i32, %c0_i32_0, %c0_i32_1 : i32, i32, i32
  }
  func.func @transform_5(%arg0: i32) -> (i32, i32) {
    %c0_i32 = arith.constant 0 : i32
    %c0_i32_0 = arith.constant 0 : i32
    %c0_i32_1 = arith.constant 0 : i32
    return %c0_i32, %c0_i32_0 : i32, i32
  }
  func.func @transform_6(%arg0: i32) -> (i32, i32) {
    %c0_i32 = arith.constant 0 : i32
    %c0_i32_0 = arith.constant 0 : i32
    %c0_i32_1 = arith.constant 0 : i32
    return %c0_i32, %c0_i32_0 : i32, i32
  }
  func.func @transform_7(%arg0: i32) -> (i32, i32, i32) {
    %c0_i32 = arith.constant 0 : i32
    %c0_i32_0 = arith.constant 0 : i32
    %c0_i32_1 = arith.constant 0 : i32
    %c0_i32_2 = arith.constant 0 : i32
    return %c0_i32, %c0_i32_0, %c0_i32_1 : i32, i32, i32
  }
  func.func @transform_8(%arg0: i32) -> (i32, i32) {
    %c0_i32 = arith.constant 0 : i32
    %c0_i32_0 = arith.constant 0 : i32
    %c0_i32_1 = arith.constant 0 : i32
    return %c0_i32, %c0_i32_0 : i32, i32
  }
  func.func @transform_9(%arg0: i32) -> (i32, i32) {
    %c0_i32 = arith.constant 0 : i32
    %c0_i32_0 = arith.constant 0 : i32
    %c0_i32_1 = arith.constant 0 : i32
    return %c0_i32, %c0_i32_0 : i32, i32
  }
  func.func @transform_10(%arg0: i32) -> (i32, i32) {
    %c0_i32 = arith.constant 0 : i32
    %c0_i32_0 = arith.constant 0 : i32
    %c0_i32_1 = arith.constant 0 : i32
    return %c0_i32, %c0_i32_0 : i32, i32
  }
  func.func @transform_11(%arg0: i32) -> (i32, i32) {
    %c0_i32 = arith.constant 0 : i32
    %c0_i32_0 = arith.constant 0 : i32
    %c0_i32_1 = arith.constant 0 : i32
    return %c0_i32, %c0_i32_0 : i32, i32
  }
  func.func @transform_12(%arg0: i32) -> (i32, i32) {
    %c0_i32 = arith.constant 0 : i32
    %c0_i32_0 = arith.constant 0 : i32
    %c0_i32_1 = arith.constant 0 : i32
    return %c0_i32, %c0_i32_0 : i32, i32
  }
  func.func @transform_13(%arg0: i32) -> (i32, i32) {
    %c0_i32 = arith.constant 0 : i32
    %c0_i32_0 = arith.constant 0 : i32
    %c0_i32_1 = arith.constant 0 : i32
    return %c0_i32, %c0_i32_0 : i32, i32
  }
}

module attributes {stable_mosaic.version = 11 : i64} {
  func.func @_block_kernel_s2(%arg0: i32, %arg1: memref<8x16xf32, #tpu.memory_space<vmem>>, %arg2: memref<16x16xf32, #tpu.memory_space<vmem>>, %arg3: memref<8x1xf32, #tpu.memory_space<vmem>>, %arg4: memref<8x1xf32, #tpu.memory_space<vmem>>, %arg5: memref<3x16x32xbf16, #tpu.memory_space<vmem>>, %arg6: memref<1x32xf32, #tpu.memory_space<vmem>>, %arg7: memref<1x32xf32, #tpu.memory_space<vmem>>, %arg8: memref<3x32x32xbf16, #tpu.memory_space<vmem>>, %arg9: memref<1x32xf32, #tpu.memory_space<vmem>>, %arg10: memref<1x32xf32, #tpu.memory_space<vmem>>, %arg11: memref<16x32xbf16, #tpu.memory_space<vmem>>, %arg12: memref<1x32xf32, #tpu.memory_space<vmem>>, %arg13: memref<1x32xf32, #tpu.memory_space<vmem>>, %arg14: memref<8x32xf32, #tpu.memory_space<vmem>>, %arg15: memref<24x32xf32, #tpu.memory_space<vmem>>) attributes {dimension_semantics = [#tpu.dimension_semantics<arbitrary>], iteration_bounds = array<i64: 1>, scalar_prefetch = 0 : i64, scratch_operands = 1 : i64, tpu.core_type = #tpu.core_type<tc>, window_params = [{pipeline_mode = #tpu.pipeline_mode<synchronous>, transform_indices = @transform_0, window_bounds = array<i64: 8, 16>}, {pipeline_mode = #tpu.pipeline_mode<synchronous>, transform_indices = @transform_1, window_bounds = array<i64: 16, 16>}, {pipeline_mode = #tpu.pipeline_mode<synchronous>, transform_indices = @transform_2, window_bounds = array<i64: 8, 1>}, {pipeline_mode = #tpu.pipeline_mode<synchronous>, transform_indices = @transform_3, window_bounds = array<i64: 8, 1>}, {pipeline_mode = #tpu.pipeline_mode<synchronous>, transform_indices = @transform_4, window_bounds = array<i64: 3, 16, 32>}, {pipeline_mode = #tpu.pipeline_mode<synchronous>, transform_indices = @transform_5, window_bounds = array<i64: 1, 32>}, {pipeline_mode = #tpu.pipeline_mode<synchronous>, transform_indices = @transform_6, window_bounds = array<i64: 1, 32>}, {pipeline_mode = #tpu.pipeline_mode<synchronous>, transform_indices = @transform_7, window_bounds = array<i64: 3, 32, 32>}, {pipeline_mode = #tpu.pipeline_mode<synchronous>, transform_indices = @transform_8, window_bounds = array<i64: 1, 32>}, {pipeline_mode = #tpu.pipeline_mode<synchronous>, transform_indices = @transform_9, window_bounds = array<i64: 1, 32>}, {pipeline_mode = #tpu.pipeline_mode<synchronous>, transform_indices = @transform_10, window_bounds = array<i64: 16, 32>}, {pipeline_mode = #tpu.pipeline_mode<synchronous>, transform_indices = @transform_11, window_bounds = array<i64: 1, 32>}, {pipeline_mode = #tpu.pipeline_mode<synchronous>, transform_indices = @transform_12, window_bounds = array<i64: 1, 32>}, {pipeline_mode = #tpu.pipeline_mode<synchronous>, transform_indices = @transform_13, window_bounds = array<i64: 8, 32>}]} {
    %c0 = arith.constant 0 : index
    %c0_0 = arith.constant 0 : index
    %0 = vector.load %arg3[%c0, %c0_0] : memref<8x1xf32, #tpu.memory_space<vmem>>, vector<8x1xf32>
    %c0_1 = arith.constant 0 : index
    %c0_2 = arith.constant 0 : index
    %1 = vector.load %arg4[%c0_1, %c0_2] : memref<8x1xf32, #tpu.memory_space<vmem>>, vector<8x1xf32>
    %c0_3 = arith.constant 0 : index
    %c0_4 = arith.constant 0 : index
    %2 = vector.load %arg1[%c0_3, %c0_4] : memref<8x16xf32, #tpu.memory_space<vmem>>, vector<8x16xf32>
    %c8 = arith.constant 8 : index
    %c0_5 = arith.constant 0 : index
    %3 = vector.load %arg2[%c8, %c0_5] : memref<16x16xf32, #tpu.memory_space<vmem>>, vector<8x16xf32>
    %c7 = arith.constant 7 : index
    %c0_6 = arith.constant 0 : index
    %4 = vector.load %arg2[%c7, %c0_6] : memref<16x16xf32, #tpu.memory_space<vmem>>, vector<8x16xf32>
    %5 = vector.broadcast %0 : vector<8x1xf32> to vector<8x16xf32>
    %6 = arith.mulf %4, %5 : vector<8x16xf32>
    %7 = arith.truncf %6 : vector<8x16xf32> to vector<8x16xbf16>
    %c0_7 = arith.constant 0 : index
    %c0_8 = arith.constant 0 : index
    %c0_9 = arith.constant 0 : index
    %8 = vector.load %arg5[%c0_7, %c0_8, %c0_9] : memref<3x16x32xbf16, #tpu.memory_space<vmem>>, vector<1x16x32xbf16>
    %9 = vector.shape_cast %8 : vector<1x16x32xbf16> to vector<16x32xbf16>
    %cst = arith.constant dense<0.000000e+00> : vector<8x32xf32>
    %10 = tpu.matmul %7, %9, %cst {dimension_numbers = #tpu.dot_dimension_numbers<[1], [0], [0], [1], [0, 0, 1, 1], [], []>} : vector<8x16xbf16>, vector<16x32xbf16>, vector<8x32xf32> -> vector<8x32xf32>
    %11 = arith.truncf %2 : vector<8x16xf32> to vector<8x16xbf16>
    %c1 = arith.constant 1 : index
    %c0_10 = arith.constant 0 : index
    %c0_11 = arith.constant 0 : index
    %12 = vector.load %arg5[%c1, %c0_10, %c0_11] : memref<3x16x32xbf16, #tpu.memory_space<vmem>>, vector<1x16x32xbf16>
    %13 = vector.shape_cast %12 : vector<1x16x32xbf16> to vector<16x32xbf16>
    %cst_12 = arith.constant dense<0.000000e+00> : vector<8x32xf32>
    %14 = tpu.matmul %11, %13, %cst_12 {dimension_numbers = #tpu.dot_dimension_numbers<[1], [0], [0], [1], [0, 0, 1, 1], [], []>} : vector<8x16xbf16>, vector<16x32xbf16>, vector<8x32xf32> -> vector<8x32xf32>
    %15 = arith.addf %10, %14 : vector<8x32xf32>
    %16 = arith.truncf %3 : vector<8x16xf32> to vector<8x16xbf16>
    %c2 = arith.constant 2 : index
    %c0_13 = arith.constant 0 : index
    %c0_14 = arith.constant 0 : index
    %17 = vector.load %arg5[%c2, %c0_13, %c0_14] : memref<3x16x32xbf16, #tpu.memory_space<vmem>>, vector<1x16x32xbf16>
    %18 = vector.shape_cast %17 : vector<1x16x32xbf16> to vector<16x32xbf16>
    %cst_15 = arith.constant dense<0.000000e+00> : vector<8x32xf32>
    %19 = tpu.matmul %16, %18, %cst_15 {dimension_numbers = #tpu.dot_dimension_numbers<[1], [0], [0], [1], [0, 0, 1, 1], [], []>} : vector<8x16xbf16>, vector<16x32xbf16>, vector<8x32xf32> -> vector<8x32xf32>
    %20 = arith.addf %15, %19 : vector<8x32xf32>
    %c0_16 = arith.constant 0 : index
    %c0_17 = arith.constant 0 : index
    %21 = vector.load %arg6[%c0_16, %c0_17] : memref<1x32xf32, #tpu.memory_space<vmem>>, vector<1x32xf32>
    %c0_18 = arith.constant 0 : index
    %c0_19 = arith.constant 0 : index
    %22 = vector.load %arg7[%c0_18, %c0_19] : memref<1x32xf32, #tpu.memory_space<vmem>>, vector<1x32xf32>
    %cst_20 = arith.constant dense<0.000000e+00> : vector<32xf32>
    %23 = vector.multi_reduction <add>, %20, %cst_20 [0] : vector<8x32xf32> to vector<32xf32>
    %24 = vector.shape_cast %23 : vector<32xf32> to vector<1x32xf32>
    %cst_21 = arith.constant 1.250000e-01 : f32
    %25 = vector.broadcast %cst_21 : f32 to vector<1x32xf32>
    %26 = arith.mulf %24, %25 : vector<1x32xf32>
    %27 = arith.mulf %20, %20 : vector<8x32xf32>
    %cst_22 = arith.constant dense<0.000000e+00> : vector<32xf32>
    %28 = vector.multi_reduction <add>, %27, %cst_22 [0] : vector<8x32xf32> to vector<32xf32>
    %29 = vector.shape_cast %28 : vector<32xf32> to vector<1x32xf32>
    %cst_23 = arith.constant 1.250000e-01 : f32
    %30 = vector.broadcast %cst_23 : f32 to vector<1x32xf32>
    %31 = arith.mulf %29, %30 : vector<1x32xf32>
    %32 = arith.mulf %26, %26 : vector<1x32xf32>
    %33 = arith.subf %31, %32 : vector<1x32xf32>
    %cst_24 = arith.constant 9.99999974E-6 : f32
    %34 = vector.broadcast %cst_24 : f32 to vector<1x32xf32>
    %35 = arith.addf %33, %34 : vector<1x32xf32>
    %36 = math.rsqrt %35 : vector<1x32xf32>
    %37 = arith.mulf %36, %21 : vector<1x32xf32>
    %38 = arith.mulf %26, %37 : vector<1x32xf32>
    %39 = arith.subf %22, %38 : vector<1x32xf32>
    %40 = vector.broadcast %37 : vector<1x32xf32> to vector<8x32xf32>
    %41 = arith.mulf %20, %40 : vector<8x32xf32>
    %42 = vector.broadcast %39 : vector<1x32xf32> to vector<8x32xf32>
    %43 = arith.addf %41, %42 : vector<8x32xf32>
    %cst_25 = arith.constant 0.000000e+00 : f32
    %44 = vector.broadcast %cst_25 : f32 to vector<8x32xf32>
    %45 = arith.maximumf %43, %44 : vector<8x32xf32>
    %cst_26 = arith.constant 0.000000e+00 : f32
    %46 = vector.broadcast %cst_26 : f32 to vector<8x32xf32>
    %c0_27 = arith.constant 0 : index
    %c0_28 = arith.constant 0 : index
    %47 = vector.load %arg15[%c0_27, %c0_28] : memref<24x32xf32, #tpu.memory_space<vmem>>, vector<8x32xf32>
    tpu.vector_store %arg15[%c0_27, %c0_28], %46 {strides = array<i32>} : memref<24x32xf32, #tpu.memory_space<vmem>>, vector<8x32xf32>,
    %c16 = arith.constant 16 : index
    %c0_29 = arith.constant 0 : index
    %48 = vector.load %arg15[%c16, %c0_29] : memref<24x32xf32, #tpu.memory_space<vmem>>, vector<8x32xf32>
    tpu.vector_store %arg15[%c16, %c0_29], %46 {strides = array<i32>} : memref<24x32xf32, #tpu.memory_space<vmem>>, vector<8x32xf32>,
    %c8_30 = arith.constant 8 : index
    %c0_31 = arith.constant 0 : index
    %49 = vector.load %arg15[%c8_30, %c0_31] : memref<24x32xf32, #tpu.memory_space<vmem>>, vector<8x32xf32>
    tpu.vector_store %arg15[%c8_30, %c0_31], %45 {strides = array<i32>} : memref<24x32xf32, #tpu.memory_space<vmem>>, vector<8x32xf32>,
    %c7_32 = arith.constant 7 : index
    %c0_33 = arith.constant 0 : index
    %50 = vector.load %arg15[%c7_32, %c0_33] : memref<24x32xf32, #tpu.memory_space<vmem>>, vector<8x32xf32>
    %51 = vector.broadcast %0 : vector<8x1xf32> to vector<8x32xf32>
    %52 = arith.mulf %50, %51 : vector<8x32xf32>
    %c9 = arith.constant 9 : index
    %c0_34 = arith.constant 0 : index
    %53 = vector.load %arg15[%c9, %c0_34] : memref<24x32xf32, #tpu.memory_space<vmem>>, vector<8x32xf32>
    %54 = vector.broadcast %1 : vector<8x1xf32> to vector<8x32xf32>
    %55 = arith.mulf %53, %54 : vector<8x32xf32>
    %56 = arith.truncf %52 : vector<8x32xf32> to vector<8x32xbf16>
    %c0_35 = arith.constant 0 : index
    %c0_36 = arith.constant 0 : index
    %c0_37 = arith.constant 0 : index
    %57 = vector.load %arg8[%c0_35, %c0_36, %c0_37] : memref<3x32x32xbf16, #tpu.memory_space<vmem>>, vector<1x32x32xbf16>
    %58 = vector.shape_cast %57 : vector<1x32x32xbf16> to vector<32x32xbf16>
    %cst_38 = arith.constant dense<0.000000e+00> : vector<8x32xf32>
    %59 = tpu.matmul %56, %58, %cst_38 {dimension_numbers = #tpu.dot_dimension_numbers<[1], [0], [0], [1], [0, 0, 1, 1], [], []>} : vector<8x32xbf16>, vector<32x32xbf16>, vector<8x32xf32> -> vector<8x32xf32>
    %60 = arith.truncf %45 : vector<8x32xf32> to vector<8x32xbf16>
    %c1_39 = arith.constant 1 : index
    %c0_40 = arith.constant 0 : index
    %c0_41 = arith.constant 0 : index
    %61 = vector.load %arg8[%c1_39, %c0_40, %c0_41] : memref<3x32x32xbf16, #tpu.memory_space<vmem>>, vector<1x32x32xbf16>
    %62 = vector.shape_cast %61 : vector<1x32x32xbf16> to vector<32x32xbf16>
    %cst_42 = arith.constant dense<0.000000e+00> : vector<8x32xf32>
    %63 = tpu.matmul %60, %62, %cst_42 {dimension_numbers = #tpu.dot_dimension_numbers<[1], [0], [0], [1], [0, 0, 1, 1], [], []>} : vector<8x32xbf16>, vector<32x32xbf16>, vector<8x32xf32> -> vector<8x32xf32>
    %64 = arith.addf %59, %63 : vector<8x32xf32>
    %65 = arith.truncf %55 : vector<8x32xf32> to vector<8x32xbf16>
    %c2_43 = arith.constant 2 : index
    %c0_44 = arith.constant 0 : index
    %c0_45 = arith.constant 0 : index
    %66 = vector.load %arg8[%c2_43, %c0_44, %c0_45] : memref<3x32x32xbf16, #tpu.memory_space<vmem>>, vector<1x32x32xbf16>
    %67 = vector.shape_cast %66 : vector<1x32x32xbf16> to vector<32x32xbf16>
    %cst_46 = arith.constant dense<0.000000e+00> : vector<8x32xf32>
    %68 = tpu.matmul %65, %67, %cst_46 {dimension_numbers = #tpu.dot_dimension_numbers<[1], [0], [0], [1], [0, 0, 1, 1], [], []>} : vector<8x32xbf16>, vector<32x32xbf16>, vector<8x32xf32> -> vector<8x32xf32>
    %69 = arith.addf %64, %68 : vector<8x32xf32>
    %c0_47 = arith.constant 0 : index
    %c0_48 = arith.constant 0 : index
    %70 = vector.load %arg9[%c0_47, %c0_48] : memref<1x32xf32, #tpu.memory_space<vmem>>, vector<1x32xf32>
    %c0_49 = arith.constant 0 : index
    %c0_50 = arith.constant 0 : index
    %71 = vector.load %arg10[%c0_49, %c0_50] : memref<1x32xf32, #tpu.memory_space<vmem>>, vector<1x32xf32>
    %cst_51 = arith.constant dense<0.000000e+00> : vector<32xf32>
    %72 = vector.multi_reduction <add>, %69, %cst_51 [0] : vector<8x32xf32> to vector<32xf32>
    %73 = vector.shape_cast %72 : vector<32xf32> to vector<1x32xf32>
    %cst_52 = arith.constant 1.250000e-01 : f32
    %74 = vector.broadcast %cst_52 : f32 to vector<1x32xf32>
    %75 = arith.mulf %73, %74 : vector<1x32xf32>
    %76 = arith.mulf %69, %69 : vector<8x32xf32>
    %cst_53 = arith.constant dense<0.000000e+00> : vector<32xf32>
    %77 = vector.multi_reduction <add>, %76, %cst_53 [0] : vector<8x32xf32> to vector<32xf32>
    %78 = vector.shape_cast %77 : vector<32xf32> to vector<1x32xf32>
    %cst_54 = arith.constant 1.250000e-01 : f32
    %79 = vector.broadcast %cst_54 : f32 to vector<1x32xf32>
    %80 = arith.mulf %78, %79 : vector<1x32xf32>
    %81 = arith.mulf %75, %75 : vector<1x32xf32>
    %82 = arith.subf %80, %81 : vector<1x32xf32>
    %cst_55 = arith.constant 9.99999974E-6 : f32
    %83 = vector.broadcast %cst_55 : f32 to vector<1x32xf32>
    %84 = arith.addf %82, %83 : vector<1x32xf32>
    %85 = math.rsqrt %84 : vector<1x32xf32>
    %86 = arith.mulf %85, %70 : vector<1x32xf32>
    %87 = arith.mulf %75, %86 : vector<1x32xf32>
    %88 = arith.subf %71, %87 : vector<1x32xf32>
    %89 = arith.truncf %2 : vector<8x16xf32> to vector<8x16xbf16>
    %c0_56 = arith.constant 0 : index
    %c0_57 = arith.constant 0 : index
    %90 = vector.load %arg11[%c0_56, %c0_57] : memref<16x32xbf16, #tpu.memory_space<vmem>>, vector<16x32xbf16>
    %cst_58 = arith.constant dense<0.000000e+00> : vector<8x32xf32>
    %91 = tpu.matmul %89, %90, %cst_58 {dimension_numbers = #tpu.dot_dimension_numbers<[1], [0], [0], [1], [0, 0, 1, 1], [], []>} : vector<8x16xbf16>, vector<16x32xbf16>, vector<8x32xf32> -> vector<8x32xf32>
    %c0_59 = arith.constant 0 : index
    %c0_60 = arith.constant 0 : index
    %92 = vector.load %arg12[%c0_59, %c0_60] : memref<1x32xf32, #tpu.memory_space<vmem>>, vector<1x32xf32>
    %c0_61 = arith.constant 0 : index
    %c0_62 = arith.constant 0 : index
    %93 = vector.load %arg13[%c0_61, %c0_62] : memref<1x32xf32, #tpu.memory_space<vmem>>, vector<1x32xf32>
    %cst_63 = arith.constant dense<0.000000e+00> : vector<32xf32>
    %94 = vector.multi_reduction <add>, %91, %cst_63 [0] : vector<8x32xf32> to vector<32xf32>
    %95 = vector.shape_cast %94 : vector<32xf32> to vector<1x32xf32>
    %cst_64 = arith.constant 1.250000e-01 : f32
    %96 = vector.broadcast %cst_64 : f32 to vector<1x32xf32>
    %97 = arith.mulf %95, %96 : vector<1x32xf32>
    %98 = arith.mulf %91, %91 : vector<8x32xf32>
    %cst_65 = arith.constant dense<0.000000e+00> : vector<32xf32>
    %99 = vector.multi_reduction <add>, %98, %cst_65 [0] : vector<8x32xf32> to vector<32xf32>
    %100 = vector.shape_cast %99 : vector<32xf32> to vector<1x32xf32>
    %cst_66 = arith.constant 1.250000e-01 : f32
    %101 = vector.broadcast %cst_66 : f32 to vector<1x32xf32>
    %102 = arith.mulf %100, %101 : vector<1x32xf32>
    %103 = arith.mulf %97, %97 : vector<1x32xf32>
    %104 = arith.subf %102, %103 : vector<1x32xf32>
    %cst_67 = arith.constant 9.99999974E-6 : f32
    %105 = vector.broadcast %cst_67 : f32 to vector<1x32xf32>
    %106 = arith.addf %104, %105 : vector<1x32xf32>
    %107 = math.rsqrt %106 : vector<1x32xf32>
    %108 = arith.mulf %107, %92 : vector<1x32xf32>
    %109 = arith.mulf %97, %108 : vector<1x32xf32>
    %110 = arith.subf %93, %109 : vector<1x32xf32>
    %111 = vector.broadcast %86 : vector<1x32xf32> to vector<8x32xf32>
    %112 = arith.mulf %69, %111 : vector<8x32xf32>
    %113 = vector.broadcast %88 : vector<1x32xf32> to vector<8x32xf32>
    %114 = arith.addf %112, %113 : vector<8x32xf32>
    %115 = vector.broadcast %108 : vector<1x32xf32> to vector<8x32xf32>
    %116 = arith.mulf %91, %115 : vector<8x32xf32>
    %117 = vector.broadcast %110 : vector<1x32xf32> to vector<8x32xf32>
    %118 = arith.addf %116, %117 : vector<8x32xf32>
    %119 = arith.addf %114, %118 : vector<8x32xf32>
    %cst_68 = arith.constant 0.000000e+00 : f32
    %120 = vector.broadcast %cst_68 : f32 to vector<8x32xf32>
    %121 = arith.maximumf %119, %120 : vector<8x32xf32>
    %c0_69 = arith.constant 0 : index
    %c0_70 = arith.constant 0 : index
    %122 = vector.load %arg14[%c0_69, %c0_70] : memref<8x32xf32, #tpu.memory_space<vmem>>, vector<8x32xf32>
    tpu.vector_store %arg14[%c0_69, %c0_70], %121 {strides = array<i32>} : memref<8x32xf32, #tpu.memory_space<vmem>>, vector<8x32xf32>,
    return
  }
  func.func @transform_0(%arg0: i32) -> (i32, i32) {
    %c0_i32 = arith.constant 0 : i32
    %c0_i32_0 = arith.constant 0 : i32
    %c0_i32_1 = arith.constant 0 : i32
    return %c0_i32, %c0_i32_0 : i32, i32
  }
  func.func @transform_1(%arg0: i32) -> (i32, i32) {
    %c0_i32 = arith.constant 0 : i32
    %c0_i32_0 = arith.constant 0 : i32
    %c0_i32_1 = arith.constant 0 : i32
    return %c0_i32, %c0_i32_0 : i32, i32
  }
  func.func @transform_2(%arg0: i32) -> (i32, i32) {
    %c0_i32 = arith.constant 0 : i32
    %c0_i32_0 = arith.constant 0 : i32
    %c0_i32_1 = arith.constant 0 : i32
    return %c0_i32, %c0_i32_0 : i32, i32
  }
  func.func @transform_3(%arg0: i32) -> (i32, i32) {
    %c0_i32 = arith.constant 0 : i32
    %c0_i32_0 = arith.constant 0 : i32
    %c0_i32_1 = arith.constant 0 : i32
    return %c0_i32, %c0_i32_0 : i32, i32
  }
  func.func @transform_4(%arg0: i32) -> (i32, i32, i32) {
    %c0_i32 = arith.constant 0 : i32
    %c0_i32_0 = arith.constant 0 : i32
    %c0_i32_1 = arith.constant 0 : i32
    %c0_i32_2 = arith.constant 0 : i32
    return %c0_i32, %c0_i32_0, %c0_i32_1 : i32, i32, i32
  }
  func.func @transform_5(%arg0: i32) -> (i32, i32) {
    %c0_i32 = arith.constant 0 : i32
    %c0_i32_0 = arith.constant 0 : i32
    %c0_i32_1 = arith.constant 0 : i32
    return %c0_i32, %c0_i32_0 : i32, i32
  }
  func.func @transform_6(%arg0: i32) -> (i32, i32) {
    %c0_i32 = arith.constant 0 : i32
    %c0_i32_0 = arith.constant 0 : i32
    %c0_i32_1 = arith.constant 0 : i32
    return %c0_i32, %c0_i32_0 : i32, i32
  }
  func.func @transform_7(%arg0: i32) -> (i32, i32, i32) {
    %c0_i32 = arith.constant 0 : i32
    %c0_i32_0 = arith.constant 0 : i32
    %c0_i32_1 = arith.constant 0 : i32
    %c0_i32_2 = arith.constant 0 : i32
    return %c0_i32, %c0_i32_0, %c0_i32_1 : i32, i32, i32
  }
  func.func @transform_8(%arg0: i32) -> (i32, i32) {
    %c0_i32 = arith.constant 0 : i32
    %c0_i32_0 = arith.constant 0 : i32
    %c0_i32_1 = arith.constant 0 : i32
    return %c0_i32, %c0_i32_0 : i32, i32
  }
  func.func @transform_9(%arg0: i32) -> (i32, i32) {
    %c0_i32 = arith.constant 0 : i32
    %c0_i32_0 = arith.constant 0 : i32
    %c0_i32_1 = arith.constant 0 : i32
    return %c0_i32, %c0_i32_0 : i32, i32
  }
  func.func @transform_10(%arg0: i32) -> (i32, i32) {
    %c0_i32 = arith.constant 0 : i32
    %c0_i32_0 = arith.constant 0 : i32
    %c0_i32_1 = arith.constant 0 : i32
    return %c0_i32, %c0_i32_0 : i32, i32
  }
  func.func @transform_11(%arg0: i32) -> (i32, i32) {
    %c0_i32 = arith.constant 0 : i32
    %c0_i32_0 = arith.constant 0 : i32
    %c0_i32_1 = arith.constant 0 : i32
    return %c0_i32, %c0_i32_0 : i32, i32
  }
  func.func @transform_12(%arg0: i32) -> (i32, i32) {
    %c0_i32 = arith.constant 0 : i32
    %c0_i32_0 = arith.constant 0 : i32
    %c0_i32_1 = arith.constant 0 : i32
    return %c0_i32, %c0_i32_0 : i32, i32
  }
  func.func @transform_13(%arg0: i32) -> (i32, i32) {
    %c0_i32 = arith.constant 0 : i32
    %c0_i32_0 = arith.constant 0 : i32
    %c0_i32_1 = arith.constant 0 : i32
    return %c0_i32, %c0_i32_0 : i32, i32
  }
}

module attributes {stable_mosaic.version = 11 : i64} {
  func.func @_head_kernel(%arg0: i32, %arg1: memref<2x2x64xf32, #tpu.memory_space<vmem>>, %arg2: memref<64x64xbf16, #tpu.memory_space<vmem>>, %arg3: memref<1x64xf32, #tpu.memory_space<vmem>>, %arg4: memref<64x32xbf16, #tpu.memory_space<vmem>>, %arg5: memref<1x32xf32, #tpu.memory_space<vmem>>, %arg6: memref<2x32xf32, #tpu.memory_space<vmem>>) attributes {dimension_semantics = [#tpu.dimension_semantics<arbitrary>], iteration_bounds = array<i64: 1>, scalar_prefetch = 0 : i64, scratch_operands = 0 : i64, tpu.core_type = #tpu.core_type<tc>, window_params = [{pipeline_mode = #tpu.pipeline_mode<synchronous>, transform_indices = @transform_0, window_bounds = array<i64: 2, 2, 64>}, {pipeline_mode = #tpu.pipeline_mode<synchronous>, transform_indices = @transform_1, window_bounds = array<i64: 64, 64>}, {pipeline_mode = #tpu.pipeline_mode<synchronous>, transform_indices = @transform_2, window_bounds = array<i64: 1, 64>}, {pipeline_mode = #tpu.pipeline_mode<synchronous>, transform_indices = @transform_3, window_bounds = array<i64: 64, 32>}, {pipeline_mode = #tpu.pipeline_mode<synchronous>, transform_indices = @transform_4, window_bounds = array<i64: 1, 32>}, {pipeline_mode = #tpu.pipeline_mode<synchronous>, transform_indices = @transform_5, window_bounds = array<i64: 2, 32>}]} {
    %c0 = arith.constant 0 : index
    %c0_0 = arith.constant 0 : index
    %c0_1 = arith.constant 0 : index
    %0 = vector.load %arg1[%c0, %c0_0, %c0_1] : memref<2x2x64xf32, #tpu.memory_space<vmem>>, vector<2x2x64xf32>
    %cst = arith.constant dense<0.000000e+00> : vector<2x64xf32>
    %1 = vector.multi_reduction <add>, %0, %cst [1] : vector<2x2x64xf32> to vector<2x64xf32>
    %cst_2 = arith.constant 5.000000e-01 : f32
    %2 = vector.broadcast %cst_2 : f32 to vector<2x64xf32>
    %3 = arith.mulf %1, %2 : vector<2x64xf32>
    %4 = arith.truncf %3 : vector<2x64xf32> to vector<2x64xbf16>
    %c0_3 = arith.constant 0 : index
    %c0_4 = arith.constant 0 : index
    %5 = vector.load %arg2[%c0_3, %c0_4] : memref<64x64xbf16, #tpu.memory_space<vmem>>, vector<64x64xbf16>
    %cst_5 = arith.constant dense<0.000000e+00> : vector<2x64xf32>
    %6 = tpu.matmul %4, %5, %cst_5 {dimension_numbers = #tpu.dot_dimension_numbers<[1], [0], [0], [1], [0, 0, 1, 1], [], []>} : vector<2x64xbf16>, vector<64x64xbf16>, vector<2x64xf32> -> vector<2x64xf32>
    %c0_6 = arith.constant 0 : index
    %c0_7 = arith.constant 0 : index
    %7 = vector.load %arg3[%c0_6, %c0_7] : memref<1x64xf32, #tpu.memory_space<vmem>>, vector<1x64xf32>
    %8 = vector.broadcast %7 : vector<1x64xf32> to vector<2x64xf32>
    %9 = arith.addf %6, %8 : vector<2x64xf32>
    %cst_8 = arith.constant 0.000000e+00 : f32
    %10 = vector.broadcast %cst_8 : f32 to vector<2x64xf32>
    %11 = arith.maximumf %9, %10 : vector<2x64xf32>
    %12 = arith.truncf %11 : vector<2x64xf32> to vector<2x64xbf16>
    %c0_9 = arith.constant 0 : index
    %c0_10 = arith.constant 0 : index
    %13 = vector.load %arg4[%c0_9, %c0_10] : memref<64x32xbf16, #tpu.memory_space<vmem>>, vector<64x32xbf16>
    %cst_11 = arith.constant dense<0.000000e+00> : vector<2x32xf32>
    %14 = tpu.matmul %12, %13, %cst_11 {dimension_numbers = #tpu.dot_dimension_numbers<[1], [0], [0], [1], [0, 0, 1, 1], [], []>} : vector<2x64xbf16>, vector<64x32xbf16>, vector<2x32xf32> -> vector<2x32xf32>
    %c0_12 = arith.constant 0 : index
    %c0_13 = arith.constant 0 : index
    %15 = vector.load %arg5[%c0_12, %c0_13] : memref<1x32xf32, #tpu.memory_space<vmem>>, vector<1x32xf32>
    %16 = vector.broadcast %15 : vector<1x32xf32> to vector<2x32xf32>
    %17 = arith.addf %14, %16 : vector<2x32xf32>
    %18 = arith.mulf %17, %17 : vector<2x32xf32>
    %cst_14 = arith.constant dense<0.000000e+00> : vector<2xf32>
    %19 = vector.multi_reduction <add>, %18, %cst_14 [1] : vector<2x32xf32> to vector<2xf32>
    %20 = vector.shape_cast %19 : vector<2xf32> to vector<2x1xf32>
    %cst_15 = arith.constant 1.000000e-24 : f32
    %21 = vector.broadcast %cst_15 : f32 to vector<2x1xf32>
    %22 = arith.maximumf %20, %21 : vector<2x1xf32>
    %23 = math.rsqrt %22 : vector<2x1xf32>
    %24 = vector.broadcast %23 : vector<2x1xf32> to vector<2x32xf32>
    %25 = arith.mulf %17, %24 : vector<2x32xf32>
    %c0_16 = arith.constant 0 : index
    %c0_17 = arith.constant 0 : index
    %26 = vector.load %arg6[%c0_16, %c0_17] : memref<2x32xf32, #tpu.memory_space<vmem>>, vector<2x32xf32>
    tpu.vector_store %arg6[%c0_16, %c0_17], %25 {strides = array<i32>} : memref<2x32xf32, #tpu.memory_space<vmem>>, vector<2x32xf32>,
    return
  }
  func.func @transform_0(%arg0: i32) -> (i32, i32, i32) {
    %c0_i32 = arith.constant 0 : i32
    %c0_i32_0 = arith.constant 0 : i32
    %c0_i32_1 = arith.constant 0 : i32
    %c0_i32_2 = arith.constant 0 : i32
    return %c0_i32, %c0_i32_0, %c0_i32_1 : i32, i32, i32
  }
  func.func @transform_1(%arg0: i32) -> (i32, i32) {
    %c0_i32 = arith.constant 0 : i32
    %c0_i32_0 = arith.constant 0 : i32
    %c0_i32_1 = arith.constant 0 : i32
    return %c0_i32, %c0_i32_0 : i32, i32
  }
  func.func @transform_2(%arg0: i32) -> (i32, i32) {
    %c0_i32 = arith.constant 0 : i32
    %c0_i32_0 = arith.constant 0 : i32
    %c0_i32_1 = arith.constant 0 : i32
    return %c0_i32, %c0_i32_0 : i32, i32
  }
  func.func @transform_3(%arg0: i32) -> (i32, i32) {
    %c0_i32 = arith.constant 0 : i32
    %c0_i32_0 = arith.constant 0 : i32
    %c0_i32_1 = arith.constant 0 : i32
    return %c0_i32, %c0_i32_0 : i32, i32
  }
  func.func @transform_4(%arg0: i32) -> (i32, i32) {
    %c0_i32 = arith.constant 0 : i32
    %c0_i32_0 = arith.constant 0 : i32
    %c0_i32_1 = arith.constant 0 : i32
    return %c0_i32, %c0_i32_0 : i32, i32
  }
  func.func @transform_5(%arg0: i32) -> (i32, i32) {
    %c0_i32 = arith.constant 0 : i32
    %c0_i32_0 = arith.constant 0 : i32
    %c0_i32_1 = arith.constant 0 : i32
    return %c0_i32, %c0_i32_0 : i32, i32
  }
}

module attributes {stable_mosaic.version = 11 : i64} {
  func.func @_block_kernel_s2(%arg0: i32, %arg1: memref<4x32xf32, #tpu.memory_space<vmem>>, %arg2: memref<12x32xf32, #tpu.memory_space<vmem>>, %arg3: memref<4x1xf32, #tpu.memory_space<vmem>>, %arg4: memref<4x1xf32, #tpu.memory_space<vmem>>, %arg5: memref<3x32x64xbf16, #tpu.memory_space<vmem>>, %arg6: memref<1x64xf32, #tpu.memory_space<vmem>>, %arg7: memref<1x64xf32, #tpu.memory_space<vmem>>, %arg8: memref<3x64x64xbf16, #tpu.memory_space<vmem>>, %arg9: memref<1x64xf32, #tpu.memory_space<vmem>>, %arg10: memref<1x64xf32, #tpu.memory_space<vmem>>, %arg11: memref<32x64xbf16, #tpu.memory_space<vmem>>, %arg12: memref<1x64xf32, #tpu.memory_space<vmem>>, %arg13: memref<1x64xf32, #tpu.memory_space<vmem>>, %arg14: memref<4x64xf32, #tpu.memory_space<vmem>>, %arg15: memref<20x64xf32, #tpu.memory_space<vmem>>) attributes {dimension_semantics = [#tpu.dimension_semantics<arbitrary>], iteration_bounds = array<i64: 1>, scalar_prefetch = 0 : i64, scratch_operands = 1 : i64, tpu.core_type = #tpu.core_type<tc>, window_params = [{pipeline_mode = #tpu.pipeline_mode<synchronous>, transform_indices = @transform_0, window_bounds = array<i64: 4, 32>}, {pipeline_mode = #tpu.pipeline_mode<synchronous>, transform_indices = @transform_1, window_bounds = array<i64: 12, 32>}, {pipeline_mode = #tpu.pipeline_mode<synchronous>, transform_indices = @transform_2, window_bounds = array<i64: 4, 1>}, {pipeline_mode = #tpu.pipeline_mode<synchronous>, transform_indices = @transform_3, window_bounds = array<i64: 4, 1>}, {pipeline_mode = #tpu.pipeline_mode<synchronous>, transform_indices = @transform_4, window_bounds = array<i64: 3, 32, 64>}, {pipeline_mode = #tpu.pipeline_mode<synchronous>, transform_indices = @transform_5, window_bounds = array<i64: 1, 64>}, {pipeline_mode = #tpu.pipeline_mode<synchronous>, transform_indices = @transform_6, window_bounds = array<i64: 1, 64>}, {pipeline_mode = #tpu.pipeline_mode<synchronous>, transform_indices = @transform_7, window_bounds = array<i64: 3, 64, 64>}, {pipeline_mode = #tpu.pipeline_mode<synchronous>, transform_indices = @transform_8, window_bounds = array<i64: 1, 64>}, {pipeline_mode = #tpu.pipeline_mode<synchronous>, transform_indices = @transform_9, window_bounds = array<i64: 1, 64>}, {pipeline_mode = #tpu.pipeline_mode<synchronous>, transform_indices = @transform_10, window_bounds = array<i64: 32, 64>}, {pipeline_mode = #tpu.pipeline_mode<synchronous>, transform_indices = @transform_11, window_bounds = array<i64: 1, 64>}, {pipeline_mode = #tpu.pipeline_mode<synchronous>, transform_indices = @transform_12, window_bounds = array<i64: 1, 64>}, {pipeline_mode = #tpu.pipeline_mode<synchronous>, transform_indices = @transform_13, window_bounds = array<i64: 4, 64>}]} {
    %c0 = arith.constant 0 : index
    %c0_0 = arith.constant 0 : index
    %0 = vector.load %arg3[%c0, %c0_0] : memref<4x1xf32, #tpu.memory_space<vmem>>, vector<4x1xf32>
    %c0_1 = arith.constant 0 : index
    %c0_2 = arith.constant 0 : index
    %1 = vector.load %arg4[%c0_1, %c0_2] : memref<4x1xf32, #tpu.memory_space<vmem>>, vector<4x1xf32>
    %c0_3 = arith.constant 0 : index
    %c0_4 = arith.constant 0 : index
    %2 = vector.load %arg1[%c0_3, %c0_4] : memref<4x32xf32, #tpu.memory_space<vmem>>, vector<4x32xf32>
    %c8 = arith.constant 8 : index
    %c0_5 = arith.constant 0 : index
    %3 = vector.load %arg2[%c8, %c0_5] : memref<12x32xf32, #tpu.memory_space<vmem>>, vector<4x32xf32>
    %c7 = arith.constant 7 : index
    %c0_6 = arith.constant 0 : index
    %4 = vector.load %arg2[%c7, %c0_6] : memref<12x32xf32, #tpu.memory_space<vmem>>, vector<4x32xf32>
    %5 = vector.broadcast %0 : vector<4x1xf32> to vector<4x32xf32>
    %6 = arith.mulf %4, %5 : vector<4x32xf32>
    %7 = arith.truncf %6 : vector<4x32xf32> to vector<4x32xbf16>
    %c0_7 = arith.constant 0 : index
    %c0_8 = arith.constant 0 : index
    %c0_9 = arith.constant 0 : index
    %8 = vector.load %arg5[%c0_7, %c0_8, %c0_9] : memref<3x32x64xbf16, #tpu.memory_space<vmem>>, vector<1x32x64xbf16>
    %9 = vector.shape_cast %8 : vector<1x32x64xbf16> to vector<32x64xbf16>
    %cst = arith.constant dense<0.000000e+00> : vector<4x64xf32>
    %10 = tpu.matmul %7, %9, %cst {dimension_numbers = #tpu.dot_dimension_numbers<[1], [0], [0], [1], [0, 0, 1, 1], [], []>} : vector<4x32xbf16>, vector<32x64xbf16>, vector<4x64xf32> -> vector<4x64xf32>
    %11 = arith.truncf %2 : vector<4x32xf32> to vector<4x32xbf16>
    %c1 = arith.constant 1 : index
    %c0_10 = arith.constant 0 : index
    %c0_11 = arith.constant 0 : index
    %12 = vector.load %arg5[%c1, %c0_10, %c0_11] : memref<3x32x64xbf16, #tpu.memory_space<vmem>>, vector<1x32x64xbf16>
    %13 = vector.shape_cast %12 : vector<1x32x64xbf16> to vector<32x64xbf16>
    %cst_12 = arith.constant dense<0.000000e+00> : vector<4x64xf32>
    %14 = tpu.matmul %11, %13, %cst_12 {dimension_numbers = #tpu.dot_dimension_numbers<[1], [0], [0], [1], [0, 0, 1, 1], [], []>} : vector<4x32xbf16>, vector<32x64xbf16>, vector<4x64xf32> -> vector<4x64xf32>
    %15 = arith.addf %10, %14 : vector<4x64xf32>
    %16 = arith.truncf %3 : vector<4x32xf32> to vector<4x32xbf16>
    %c2 = arith.constant 2 : index
    %c0_13 = arith.constant 0 : index
    %c0_14 = arith.constant 0 : index
    %17 = vector.load %arg5[%c2, %c0_13, %c0_14] : memref<3x32x64xbf16, #tpu.memory_space<vmem>>, vector<1x32x64xbf16>
    %18 = vector.shape_cast %17 : vector<1x32x64xbf16> to vector<32x64xbf16>
    %cst_15 = arith.constant dense<0.000000e+00> : vector<4x64xf32>
    %19 = tpu.matmul %16, %18, %cst_15 {dimension_numbers = #tpu.dot_dimension_numbers<[1], [0], [0], [1], [0, 0, 1, 1], [], []>} : vector<4x32xbf16>, vector<32x64xbf16>, vector<4x64xf32> -> vector<4x64xf32>
    %20 = arith.addf %15, %19 : vector<4x64xf32>
    %c0_16 = arith.constant 0 : index
    %c0_17 = arith.constant 0 : index
    %21 = vector.load %arg6[%c0_16, %c0_17] : memref<1x64xf32, #tpu.memory_space<vmem>>, vector<1x64xf32>
    %c0_18 = arith.constant 0 : index
    %c0_19 = arith.constant 0 : index
    %22 = vector.load %arg7[%c0_18, %c0_19] : memref<1x64xf32, #tpu.memory_space<vmem>>, vector<1x64xf32>
    %cst_20 = arith.constant dense<0.000000e+00> : vector<64xf32>
    %23 = vector.multi_reduction <add>, %20, %cst_20 [0] : vector<4x64xf32> to vector<64xf32>
    %24 = vector.shape_cast %23 : vector<64xf32> to vector<1x64xf32>
    %cst_21 = arith.constant 2.500000e-01 : f32
    %25 = vector.broadcast %cst_21 : f32 to vector<1x64xf32>
    %26 = arith.mulf %24, %25 : vector<1x64xf32>
    %27 = arith.mulf %20, %20 : vector<4x64xf32>
    %cst_22 = arith.constant dense<0.000000e+00> : vector<64xf32>
    %28 = vector.multi_reduction <add>, %27, %cst_22 [0] : vector<4x64xf32> to vector<64xf32>
    %29 = vector.shape_cast %28 : vector<64xf32> to vector<1x64xf32>
    %cst_23 = arith.constant 2.500000e-01 : f32
    %30 = vector.broadcast %cst_23 : f32 to vector<1x64xf32>
    %31 = arith.mulf %29, %30 : vector<1x64xf32>
    %32 = arith.mulf %26, %26 : vector<1x64xf32>
    %33 = arith.subf %31, %32 : vector<1x64xf32>
    %cst_24 = arith.constant 9.99999974E-6 : f32
    %34 = vector.broadcast %cst_24 : f32 to vector<1x64xf32>
    %35 = arith.addf %33, %34 : vector<1x64xf32>
    %36 = math.rsqrt %35 : vector<1x64xf32>
    %37 = arith.mulf %36, %21 : vector<1x64xf32>
    %38 = arith.mulf %26, %37 : vector<1x64xf32>
    %39 = arith.subf %22, %38 : vector<1x64xf32>
    %40 = vector.broadcast %37 : vector<1x64xf32> to vector<4x64xf32>
    %41 = arith.mulf %20, %40 : vector<4x64xf32>
    %42 = vector.broadcast %39 : vector<1x64xf32> to vector<4x64xf32>
    %43 = arith.addf %41, %42 : vector<4x64xf32>
    %cst_25 = arith.constant 0.000000e+00 : f32
    %44 = vector.broadcast %cst_25 : f32 to vector<4x64xf32>
    %45 = arith.maximumf %43, %44 : vector<4x64xf32>
    %cst_26 = arith.constant 0.000000e+00 : f32
    %46 = vector.broadcast %cst_26 : f32 to vector<8x64xf32>
    %c0_27 = arith.constant 0 : index
    %c0_28 = arith.constant 0 : index
    %47 = vector.load %arg15[%c0_27, %c0_28] : memref<20x64xf32, #tpu.memory_space<vmem>>, vector<8x64xf32>
    tpu.vector_store %arg15[%c0_27, %c0_28], %46 {strides = array<i32>} : memref<20x64xf32, #tpu.memory_space<vmem>>, vector<8x64xf32>,
    %c12 = arith.constant 12 : index
    %c0_29 = arith.constant 0 : index
    %48 = vector.load %arg15[%c12, %c0_29] : memref<20x64xf32, #tpu.memory_space<vmem>>, vector<8x64xf32>
    tpu.vector_store %arg15[%c12, %c0_29], %46 {strides = array<i32>} : memref<20x64xf32, #tpu.memory_space<vmem>>, vector<8x64xf32>,
    %c8_30 = arith.constant 8 : index
    %c0_31 = arith.constant 0 : index
    %49 = vector.load %arg15[%c8_30, %c0_31] : memref<20x64xf32, #tpu.memory_space<vmem>>, vector<4x64xf32>
    tpu.vector_store %arg15[%c8_30, %c0_31], %45 {strides = array<i32>} : memref<20x64xf32, #tpu.memory_space<vmem>>, vector<4x64xf32>,
    %c7_32 = arith.constant 7 : index
    %c0_33 = arith.constant 0 : index
    %50 = vector.load %arg15[%c7_32, %c0_33] : memref<20x64xf32, #tpu.memory_space<vmem>>, vector<4x64xf32>
    %51 = vector.broadcast %0 : vector<4x1xf32> to vector<4x64xf32>
    %52 = arith.mulf %50, %51 : vector<4x64xf32>
    %c9 = arith.constant 9 : index
    %c0_34 = arith.constant 0 : index
    %53 = vector.load %arg15[%c9, %c0_34] : memref<20x64xf32, #tpu.memory_space<vmem>>, vector<4x64xf32>
    %54 = vector.broadcast %1 : vector<4x1xf32> to vector<4x64xf32>
    %55 = arith.mulf %53, %54 : vector<4x64xf32>
    %56 = arith.truncf %52 : vector<4x64xf32> to vector<4x64xbf16>
    %c0_35 = arith.constant 0 : index
    %c0_36 = arith.constant 0 : index
    %c0_37 = arith.constant 0 : index
    %57 = vector.load %arg8[%c0_35, %c0_36, %c0_37] : memref<3x64x64xbf16, #tpu.memory_space<vmem>>, vector<1x64x64xbf16>
    %58 = vector.shape_cast %57 : vector<1x64x64xbf16> to vector<64x64xbf16>
    %cst_38 = arith.constant dense<0.000000e+00> : vector<4x64xf32>
    %59 = tpu.matmul %56, %58, %cst_38 {dimension_numbers = #tpu.dot_dimension_numbers<[1], [0], [0], [1], [0, 0, 1, 1], [], []>} : vector<4x64xbf16>, vector<64x64xbf16>, vector<4x64xf32> -> vector<4x64xf32>
    %60 = arith.truncf %45 : vector<4x64xf32> to vector<4x64xbf16>
    %c1_39 = arith.constant 1 : index
    %c0_40 = arith.constant 0 : index
    %c0_41 = arith.constant 0 : index
    %61 = vector.load %arg8[%c1_39, %c0_40, %c0_41] : memref<3x64x64xbf16, #tpu.memory_space<vmem>>, vector<1x64x64xbf16>
    %62 = vector.shape_cast %61 : vector<1x64x64xbf16> to vector<64x64xbf16>
    %cst_42 = arith.constant dense<0.000000e+00> : vector<4x64xf32>
    %63 = tpu.matmul %60, %62, %cst_42 {dimension_numbers = #tpu.dot_dimension_numbers<[1], [0], [0], [1], [0, 0, 1, 1], [], []>} : vector<4x64xbf16>, vector<64x64xbf16>, vector<4x64xf32> -> vector<4x64xf32>
    %64 = arith.addf %59, %63 : vector<4x64xf32>
    %65 = arith.truncf %55 : vector<4x64xf32> to vector<4x64xbf16>
    %c2_43 = arith.constant 2 : index
    %c0_44 = arith.constant 0 : index
    %c0_45 = arith.constant 0 : index
    %66 = vector.load %arg8[%c2_43, %c0_44, %c0_45] : memref<3x64x64xbf16, #tpu.memory_space<vmem>>, vector<1x64x64xbf16>
    %67 = vector.shape_cast %66 : vector<1x64x64xbf16> to vector<64x64xbf16>
    %cst_46 = arith.constant dense<0.000000e+00> : vector<4x64xf32>
    %68 = tpu.matmul %65, %67, %cst_46 {dimension_numbers = #tpu.dot_dimension_numbers<[1], [0], [0], [1], [0, 0, 1, 1], [], []>} : vector<4x64xbf16>, vector<64x64xbf16>, vector<4x64xf32> -> vector<4x64xf32>
    %69 = arith.addf %64, %68 : vector<4x64xf32>
    %c0_47 = arith.constant 0 : index
    %c0_48 = arith.constant 0 : index
    %70 = vector.load %arg9[%c0_47, %c0_48] : memref<1x64xf32, #tpu.memory_space<vmem>>, vector<1x64xf32>
    %c0_49 = arith.constant 0 : index
    %c0_50 = arith.constant 0 : index
    %71 = vector.load %arg10[%c0_49, %c0_50] : memref<1x64xf32, #tpu.memory_space<vmem>>, vector<1x64xf32>
    %cst_51 = arith.constant dense<0.000000e+00> : vector<64xf32>
    %72 = vector.multi_reduction <add>, %69, %cst_51 [0] : vector<4x64xf32> to vector<64xf32>
    %73 = vector.shape_cast %72 : vector<64xf32> to vector<1x64xf32>
    %cst_52 = arith.constant 2.500000e-01 : f32
    %74 = vector.broadcast %cst_52 : f32 to vector<1x64xf32>
    %75 = arith.mulf %73, %74 : vector<1x64xf32>
    %76 = arith.mulf %69, %69 : vector<4x64xf32>
    %cst_53 = arith.constant dense<0.000000e+00> : vector<64xf32>
    %77 = vector.multi_reduction <add>, %76, %cst_53 [0] : vector<4x64xf32> to vector<64xf32>
    %78 = vector.shape_cast %77 : vector<64xf32> to vector<1x64xf32>
    %cst_54 = arith.constant 2.500000e-01 : f32
    %79 = vector.broadcast %cst_54 : f32 to vector<1x64xf32>
    %80 = arith.mulf %78, %79 : vector<1x64xf32>
    %81 = arith.mulf %75, %75 : vector<1x64xf32>
    %82 = arith.subf %80, %81 : vector<1x64xf32>
    %cst_55 = arith.constant 9.99999974E-6 : f32
    %83 = vector.broadcast %cst_55 : f32 to vector<1x64xf32>
    %84 = arith.addf %82, %83 : vector<1x64xf32>
    %85 = math.rsqrt %84 : vector<1x64xf32>
    %86 = arith.mulf %85, %70 : vector<1x64xf32>
    %87 = arith.mulf %75, %86 : vector<1x64xf32>
    %88 = arith.subf %71, %87 : vector<1x64xf32>
    %89 = arith.truncf %2 : vector<4x32xf32> to vector<4x32xbf16>
    %c0_56 = arith.constant 0 : index
    %c0_57 = arith.constant 0 : index
    %90 = vector.load %arg11[%c0_56, %c0_57] : memref<32x64xbf16, #tpu.memory_space<vmem>>, vector<32x64xbf16>
    %cst_58 = arith.constant dense<0.000000e+00> : vector<4x64xf32>
    %91 = tpu.matmul %89, %90, %cst_58 {dimension_numbers = #tpu.dot_dimension_numbers<[1], [0], [0], [1], [0, 0, 1, 1], [], []>} : vector<4x32xbf16>, vector<32x64xbf16>, vector<4x64xf32> -> vector<4x64xf32>
    %c0_59 = arith.constant 0 : index
    %c0_60 = arith.constant 0 : index
    %92 = vector.load %arg12[%c0_59, %c0_60] : memref<1x64xf32, #tpu.memory_space<vmem>>, vector<1x64xf32>
    %c0_61 = arith.constant 0 : index
    %c0_62 = arith.constant 0 : index
    %93 = vector.load %arg13[%c0_61, %c0_62] : memref<1x64xf32, #tpu.memory_space<vmem>>, vector<1x64xf32>
    %cst_63 = arith.constant dense<0.000000e+00> : vector<64xf32>
    %94 = vector.multi_reduction <add>, %91, %cst_63 [0] : vector<4x64xf32> to vector<64xf32>
    %95 = vector.shape_cast %94 : vector<64xf32> to vector<1x64xf32>
    %cst_64 = arith.constant 2.500000e-01 : f32
    %96 = vector.broadcast %cst_64 : f32 to vector<1x64xf32>
    %97 = arith.mulf %95, %96 : vector<1x64xf32>
    %98 = arith.mulf %91, %91 : vector<4x64xf32>
    %cst_65 = arith.constant dense<0.000000e+00> : vector<64xf32>
    %99 = vector.multi_reduction <add>, %98, %cst_65 [0] : vector<4x64xf32> to vector<64xf32>
    %100 = vector.shape_cast %99 : vector<64xf32> to vector<1x64xf32>
    %cst_66 = arith.constant 2.500000e-01 : f32
    %101 = vector.broadcast %cst_66 : f32 to vector<1x64xf32>
    %102 = arith.mulf %100, %101 : vector<1x64xf32>
    %103 = arith.mulf %97, %97 : vector<1x64xf32>
    %104 = arith.subf %102, %103 : vector<1x64xf32>
    %cst_67 = arith.constant 9.99999974E-6 : f32
    %105 = vector.broadcast %cst_67 : f32 to vector<1x64xf32>
    %106 = arith.addf %104, %105 : vector<1x64xf32>
    %107 = math.rsqrt %106 : vector<1x64xf32>
    %108 = arith.mulf %107, %92 : vector<1x64xf32>
    %109 = arith.mulf %97, %108 : vector<1x64xf32>
    %110 = arith.subf %93, %109 : vector<1x64xf32>
    %111 = vector.broadcast %86 : vector<1x64xf32> to vector<4x64xf32>
    %112 = arith.mulf %69, %111 : vector<4x64xf32>
    %113 = vector.broadcast %88 : vector<1x64xf32> to vector<4x64xf32>
    %114 = arith.addf %112, %113 : vector<4x64xf32>
    %115 = vector.broadcast %108 : vector<1x64xf32> to vector<4x64xf32>
    %116 = arith.mulf %91, %115 : vector<4x64xf32>
    %117 = vector.broadcast %110 : vector<1x64xf32> to vector<4x64xf32>
    %118 = arith.addf %116, %117 : vector<4x64xf32>
    %119 = arith.addf %114, %118 : vector<4x64xf32>
    %cst_68 = arith.constant 0.000000e+00 : f32
    %120 = vector.broadcast %cst_68 : f32 to vector<4x64xf32>
    %121 = arith.maximumf %119, %120 : vector<4x64xf32>
    %c0_69 = arith.constant 0 : index
    %c0_70 = arith.constant 0 : index
    %122 = vector.load %arg14[%c0_69, %c0_70] : memref<4x64xf32, #tpu.memory_space<vmem>>, vector<4x64xf32>
    tpu.vector_store %arg14[%c0_69, %c0_70], %121 {strides = array<i32>} : memref<4x64xf32, #tpu.memory_space<vmem>>, vector<4x64xf32>,
    return
  }
  func.func @transform_0(%arg0: i32) -> (i32, i32) {
    %c0_i32 = arith.constant 0 : i32
    %c0_i32_0 = arith.constant 0 : i32
    %c0_i32_1 = arith.constant 0 : i32
    return %c0_i32, %c0_i32_0 : i32, i32
  }
  func.func @transform_1(%arg0: i32) -> (i32, i32) {
    %c0_i32 = arith.constant 0 : i32
    %c0_i32_0 = arith.constant 0 : i32
    %c0_i32_1 = arith.constant 0 : i32
    return %c0_i32, %c0_i32_0 : i32, i32
  }
  func.func @transform_2(%arg0: i32) -> (i32, i32) {
    %c0_i32 = arith.constant 0 : i32
    %c0_i32_0 = arith.constant 0 : i32
    %c0_i32_1 = arith.constant 0 : i32
    return %c0_i32, %c0_i32_0 : i32, i32
  }
  func.func @transform_3(%arg0: i32) -> (i32, i32) {
    %c0_i32 = arith.constant 0 : i32
    %c0_i32_0 = arith.constant 0 : i32
    %c0_i32_1 = arith.constant 0 : i32
    return %c0_i32, %c0_i32_0 : i32, i32
  }
  func.func @transform_4(%arg0: i32) -> (i32, i32, i32) {
    %c0_i32 = arith.constant 0 : i32
    %c0_i32_0 = arith.constant 0 : i32
    %c0_i32_1 = arith.constant 0 : i32
    %c0_i32_2 = arith.constant 0 : i32
    return %c0_i32, %c0_i32_0, %c0_i32_1 : i32, i32, i32
  }
  func.func @transform_5(%arg0: i32) -> (i32, i32) {
    %c0_i32 = arith.constant 0 : i32
    %c0_i32_0 = arith.constant 0 : i32
    %c0_i32_1 = arith.constant 0 : i32
    return %c0_i32, %c0_i32_0 : i32, i32
  }
  func.func @transform_6(%arg0: i32) -> (i32, i32) {
    %c0_i32 = arith.constant 0 : i32
    %c0_i32_0 = arith.constant 0 : i32
    %c0_i32_1 = arith.constant 0 : i32
    return %c0_i32, %c0_i32_0 : i32, i32
  }
  func.func @transform_7(%arg0: i32) -> (i32, i32, i32) {
    %c0_i32 = arith.constant 0 : i32
    %c0_i32_0 = arith.constant 0 : i32
    %c0_i32_1 = arith.constant 0 : i32
    %c0_i32_2 = arith.constant 0 : i32
    return %c0_i32, %c0_i32_0, %c0_i32_1 : i32, i32, i32
  }
  func.func @transform_8(%arg0: i32) -> (i32, i32) {
    %c0_i32 = arith.constant 0 : i32
    %c0_i32_0 = arith.constant 0 : i32
    %c0_i32_1 = arith.constant 0 : i32
    return %c0_i32, %c0_i32_0 : i32, i32
  }
  func.func @transform_9(%arg0: i32) -> (i32, i32) {
    %c0_i32 = arith.constant 0 : i32
    %c0_i32_0 = arith.constant 0 : i32
    %c0_i32_1 = arith.constant 0 : i32
    return %c0_i32, %c0_i32_0 : i32, i32
  }
  func.func @transform_10(%arg0: i32) -> (i32, i32) {
    %c0_i32 = arith.constant 0 : i32
    %c0_i32_0 = arith.constant 0 : i32
    %c0_i32_1 = arith.constant 0 : i32
    return %c0_i32, %c0_i32_0 : i32, i32
  }
  func.func @transform_11(%arg0: i32) -> (i32, i32) {
    %c0_i32 = arith.constant 0 : i32
    %c0_i32_0 = arith.constant 0 : i32
    %c0_i32_1 = arith.constant 0 : i32
    return %c0_i32, %c0_i32_0 : i32, i32
  }
  func.func @transform_12(%arg0: i32) -> (i32, i32) {
    %c0_i32 = arith.constant 0 : i32
    %c0_i32_0 = arith.constant 0 : i32
    %c0_i32_1 = arith.constant 0 : i32
    return %c0_i32, %c0_i32_0 : i32, i32
  }
  func.func @transform_13(%arg0: i32) -> (i32, i32) {
    %c0_i32 = arith.constant 0 : i32
    %c0_i32_0 = arith.constant 0 : i32
    %c0_i32_1 = arith.constant 0 : i32
    return %c0_i32, %c0_i32_0 : i32, i32
  }
}

</mosaic_0001>

<llo_original>
// kernel: forward.7
$region0: #{forward.7}
  #allocation0 [shape = 'u32[]', space=smem, size = 0x4, offset = 0x4, fixed_abs, tag = 'smem constant byte address 0x4 - core index']
  #allocation1 [shape = 'u32[144,128]{1,0:T(1,128)}', space=vmem, size = 0x12000, scoped, tag = 'internal scratch']
  #allocation2 [shape = 'f32[48,8]{1,0:T(8,128)}', space=vmem, size = 0x6000, scoped, tag = 'scratch operand']
  %s0 = inlined_call_operand.vmem [shape: f32[48,8], index: 0, kind: input, shape index: {}]
  %s1 = inlined_call_operand.vmem [shape: f32[32,1], index: 1, kind: input, shape index: {}]
  %s2 = inlined_call_operand.vmem [shape: f32[32,1], index: 2, kind: input, shape index: {}]
  %s3 = inlined_call_operand.vmem [shape: bf16[3,8,8], index: 3, kind: input, shape index: {}]
  %s4 = inlined_call_operand.vmem [shape: f32[1,8], index: 4, kind: input, shape index: {}]
  %s5 = inlined_call_operand.vmem [shape: f32[1,8], index: 5, kind: input, shape index: {}]
  %s6 = inlined_call_operand.vmem [shape: bf16[3,8,8], index: 6, kind: input, shape index: {}]
  %s7 = inlined_call_operand.vmem [shape: f32[1,8], index: 7, kind: input, shape index: {}]
  %s8 = inlined_call_operand.vmem [shape: f32[1,8], index: 8, kind: input, shape index: {}]
  %s9 = inlined_call_operand.vmem [shape: f32[32,8], index: 9, kind: output, shape index: {}]
  %s10 = sld [smem:[#allocation0]]
  $region46: #{forward.7} parent=0
    _
  %s12 = ssub.s32 1, %s10
  %s13 = scalar_select 0, %s12, %s10
  // Predicated region
  $region2: #{forward.7} parent=0 // pred_check
    _
  $region3: #{forward.7} parent=0 // pred_check_branch
    %15 = sbr.rel (0) target = $region5
  $region4: #{forward.7} parent=0 // pred_region
    _
  $region5: #{forward.7} parent=0 // pred_fallthru
    _
  // Predicated region
  $region6: #{forward.7} parent=0 // pred_check
    _
  $region7: #{forward.7} parent=0 // pred_check_branch
    %17 = sbr.rel (0) target = $region9
  $region8: #{forward.7} parent=0 // pred_region
    _
  $region9: #{forward.7} parent=0 // pred_fallthru
    _
  // Predicated region
  $region10: #{forward.7} parent=0 // pred_check
    _
  $region11: #{forward.7} parent=0 // pred_check_branch
    %19 = sbr.rel (0) target = $region13
  $region12: #{forward.7} parent=0 // pred_region
    _
  $region13: #{forward.7} parent=0 // pred_fallthru
    _
  // Predicated region
  $region14: #{forward.7} parent=0 // pred_check
    _
  $region15: #{forward.7} parent=0 // pred_check_branch
    %21 = sbr.rel (0) target = $region17
  $region16: #{forward.7} parent=0 // pred_region
    _
  $region17: #{forward.7} parent=0 // pred_fallthru
    _
  // Predicated region
  $region18: #{forward.7} parent=0 // pred_check
    _
  $region19: #{forward.7} parent=0 // pred_check_branch
    %23 = sbr.rel (0) target = $region21
  $region20: #{forward.7} parent=0 // pred_region
    _
  $region21: #{forward.7} parent=0 // pred_fallthru
    _
  // Predicated region
  $region22: #{forward.7} parent=0 // pred_check
    _
  $region23: #{forward.7} parent=0 // pred_check_branch
    %25 = sbr.rel (0) target = $region25
  $region24: #{forward.7} parent=0 // pred_region
    _
  $region25: #{forward.7} parent=0 // pred_fallthru
    _
  // Predicated region
  $region26: #{forward.7} parent=0 // pred_check
    _
  $region27: #{forward.7} parent=0 // pred_check_branch
    %27 = sbr.rel (0) target = $region29
  $region28: #{forward.7} parent=0 // pred_region
    _
  $region29: #{forward.7} parent=0 // pred_fallthru
    _
  // Predicated region
  $region30: #{forward.7} parent=0 // pred_check
    _
  $region31: #{forward.7} parent=0 // pred_check_branch
    %29 = sbr.rel (0) target = $region33
  $region32: #{forward.7} parent=0 // pred_region
    _
  $region33: #{forward.7} parent=0 // pred_fallthru
    _
  // Predicated region
  $region34: #{forward.7} parent=0 // pred_check
    _
  $region35: #{forward.7} parent=0 // pred_check_branch
    %31 = sbr.rel (0) target = $region37
  $region36: #{forward.7} parent=0 // pred_region
    _
  $region37: #{forward.7} parent=0 // pred_fallthru
    _
  %v33 = vld [vmem:[%s1] sm:$0xff]
  %v34 = vld [vmem:[%s1 + $0x8] sm:$0xff]
  %v35 = vld [vmem:[%s1 + $0x10] sm:$0xff]
  %v36 = vld [vmem:[%s1 + $0x18] sm:$0xff]
  %v37 = vld [vmem:[%s2] sm:$0xff]
  %v38 = vld [vmem:[%s2 + $0x8] sm:$0xff]
  %v39 = vld [vmem:[%s2 + $0x10] sm:$0xff]
  %v40 = vld [vmem:[%s2 + $0x18] sm:$0xff]
  %v41 = vld [vmem:[%s0 + $0x8] sm:$0xff]
  %v42 = vld [vmem:[%s0 + $0x10] sm:$0xff]
  %v43 = vld [vmem:[%s0 + $0x18] sm:$0xff]
  %v44 = vld [vmem:[%s0 + $0x20] sm:$0xff]
  %v45 = vld [vmem:[%s0 + $0x7] sm:$0xff]
  %v46 = vld [vmem:[%s0 + $0xf] sm:$0xff]
  %v47 = vld [vmem:[%s0 + $0x17] sm:$0xff]
  %v48 = vld [vmem:[%s0 + $0x1f] sm:$0xff]
  %50 = vset.pattern.permute.xlu0 0
  %51 = vperm.xlu0 %50, %v33
  %v52 = vpop.permute.xlu0 %51
  %55 = vset.pattern.permute.xlu0 0
  %56 = vperm.xlu0 %55, %v34
  %v57 = vpop.permute.xlu0 %56
  %60 = vset.pattern.permute.xlu0 0
  %61 = vperm.xlu0 %60, %v35
  %v62 = vpop.permute.xlu0 %61
  %65 = vset.pattern.permute.xlu0 0
  %66 = vperm.xlu0 %65, %v36
  %v67 = vpop.permute.xlu0 %66
  %v69 = vmul.f32 %v45, %v52
  %v70 = vmul.f32 %v46, %v57
  %v71 = vmul.f32 %v47, %v62
  %v72 = vmul.f32 %v48, %v67
  %v73 = vld [vmem:[%s0 + $0x9] sm:$0xff]
  %v74 = vld [vmem:[%s0 + $0x11] sm:$0xff]
  %v75 = vld [vmem:[%s0 + $0x19] sm:$0xff]
  %v76 = vld [vmem:[%s0 + $0x21] sm:$0xff]
  %78 = vset.pattern.permute.xlu0 0
  %79 = vperm.xlu0 %78, %v37
  %v80 = vpop.permute.xlu0 %79
  %83 = vset.pattern.permute.xlu0 0
  %84 = vperm.xlu0 %83, %v38
  %v85 = vpop.permute.xlu0 %84
  %88 = vset.pattern.permute.xlu0 0
  %89 = vperm.xlu0 %88, %v39
  %v90 = vpop.permute.xlu0 %89
  %93 = vset.pattern.permute.xlu0 0
  %94 = vperm.xlu0 %93, %v40
  %v95 = vpop.permute.xlu0 %94
  %v97 = vmul.f32 %v73, %v80
  %v98 = vmul.f32 %v74, %v85
  %v99 = vmul.f32 %v75, %v90
  %v100 = vmul.f32 %v76, %v95
  %v101 = vpack.c.bf16 %v70, %v69
  %v102 = vpack.c.bf16 %v72, %v71
  %v103 = vld [vmem:[%s3] sm:$0xf]
  %v104 = vpack.c.bf16 %v42, %v41
  %v105 = vpack.c.bf16 %v44, %v43
  %s106 = scalar_lea.vmem %s3, 4
  %v107 = vld [vmem:[%s106] sm:$0xf]
  %vm108 = vcmask 64512
  %v110 = vsel %vm108, %v104, 0
  %v113 = vsel %vm108, %v105, 0
  %vm115 = vcmask 1043456
  %v117 = vsel %vm115, %v107, 0
  %119 = vmatprep.subr.bf16.mxu0 0
  %120 = vmatpush1.bf16.msra.mxu0 %v117
  %121 = vmatprep.subr.bf16.mxu0 0
  %122 = vmatpush1.bf16.msra.mxu0 0
  %123 = vmatprep.subr.bf16.mxu0 0
  %124 = vmatpush1.bf16.msra.mxu0 0
  %125 = vmatprep.subr.bf16.mxu0 0
  %126 = vmatpush1.bf16.msra.mxu0 0
  %127 = vmatprep.subr.bf16.mxu0 0
  %128 = vmatpush1.bf16.msra.mxu0 0
  %129 = vmatprep.subr.bf16.mxu0 0
  %130 = vmatpush1.bf16.msra.mxu0 0
  %131 = vmatprep.subr.bf16.mxu0 0
  %132 = vmatpush1.bf16.msra.mxu0 0
  %133 = vmatprep.subr.bf16.mxu0 0
  %134 = vmatpush1.bf16.msra.mxu0 0
  %135 = vmatprep.subr.bf16.mxu0 0
  %136 = vmatpush1.bf16.msra.mxu0 0
  %137 = vmatprep.subr.bf16.mxu0 0
  %138 = vmatpush1.bf16.msra.mxu0 0
  %139 = vmatprep.subr.bf16.mxu0 0
  %140 = vmatpush1.bf16.msra.mxu0 0
  %141 = vmatprep.subr.bf16.mxu0 0
  %142 = vmatpush1.bf16.msra.mxu0 0
  %143 = vmatprep.subr.bf16.mxu0 0
  %144 = vmatpush1.bf16.msra.mxu0 0
  %145 = vmatprep.subr.bf16.mxu0 0
  %146 = vmatpush1.bf16.msra.mxu0 0
  %147 = vmatprep.subr.bf16.mxu0 0
  %148 = vmatpush1.bf16.msra.mxu0 0
  %149 = vmatprep.subr.bf16.mxu0 0
  %150 = vmatpush1.bf16.msra.mxu0 0
  %151 = vmatprep.mubr.bf16.mxu0 0
  %152 = vmatmul.mubr.bf16.gmra.mrb[0].mxu0 %v110
  %v153 = vpop.f32.mrb[0].mxu0
  %v154 = vadd.f32 0.0, %v153
  %v155 = vpop.f32.mrb[0].mxu0
  %v156 = vpop.f32.mrb[0].mxu0
  %v157 = vadd.f32 0.0, %v156
  %v158 = vpop.f32.mrb[0].mxu0
  %159 = vmatprep.mubr.bf16.mxu0 0
  %160 = vmatmul.mubr.bf16.gmra.mrb[0].mxu0 %v113
  %v161 = vpop.f32.mrb[0].mxu0
  %v162 = vadd.f32 0.0, %v161
  %v163 = vpop.f32.mrb[0].mxu0
  %v164 = vpop.f32.mrb[0].mxu0
  %v165 = vadd.f32 0.0, %v164
  %v166 = vpop.f32.mrb[0].mxu0
  %167 = vdwg.mxu0
  %v169 = vsel %vm108, %v101, 0
  %v172 = vsel %vm108, %v102, 0
  %v175 = vsel %vm115, %v103, 0
  %177 = vmatprep.subr.bf16.mxu0 0
  %178 = vmatpush1.bf16.msra.mxu0 %v175
  %179 = vmatprep.subr.bf16.mxu0 0
  %180 = vmatpush1.bf16.msra.mxu0 0
  %181 = vmatprep.subr.bf16.mxu0 0
  %182 = vmatpush1.bf16.msra.mxu0 0
  %183 = vmatprep.subr.bf16.mxu0 0
  %184 = vmatpush1.bf16.msra.mxu0 0
  %185 = vmatprep.subr.bf16.mxu0 0
  %186 = vmatpush1.bf16.msra.mxu0 0
  %187 = vmatprep.subr.bf16.mxu0 0
  %188 = vmatpush1.bf16.msra.mxu0 0
  %189 = vmatprep.subr.bf16.mxu0 0
  %190 = vmatpush1.bf16.msra.mxu0 0
  %191 = vmatprep.subr.bf16.mxu0 0
  %192 = vmatpush1.bf16.msra.mxu0 0
  %193 = vmatprep.subr.bf16.mxu0 0
  %194 = vmatpush1.bf16.msra.mxu0 0
  %195 = vmatprep.subr.bf16.mxu0 0
  %196 = vmatpush1.bf16.msra.mxu0 0
  %197 = vmatprep.subr.bf16.mxu0 0
  %198 = vmatpush1.bf16.msra.mxu0 0
  %199 = vmatprep.subr.bf16.mxu0 0
  %200 = vmatpush1.bf16.msra.mxu0 0
  %201 = vmatprep.subr.bf16.mxu0 0
  %202 = vmatpush1.bf16.msra.mxu0 0
  %203 = vmatprep.subr.bf16.mxu0 0
  %204 = vmatpush1.bf16.msra.mxu0 0
  %205 = vmatprep.subr.bf16.mxu0 0
  %206 = vmatpush1.bf16.msra.mxu0 0
  %207 = vmatprep.subr.bf16.mxu0 0
  %208 = vmatpush1.bf16.msra.mxu0 0
  %209 = vmatprep.mubr.bf16.mxu0 0
  %210 = vmatmul.mubr.bf16.gmra.mrb[0].mxu0 %v169
  %v211 = vpop.f32.mrb[0].mxu0
  %v212 = vadd.f32 %v154, %v211
  %v213 = vpop.f32.mrb[0].mxu0
  %v214 = vpop.f32.mrb[0].mxu0
  %v215 = vadd.f32 %v157, %v214
  %v216 = vpop.f32.mrb[0].mxu0
  %217 = vmatprep.mubr.bf16.mxu0 0
  %218 = vmatmul.mubr.bf16.gmra.mrb[0].mxu0 %v172
  %v219 = vpop.f32.mrb[0].mxu0
  %v220 = vadd.f32 %v162, %v219
  %v221 = vpop.f32.mrb[0].mxu0
  %v222 = vpop.f32.mrb[0].mxu0
  %v223 = vadd.f32 %v165, %v222
  %v224 = vpop.f32.mrb[0].mxu0
  %225 = vdwg.mxu0
  %v226 = vpack.c.bf16 %v98, %v97
  %v227 = vpack.c.bf16 %v100, %v99
  %s228 = scalar_lea.vmem %s3, 8
  %v229 = vld [vmem:[%s228] sm:$0xf]
  %v231 = vsel %vm108, %v226, 0
  %v234 = vsel %vm108, %v227, 0
  %v237 = vsel %vm115, %v229, 0
  %239 = vmatprep.subr.bf16.mxu0 0
  %240 = vmatpush1.bf16.msra.mxu0 %v237
  %241 = vmatprep.subr.bf16.mxu0 0
  %242 = vmatpush1.bf16.msra.mxu0 0
  %243 = vmatprep.subr.bf16.mxu0 0
  %244 = vmatpush1.bf16.msra.mxu0 0
  %245 = vmatprep.subr.bf16.mxu0 0
  %246 = vmatpush1.bf16.msra.mxu0 0
  %247 = vmatprep.subr.bf16.mxu0 0
  %248 = vmatpush1.bf16.msra.mxu0 0
  %249 = vmatprep.subr.bf16.mxu0 0
  %250 = vmatpush1.bf16.msra.mxu0 0
  %251 = vmatprep.subr.bf16.mxu0 0
  %252 = vmatpush1.bf16.msra.mxu0 0
  %253 = vmatprep.subr.bf16.mxu0 0
  %254 = vmatpush1.bf16.msra.mxu0 0
  %255 = vmatprep.subr.bf16.mxu0 0
  %256 = vmatpush1.bf16.msra.mxu0 0
  %257 = vmatprep.subr.bf16.mxu0 0
  %258 = vmatpush1.bf16.msra.mxu0 0
  %259 = vmatprep.subr.bf16.mxu0 0
  %260 = vmatpush1.bf16.msra.mxu0 0
  %261 = vmatprep.subr.bf16.mxu0 0
  %262 = vmatpush1.bf16.msra.mxu0 0
  %263 = vmatprep.subr.bf16.mxu0 0
  %264 = vmatpush1.bf16.msra.mxu0 0
  %265 = vmatprep.subr.bf16.mxu0 0
  %266 = vmatpush1.bf16.msra.mxu0 0
  %267 = vmatprep.subr.bf16.mxu0 0
  %268 = vmatpush1.bf16.msra.mxu0 0
  %269 = vmatprep.subr.bf16.mxu0 0
  %270 = vmatpush1.bf16.msra.mxu0 0
  %271 = vmatprep.mubr.bf16.mxu0 0
  %272 = vmatmul.mubr.bf16.gmra.mrb[0].mxu0 %v231
  %v273 = vpop.f32.mrb[0].mxu0
  %v274 = vadd.f32 0.0, %v273
  %v275 = vpop.f32.mrb[0].mxu0
  %v276 = vpop.f32.mrb[0].mxu0
  %v277 = vadd.f32 0.0, %v276
  %v278 = vpop.f32.mrb[0].mxu0
  %279 = vmatprep.mubr.bf16.mxu0 0
  %280 = vmatmul.mubr.bf16.gmra.mrb[0].mxu0 %v234
  %v281 = vpop.f32.mrb[0].mxu0
  %v282 = vadd.f32 0.0, %v281
  %v283 = vpop.f32.mrb[0].mxu0
  %v284 = vpop.f32.mrb[0].mxu0
  %v285 = vadd.f32 0.0, %v284
  %v286 = vpop.f32.mrb[0].mxu0
  %287 = vdwg.mxu0
  %v288 = vadd.f32 %v212, %v274
  %v289 = vadd.f32 %v215, %v277
  %v290 = vadd.f32 %v220, %v282
  %v291 = vadd.f32 %v223, %v285
  %v292 = vld [vmem:[%s4] sm:$0x1]
  %v293 = vld [vmem:[%s5] sm:$0x1]
  %v294 = vsel %vm108, %v288, 0.0
  %v295 = vsel %vm108, %v289, 0.0
  %v296 = vadd.f32 %v294, %v295
  %v297 = vsel %vm108, %v290, 0.0
  %v298 = vadd.f32 %v296, %v297
  %v299 = vsel %vm108, %v291, 0.0
  %v300 = vadd.f32 %v298, %v299
  %v301 = vrot.slane %v300, 4
  %v302 = vadd.f32 %v300, %v301
  %v303 = vrot.slane %v302, 2
  %v304 = vadd.f32 %v302, %v303
  %v305 = vrot.slane %v304, 1
  %v306 = vadd.f32 %v304, %v305
  %v307 = vmul.f32 %v306, 0.03125
  %v308 = vmul.f32 %v288, %v288
  %v309 = vmul.f32 %v289, %v289
  %v310 = vmul.f32 %v290, %v290
  %v311 = vmul.f32 %v291, %v291
  %v312 = vsel %vm108, %v308, 0.0
  %v313 = vsel %vm108, %v309, 0.0
  %v314 = vadd.f32 %v312, %v313
  %v315 = vsel %vm108, %v310, 0.0
  %v316 = vadd.f32 %v314, %v315
  %v317 = vsel %vm108, %v311, 0.0
  %v318 = vadd.f32 %v316, %v317
  %v319 = vrot.slane %v318, 4
  %v320 = vadd.f32 %v318, %v319
  %v321 = vrot.slane %v320, 2
  %v322 = vadd.f32 %v320, %v321
  %v323 = vrot.slane %v322, 1
  %v324 = vadd.f32 %v322, %v323
  %v325 = vmul.f32 %v324, 0.03125
  %v326 = vmul.f32 %v307, %v307
  %v327 = vsub.f32 %v325, %v326
  %v328 = vadd.f32 %v327, 1e-05
  %v329 = vrsqrt.pop %v328
  %v330 = vmul.f32 %v329, %v292
  %v331 = vmul.f32 %v307, %v330
  %v332 = vsub.f32 %v293, %v331
  %v333 = vlaneseq
  %v334 = vshrl.u32 %v333, 7
  %v335 = vsub.s32 0, %v334
  %v336 = vrot.slane %v330, %v335
  %v337 = vmul.f32 %v288, %v336
  %v338 = vmul.f32 %v289, %v336
  %v339 = vmul.f32 %v290, %v336
  %v340 = vmul.f32 %v291, %v336
  %v342 = vlaneseq
  %v343 = vshrl.u32 %v342, 7
  %v344 = vsub.s32 0, %v343
  %v345 = vrot.slane %v332, %v344
  %v347 = vadd.f32 %v337, %v345
  %v348 = vadd.f32 %v338, %v345
  %v349 = vadd.f32 %v339, %v345
  %v350 = vadd.f32 %v340, %v345
  %v351 = vmax.f32 %v347, 0.0
  %v352 = vmax.f32 %v348, 0.0
  %v353 = vmax.f32 %v349, 0.0
  %v354 = vmax.f32 %v350, 0.0
  %355 = vst.msk [vmem:[#allocation2] sm:$0xff] %vm108, 0.0
  %356 = vst.msk [vmem:[#allocation2 + $0x28] sm:$0xff] %vm108, 0.0
  %357 = vst.msk [vmem:[#allocation2 + $0x8] sm:$0xff] %vm108, %v351
  %358 = vst.msk [vmem:[#allocation2 + $0x10] sm:$0xff] %vm108, %v352
  %359 = vst.msk [vmem:[#allocation2 + $0x18] sm:$0xff] %vm108, %v353
  %360 = vst.msk [vmem:[#allocation2 + $0x20] sm:$0xff] %vm108, %v354
  %v361 = vld [vmem:[#allocation2 + $0x7] sm:$0xff]
  %v362 = vld [vmem:[#allocation2 + $0xf] sm:$0xff]
  %v363 = vld [vmem:[#allocation2 + $0x17] sm:$0xff]
  %v364 = vld [vmem:[#allocation2 + $0x1f] sm:$0xff]
  %v365 = vmul.f32 %v361, %v52
  %v366 = vmul.f32 %v362, %v57
  %v367 = vmul.f32 %v363, %v62
  %v368 = vmul.f32 %v364, %v67
  %v369 = vld [vmem:[#allocation2 + $0x9] sm:$0xff]
  %v370 = vld [vmem:[#allocation2 + $0x11] sm:$0xff]
  %v371 = vld [vmem:[#allocation2 + $0x19] sm:$0xff]
  %v372 = vld [vmem:[#allocation2 + $0x21] sm:$0xff]
  %v373 = vmul.f32 %v369, %v80
  %v374 = vmul.f32 %v370, %v85
  %v375 = vmul.f32 %v371, %v90
  %v376 = vmul.f32 %v372, %v95
  %v377 = vpack.c.bf16 %v366, %v365
  %v378 = vpack.c.bf16 %v368, %v367
  %v379 = vld [vmem:[%s6] sm:$0xf]
  %v380 = vpack.c.bf16 %v352, %v351
  %v381 = vpack.c.bf16 %v354, %v353
  %s382 = scalar_lea.vmem %s6, 4
  %v383 = vld [vmem:[%s382] sm:$0xf]
  %v385 = vsel %vm108, %v380, 0
  %v388 = vsel %vm108, %v381, 0
  %v391 = vsel %vm115, %v383, 0
  %393 = vmatprep.subr.bf16.mxu0 0
  %394 = vmatpush1.bf16.msra.mxu0 %v391
  %395 = vmatprep.subr.bf16.mxu0 0
  %396 = vmatpush1.bf16.msra.mxu0 0
  %397 = vmatprep.subr.bf16.mxu0 0
  %398 = vmatpush1.bf16.msra.mxu0 0
  %399 = vmatprep.subr.bf16.mxu0 0
  %400 = vmatpush1.bf16.msra.mxu0 0
  %401 = vmatprep.subr.bf16.mxu0 0
  %402 = vmatpush1.bf16.msra.mxu0 0
  %403 = vmatprep.subr.bf16.mxu0 0
  %404 = vmatpush1.bf16.msra.mxu0 0
  %405 = vmatprep.subr.bf16.mxu0 0
  %406 = vmatpush1.bf16.msra.mxu0 0
  %407 = vmatprep.subr.bf16.mxu0 0
  %408 = vmatpush1.bf16.msra.mxu0 0
  %409 = vmatprep.subr.bf16.mxu0 0
  %410 = vmatpush1.bf16.msra.mxu0 0
  %411 = vmatprep.subr.bf16.mxu0 0
  %412 = vmatpush1.bf16.msra.mxu0 0
  %413 = vmatprep.subr.bf16.mxu0 0
  %414 = vmatpush1.bf16.msra.mxu0 0
  %415 = vmatprep.subr.bf16.mxu0 0
  %416 = vmatpush1.bf16.msra.mxu0 0
  %417 = vmatprep.subr.bf16.mxu0 0
  %418 = vmatpush1.bf16.msra.mxu0 0
  %419 = vmatprep.subr.bf16.mxu0 0
  %420 = vmatpush1.bf16.msra.mxu0 0
  %421 = vmatprep.subr.bf16.mxu0 0
  %422 = vmatpush1.bf16.msra.mxu0 0
  %423 = vmatprep.subr.bf16.mxu0 0
  %424 = vmatpush1.bf16.msra.mxu0 0
  %425 = vmatprep.mubr.bf16.mxu0 0
  %426 = vmatmul.mubr.bf16.gmra.mrb[0].mxu0 %v385
  %v427 = vpop.f32.mrb[0].mxu0
  %v428 = vadd.f32 0.0, %v427
  %v429 = vpop.f32.mrb[0].mxu0
  %v430 = vpop.f32.mrb[0].mxu0
  %v431 = vadd.f32 0.0, %v430
  %v432 = vpop.f32.mrb[0].mxu0
  %433 = vmatprep.mubr.bf16.mxu0 0
  %434 = vmatmul.mubr.bf16.gmra.mrb[0].mxu0 %v388
  %v435 = vpop.f32.mrb[0].mxu0
  %v436 = vadd.f32 0.0, %v435
  %v437 = vpop.f32.mrb[0].mxu0
  %v438 = vpop.f32.mrb[0].mxu0
  %v439 = vadd.f32 0.0, %v438
  %v440 = vpop.f32.mrb[0].mxu0
  %441 = vdwg.mxu0
  %v443 = vsel %vm108, %v377, 0
  %v446 = vsel %vm108, %v378, 0
  %v449 = vsel %vm115, %v379, 0
  %451 = vmatprep.subr.bf16.mxu0 0
  %452 = vmatpush1.bf16.msra.mxu0 %v449
  %453 = vmatprep.subr.bf16.mxu0 0
  %454 = vmatpush1.bf16.msra.mxu0 0
  %455 = vmatprep.subr.bf16.mxu0 0
  %456 = vmatpush1.bf16.msra.mxu0 0
  %457 = vmatprep.subr.bf16.mxu0 0
  %458 = vmatpush1.bf16.msra.mxu0 0
  %459 = vmatprep.subr.bf16.mxu0 0
  %460 = vmatpush1.bf16.msra.mxu0 0
  %461 = vmatprep.subr.bf16.mxu0 0
  %462 = vmatpush1.bf16.msra.mxu0 0
  %463 = vmatprep.subr.bf16.mxu0 0
  %464 = vmatpush1.bf16.msra.mxu0 0
  %465 = vmatprep.subr.bf16.mxu0 0
  %466 = vmatpush1.bf16.msra.mxu0 0
  %467 = vmatprep.subr.bf16.mxu0 0
  %468 = vmatpush1.bf16.msra.mxu0 0
  %469 = vmatprep.subr.bf16.mxu0 0
  %470 = vmatpush1.bf16.msra.mxu0 0
  %471 = vmatprep.subr.bf16.mxu0 0
  %472 = vmatpush1.bf16.msra.mxu0 0
  %473 = vmatprep.subr.bf16.mxu0 0
  %474 = vmatpush1.bf16.msra.mxu0 0
  %475 = vmatprep.subr.bf16.mxu0 0
  %476 = vmatpush1.bf16.msra.mxu0 0
  %477 = vmatprep.subr.bf16.mxu0 0
  %478 = vmatpush1.bf16.msra.mxu0 0
  %479 = vmatprep.subr.bf16.mxu0 0
  %480 = vmatpush1.bf16.msra.mxu0 0
  %481 = vmatprep.subr.bf16.mxu0 0
  %482 = vmatpush1.bf16.msra.mxu0 0
  %483 = vmatprep.mubr.bf16.mxu0 0
  %484 = vmatmul.mubr.bf16.gmra.mrb[0].mxu0 %v443
  %v485 = vpop.f32.mrb[0].mxu0
  %v486 = vadd.f32 %v428, %v485
  %v487 = vpop.f32.mrb[0].mxu0
  %v488 = vpop.f32.mrb[0].mxu0
  %v489 = vadd.f32 %v431, %v488
  %v490 = vpop.f32.mrb[0].mxu0
  %491 = vmatprep.mubr.bf16.mxu0 0
  %492 = vmatmul.mubr.bf16.gmra.mrb[0].mxu0 %v446
  %v493 = vpop.f32.mrb[0].mxu0
  %v494 = vadd.f32 %v436, %v493
  %v495 = vpop.f32.mrb[0].mxu0
  %v496 = vpop.f32.mrb[0].mxu0
  %v497 = vadd.f32 %v439, %v496
  %v498 = vpop.f32.mrb[0].mxu0
  %499 = vdwg.mxu0
  %v500 = vpack.c.bf16 %v374, %v373
  %v501 = vpack.c.bf16 %v376, %v375
  %s502 = scalar_lea.vmem %s6, 8
  %v503 = vld [vmem:[%s502] sm:$0xf]
  %v505 = vsel %vm108, %v500, 0
  %v508 = vsel %vm108, %v501, 0
  %v511 = vsel %vm115, %v503, 0
  %513 = vmatprep.subr.bf16.mxu0 0
  %514 = vmatpush1.bf16.msra.mxu0 %v511
  %515 = vmatprep.subr.bf16.mxu0 0
  %516 = vmatpush1.bf16.msra.mxu0 0
  %517 = vmatprep.subr.bf16.mxu0 0
  %518 = vmatpush1.bf16.msra.mxu0 0
  %519 = vmatprep.subr.bf16.mxu0 0
  %520 = vmatpush1.bf16.msra.mxu0 0
  %521 = vmatprep.subr.bf16.mxu0 0
  %522 = vmatpush1.bf16.msra.mxu0 0
  %523 = vmatprep.subr.bf16.mxu0 0
  %524 = vmatpush1.bf16.msra.mxu0 0
  %525 = vmatprep.subr.bf16.mxu0 0
  %526 = vmatpush1.bf16.msra.mxu0 0
  %527 = vmatprep.subr.bf16.mxu0 0
  %528 = vmatpush1.bf16.msra.mxu0 0
  %529 = vmatprep.subr.bf16.mxu0 0
  %530 = vmatpush1.bf16.msra.mxu0 0
  %531 = vmatprep.subr.bf16.mxu0 0
  %532 = vmatpush1.bf16.msra.mxu0 0
  %533 = vmatprep.subr.bf16.mxu0 0
  %534 = vmatpush1.bf16.msra.mxu0 0
  %535 = vmatprep.subr.bf16.mxu0 0
  %536 = vmatpush1.bf16.msra.mxu0 0
  %537 = vmatprep.subr.bf16.mxu0 0
  %538 = vmatpush1.bf16.msra.mxu0 0
  %539 = vmatprep.subr.bf16.mxu0 0
  %540 = vmatpush1.bf16.msra.mxu0 0
  %541 = vmatprep.subr.bf16.mxu0 0
  %542 = vmatpush1.bf16.msra.mxu0 0
  %543 = vmatprep.subr.bf16.mxu0 0
  %544 = vmatpush1.bf16.msra.mxu0 0
  %545 = vmatprep.mubr.bf16.mxu0 0
  %546 = vmatmul.mubr.bf16.gmra.mrb[0].mxu0 %v505
  %v547 = vpop.f32.mrb[0].mxu0
  %v548 = vadd.f32 0.0, %v547
  %v549 = vpop.f32.mrb[0].mxu0
  %v550 = vpop.f32.mrb[0].mxu0
  %v551 = vadd.f32 0.0, %v550
  %v552 = vpop.f32.mrb[0].mxu0
  %553 = vmatprep.mubr.bf16.mxu0 0
  %554 = vmatmul.mubr.bf16.gmra.mrb[0].mxu0 %v508
  %v555 = vpop.f32.mrb[0].mxu0
  %v556 = vadd.f32 0.0, %v555
  %v557 = vpop.f32.mrb[0].mxu0
  %v558 = vpop.f32.mrb[0].mxu0
  %v559 = vadd.f32 0.0, %v558
  %v560 = vpop.f32.mrb[0].mxu0
  %561 = vdwg.mxu0
  %v562 = vadd.f32 %v486, %v548
  %v563 = vadd.f32 %v489, %v551
  %v564 = vadd.f32 %v494, %v556
  %v565 = vadd.f32 %v497, %v559
  %v566 = vld [vmem:[%s7] sm:$0x1]
  %v567 = vld [vmem:[%s8] sm:$0x1]
  %v568 = vsel %vm108, %v562, 0.0
  %v569 = vsel %vm108, %v563, 0.0
  %v570 = vadd.f32 %v568, %v569
  %v571 = vsel %vm108, %v564, 0.0
  %v572 = vadd.f32 %v570, %v571
  %v573 = vsel %vm108, %v565, 0.0
  %v574 = vadd.f32 %v572, %v573
  %v575 = vrot.slane %v574, 4
  %v576 = vadd.f32 %v574, %v575
  %v577 = vrot.slane %v576, 2
  %v578 = vadd.f32 %v576, %v577
  %v579 = vrot.slane %v578, 1
  %v580 = vadd.f32 %v578, %v579
  %v581 = vmul.f32 %v580, 0.03125
  %v582 = vmul.f32 %v562, %v562
  %v583 = vmul.f32 %v563, %v563
  %v584 = vmul.f32 %v564, %v564
  %v585 = vmul.f32 %v565, %v565
  %v586 = vsel %vm108, %v582, 0.0
  %v587 = vsel %vm108, %v583, 0.0
  %v588 = vadd.f32 %v586, %v587
  %v589 = vsel %vm108, %v584, 0.0
  %v590 = vadd.f32 %v588, %v589
  %v591 = vsel %vm108, %v585, 0.0
  %v592 = vadd.f32 %v590, %v591
  %v593 = vrot.slane %v592, 4
  %v594 = vadd.f32 %v592, %v593
  %v595 = vrot.slane %v594, 2
  %v596 = vadd.f32 %v594, %v595
  %v597 = vrot.slane %v596, 1
  %v598 = vadd.f32 %v596, %v597
  %v599 = vmul.f32 %v598, 0.03125
  %v600 = vmul.f32 %v581, %v581
  %v601 = vsub.f32 %v599, %v600
  %v602 = vadd.f32 %v601, 1e-05
  %v603 = vrsqrt.pop %v602
  %v604 = vmul.f32 %v603, %v566
  %v605 = vmul.f32 %v581, %v604
  %v606 = vsub.f32 %v567, %v605
  %v607 = vlaneseq
  %v608 = vshrl.u32 %v607, 7
  %v609 = vsub.s32 0, %v608
  %v610 = vrot.slane %v604, %v609
  %v611 = vmul.f32 %v562, %v610
  %v612 = vmul.f32 %v563, %v610
  %v613 = vmul.f32 %v564, %v610
  %v614 = vmul.f32 %v565, %v610
  %v616 = vlaneseq
  %v617 = vshrl.u32 %v616, 7
  %v618 = vsub.s32 0, %v617
  %v619 = vrot.slane %v606, %v618
  %v621 = vadd.f32 %v611, %v619
  %v622 = vadd.f32 %v612, %v619
  %v623 = vadd.f32 %v613, %v619
  %v624 = vadd.f32 %v614, %v619
  %v625 = vadd.f32 %v621, %v41
  %v626 = vadd.f32 %v622, %v42
  %v627 = vadd.f32 %v623, %v43
  %v628 = vadd.f32 %v624, %v44
  %v629 = vmax.f32 %v625, 0.0
  %v630 = vmax.f32 %v626, 0.0
  %v631 = vmax.f32 %v627, 0.0
  %v632 = vmax.f32 %v628, 0.0
  %633 = vst.msk [vmem:[%s9] sm:$0xff] %vm108, %v629
  %634 = vst.msk [vmem:[%s9 + $0x8] sm:$0xff] %vm108, %v630
  %635 = vst.msk [vmem:[%s9 + $0x10] sm:$0xff] %vm108, %v631
  %636 = vst.msk [vmem:[%s9 + $0x18] sm:$0xff] %vm108, %v632
  // Predicated region
  $region38: #{forward.7} parent=0 // pred_check
    _
  $region39: #{forward.7} parent=0 // pred_check_branch
    %638 = sbr.rel (0) target = $region41
  $region40: #{forward.7} parent=0 // pred_region
    _
  $region41: #{forward.7} parent=0 // pred_fallthru
    _
  // Predicated region
  $region42: #{forward.7} parent=0 // pred_check
    _
  $region43: #{forward.7} parent=0 // pred_check_branch
    %640 = sbr.rel (0) target = $region45
  $region44: #{forward.7} parent=0 // pred_region
    _
  $region45: #{forward.7} parent=0 // pred_fallthru
    _

// kernel: forward.8
$region0: #{forward.8}
  #allocation0 [shape = 'u32[]', space=smem, size = 0x4, offset = 0x4, fixed_abs, tag = 'smem constant byte address 0x4 - core index']
  #allocation1 [shape = 'u32[144,128]{1,0:T(1,128)}', space=vmem, size = 0x12000, scoped, tag = 'internal scratch']
  #allocation2 [shape = 'f32[32,16]{1,0:T(8,128)}', space=vmem, size = 0x4000, scoped, tag = 'scratch operand']
  %s0 = inlined_call_operand.vmem [shape: f32[16,8], index: 0, kind: input, shape index: {}]
  %s1 = inlined_call_operand.vmem [shape: f32[24,8], index: 1, kind: input, shape index: {}]
  %s2 = inlined_call_operand.vmem [shape: f32[16,1], index: 2, kind: input, shape index: {}]
  %s3 = inlined_call_operand.vmem [shape: f32[16,1], index: 3, kind: input, shape index: {}]
  %s4 = inlined_call_operand.vmem [shape: bf16[3,8,16], index: 4, kind: input, shape index: {}]
  %s5 = inlined_call_operand.vmem [shape: f32[1,16], index: 5, kind: input, shape index: {}]
  %s6 = inlined_call_operand.vmem [shape: f32[1,16], index: 6, kind: input, shape index: {}]
  %s7 = inlined_call_operand.vmem [shape: bf16[3,16,16], index: 7, kind: input, shape index: {}]
  %s8 = inlined_call_operand.vmem [shape: f32[1,16], index: 8, kind: input, shape index: {}]
  %s9 = inlined_call_operand.vmem [shape: f32[1,16], index: 9, kind: input, shape index: {}]
  %s10 = inlined_call_operand.vmem [shape: bf16[8,16], index: 10, kind: input, shape index: {}]
  %s11 = inlined_call_operand.vmem [shape: f32[1,16], index: 11, kind: input, shape index: {}]
  %s12 = inlined_call_operand.vmem [shape: f32[1,16], index: 12, kind: input, shape index: {}]
  %s13 = inlined_call_operand.vmem [shape: f32[16,16], index: 13, kind: output, shape index: {}]
  %s14 = sld [smem:[#allocation0]]
  $region62: #{forward.8} parent=0
    _
  %s16 = ssub.s32 1, %s14
  %s17 = scalar_select 0, %s16, %s14
  // Predicated region
  $region2: #{forward.8} parent=0 // pred_check
    _
  $region3: #{forward.8} parent=0 // pred_check_branch
    %19 = sbr.rel (0) target = $region5
  $region4: #{forward.8} parent=0 // pred_region
    _
  $region5: #{forward.8} parent=0 // pred_fallthru
    _
  // Predicated region
  $region6: #{forward.8} parent=0 // pred_check
    _
  $region7: #{forward.8} parent=0 // pred_check_branch
    %21 = sbr.rel (0) target = $region9
  $region8: #{forward.8} parent=0 // pred_region
    _
  $region9: #{forward.8} parent=0 // pred_fallthru
    _
  // Predicated region
  $region10: #{forward.8} parent=0 // pred_check
    _
  $region11: #{forward.8} parent=0 // pred_check_branch
    %23 = sbr.rel (0) target = $region13
  $region12: #{forward.8} parent=0 // pred_region
    _
  $region13: #{forward.8} parent=0 // pred_fallthru
    _
  // Predicated region
  $region14: #{forward.8} parent=0 // pred_check
    _
  $region15: #{forward.8} parent=0 // pred_check_branch
    %25 = sbr.rel (0) target = $region17
  $region16: #{forward.8} parent=0 // pred_region
    _
  $region17: #{forward.8} parent=0 // pred_fallthru
    _
  // Predicated region
  $region18: #{forward.8} parent=0 // pred_check
    _
  $region19: #{forward.8} parent=0 // pred_check_branch
    %27 = sbr.rel (0) target = $region21
  $region20: #{forward.8} parent=0 // pred_region
    _
  $region21: #{forward.8} parent=0 // pred_fallthru
    _
  // Predicated region
  $region22: #{forward.8} parent=0 // pred_check
    _
  $region23: #{forward.8} parent=0 // pred_check_branch
    %29 = sbr.rel (0) target = $region25
  $region24: #{forward.8} parent=0 // pred_region
    _
  $region25: #{forward.8} parent=0 // pred_fallthru
    _
  // Predicated region
  $region26: #{forward.8} parent=0 // pred_check
    _
  $region27: #{forward.8} parent=0 // pred_check_branch
    %31 = sbr.rel (0) target = $region29
  $region28: #{forward.8} parent=0 // pred_region
    _
  $region29: #{forward.8} parent=0 // pred_fallthru
    _
  // Predicated region
  $region30: #{forward.8} parent=0 // pred_check
    _
  $region31: #{forward.8} parent=0 // pred_check_branch
    %33 = sbr.rel (0) target = $region33
  $region32: #{forward.8} parent=0 // pred_region
    _
  $region33: #{forward.8} parent=0 // pred_fallthru
    _
  // Predicated region
  $region34: #{forward.8} parent=0 // pred_check
    _
  $region35: #{forward.8} parent=0 // pred_check_branch
    %35 = sbr.rel (0) target = $region37
  $region36: #{forward.8} parent=0 // pred_region
    _
  $region37: #{forward.8} parent=0 // pred_fallthru
    _
  // Predicated region
  $region38: #{forward.8} parent=0 // pred_check
    _
  $region39: #{forward.8} parent=0 // pred_check_branch
    %37 = sbr.rel (0) target = $region41
  $region40: #{forward.8} parent=0 // pred_region
    _
  $region41: #{forward.8} parent=0 // pred_fallthru
    _
  // Predicated region
  $region42: #{forward.8} parent=0 // pred_check
    _
  $region43: #{forward.8} parent=0 // pred_check_branch
    %39 = sbr.rel (0) target = $region45
  $region44: #{forward.8} parent=0 // pred_region
    _
  $region45: #{forward.8} parent=0 // pred_fallthru
    _
  // Predicated region
  $region46: #{forward.8} parent=0 // pred_check
    _
  $region47: #{forward.8} parent=0 // pred_check_branch
    %41 = sbr.rel (0) target = $region49
  $region48: #{forward.8} parent=0 // pred_region
    _
  $region49: #{forward.8} parent=0 // pred_fallthru
    _
  // Predicated region
  $region50: #{forward.8} parent=0 // pred_check
    _
  $region51: #{forward.8} parent=0 // pred_check_branch
    %43 = sbr.rel (0) target = $region53
  $region52: #{forward.8} parent=0 // pred_region
    _
  $region53: #{forward.8} parent=0 // pred_fallthru
    _
  %v45 = vld [vmem:[%s2] sm:$0xff]
  %v46 = vld [vmem:[%s2 + $0x8] sm:$0xff]
  %v47 = vld [vmem:[%s3] sm:$0xff]
  %v48 = vld [vmem:[%s3 + $0x8] sm:$0xff]
  %v49 = vld [vmem:[%s0] sm:$0xff]
  %v50 = vld [vmem:[%s0 + $0x8] sm:$0xff]
  %v51 = vld [vmem:[%s1 + $0x8] sm:$0xff]
  %v52 = vld [vmem:[%s1 + $0x10] sm:$0xff]
  %v53 = vld [vmem:[%s1 + $0x7] sm:$0xff]
  %v54 = vld [vmem:[%s1 + $0xf] sm:$0xff]
  %56 = vset.pattern.permute.xlu0 0
  %57 = vperm.xlu0 %56, %v45
  %v58 = vpop.permute.xlu0 %57
  %61 = vset.pattern.permute.xlu0 0
  %62 = vperm.xlu0 %61, %v46
  %v63 = vpop.permute.xlu0 %62
  %v65 = vmul.f32 %v53, %v58
  %v66 = vmul.f32 %v54, %v63
  %v67 = vpack.c.bf16 %v66, %v65
  %v68 = vld [vmem:[%s4] sm:$0xf]
  %v69 = vpack.c.bf16 %v50, %v49
  %s70 = scalar_lea.vmem %s4, 4
  %v71 = vld [vmem:[%s70] sm:$0xf]
  %vm72 = vcmask 64512
  %v74 = vsel %vm72, %v69, 0
  %vm76 = vcmask 1043456
  %v78 = vsel %vm76, %v71, 0
  %80 = vmatprep.subr.bf16.mxu0 0
  %81 = vmatpush1.bf16.msra.mxu0 %v78
  %82 = vmatprep.subr.bf16.mxu0 0
  %83 = vmatpush1.bf16.msra.mxu0 0
  %84 = vmatprep.subr.bf16.mxu0 0
  %85 = vmatpush1.bf16.msra.mxu0 0
  %86 = vmatprep.subr.bf16.mxu0 0
  %87 = vmatpush1.bf16.msra.mxu0 0
  %88 = vmatprep.subr.bf16.mxu0 0
  %89 = vmatpush1.bf16.msra.mxu0 0
  %90 = vmatprep.subr.bf16.mxu0 0
  %91 = vmatpush1.bf16.msra.mxu0 0
  %92 = vmatprep.subr.bf16.mxu0 0
  %93 = vmatpush1.bf16.msra.mxu0 0
  %94 = vmatprep.subr.bf16.mxu0 0
  %95 = vmatpush1.bf16.msra.mxu0 0
  %96 = vmatprep.subr.bf16.mxu0 0
  %97 = vmatpush1.bf16.msra.mxu0 0
  %98 = vmatprep.subr.bf16.mxu0 0
  %99 = vmatpush1.bf16.msra.mxu0 0
  %100 = vmatprep.subr.bf16.mxu0 0
  %101 = vmatpush1.bf16.msra.mxu0 0
  %102 = vmatprep.subr.bf16.mxu0 0
  %103 = vmatpush1.bf16.msra.mxu0 0
  %104 = vmatprep.subr.bf16.mxu0 0
  %105 = vmatpush1.bf16.msra.mxu0 0
  %106 = vmatprep.subr.bf16.mxu0 0
  %107 = vmatpush1.bf16.msra.mxu0 0
  %108 = vmatprep.subr.bf16.mxu0 0
  %109 = vmatpush1.bf16.msra.mxu0 0
  %110 = vmatprep.subr.bf16.mxu0 0
  %111 = vmatpush1.bf16.msra.mxu0 0
  %112 = vmatprep.mubr.bf16.mxu0 0
  %113 = vmatmul.mubr.bf16.gmra.mrb[0].mxu0 %v74
  %v114 = vpop.f32.mrb[0].mxu0
  %v115 = vadd.f32 0.0, %v114
  %v116 = vpop.f32.mrb[0].mxu0
  %v117 = vpop.f32.mrb[0].mxu0
  %v118 = vadd.f32 0.0, %v117
  %v119 = vpop.f32.mrb[0].mxu0
  %120 = vdwg.mxu0
  %v122 = vsel %vm72, %v67, 0
  %v125 = vsel %vm76, %v68, 0
  %127 = vmatprep.subr.bf16.mxu0 0
  %128 = vmatpush1.bf16.msra.mxu0 %v125
  %129 = vmatprep.subr.bf16.mxu0 0
  %130 = vmatpush1.bf16.msra.mxu0 0
  %131 = vmatprep.subr.bf16.mxu0 0
  %132 = vmatpush1.bf16.msra.mxu0 0
  %133 = vmatprep.subr.bf16.mxu0 0
  %134 = vmatpush1.bf16.msra.mxu0 0
  %135 = vmatprep.subr.bf16.mxu0 0
  %136 = vmatpush1.bf16.msra.mxu0 0
  %137 = vmatprep.subr.bf16.mxu0 0
  %138 = vmatpush1.bf16.msra.mxu0 0
  %139 = vmatprep.subr.bf16.mxu0 0
  %140 = vmatpush1.bf16.msra.mxu0 0
  %141 = vmatprep.subr.bf16.mxu0 0
  %142 = vmatpush1.bf16.msra.mxu0 0
  %143 = vmatprep.subr.bf16.mxu0 0
  %144 = vmatpush1.bf16.msra.mxu0 0
  %145 = vmatprep.subr.bf16.mxu0 0
  %146 = vmatpush1.bf16.msra.mxu0 0
  %147 = vmatprep.subr.bf16.mxu0 0
  %148 = vmatpush1.bf16.msra.mxu0 0
  %149 = vmatprep.subr.bf16.mxu0 0
  %150 = vmatpush1.bf16.msra.mxu0 0
  %151 = vmatprep.subr.bf16.mxu0 0
  %152 = vmatpush1.bf16.msra.mxu0 0
  %153 = vmatprep.subr.bf16.mxu0 0
  %154 = vmatpush1.bf16.msra.mxu0 0
  %155 = vmatprep.subr.bf16.mxu0 0
  %156 = vmatpush1.bf16.msra.mxu0 0
  %157 = vmatprep.subr.bf16.mxu0 0
  %158 = vmatpush1.bf16.msra.mxu0 0
  %159 = vmatprep.mubr.bf16.mxu0 0
  %160 = vmatmul.mubr.bf16.gmra.mrb[0].mxu0 %v122
  %v161 = vpop.f32.mrb[0].mxu0
  %v162 = vadd.f32 %v115, %v161
  %v163 = vpop.f32.mrb[0].mxu0
  %v164 = vpop.f32.mrb[0].mxu0
  %v165 = vadd.f32 %v118, %v164
  %v166 = vpop.f32.mrb[0].mxu0
  %167 = vdwg.mxu0
  %v168 = vpack.c.bf16 %v52, %v51
  %s169 = scalar_lea.vmem %s4, 8
  %v170 = vld [vmem:[%s169] sm:$0xf]
  %v172 = vsel %vm72, %v168, 0
  %v175 = vsel %vm76, %v170, 0
  %177 = vmatprep.subr.bf16.mxu0 0
  %178 = vmatpush1.bf16.msra.mxu0 %v175
  %179 = vmatprep.subr.bf16.mxu0 0
  %180 = vmatpush1.bf16.msra.mxu0 0
  %181 = vmatprep.subr.bf16.mxu0 0
  %182 = vmatpush1.bf16.msra.mxu0 0
  %183 = vmatprep.subr.bf16.mxu0 0
  %184 = vmatpush1.bf16.msra.mxu0 0
  %185 = vmatprep.subr.bf16.mxu0 0
  %186 = vmatpush1.bf16.msra.mxu0 0
  %187 = vmatprep.subr.bf16.mxu0 0
  %188 = vmatpush1.bf16.msra.mxu0 0
  %189 = vmatprep.subr.bf16.mxu0 0
  %190 = vmatpush1.bf16.msra.mxu0 0
  %191 = vmatprep.subr.bf16.mxu0 0
  %192 = vmatpush1.bf16.msra.mxu0 0
  %193 = vmatprep.subr.bf16.mxu0 0
  %194 = vmatpush1.bf16.msra.mxu0 0
  %195 = vmatprep.subr.bf16.mxu0 0
  %196 = vmatpush1.bf16.msra.mxu0 0
  %197 = vmatprep.subr.bf16.mxu0 0
  %198 = vmatpush1.bf16.msra.mxu0 0
  %199 = vmatprep.subr.bf16.mxu0 0
  %200 = vmatpush1.bf16.msra.mxu0 0
  %201 = vmatprep.subr.bf16.mxu0 0
  %202 = vmatpush1.bf16.msra.mxu0 0
  %203 = vmatprep.subr.bf16.mxu0 0
  %204 = vmatpush1.bf16.msra.mxu0 0
  %205 = vmatprep.subr.bf16.mxu0 0
  %206 = vmatpush1.bf16.msra.mxu0 0
  %207 = vmatprep.subr.bf16.mxu0 0
  %208 = vmatpush1.bf16.msra.mxu0 0
  %209 = vmatprep.mubr.bf16.mxu0 0
  %210 = vmatmul.mubr.bf16.gmra.mrb[0].mxu0 %v172
  %v211 = vpop.f32.mrb[0].mxu0
  %v212 = vadd.f32 0.0, %v211
  %v213 = vpop.f32.mrb[0].mxu0
  %v214 = vpop.f32.mrb[0].mxu0
  %v215 = vadd.f32 0.0, %v214
  %v216 = vpop.f32.mrb[0].mxu0
  %217 = vdwg.mxu0
  %v218 = vadd.f32 %v162, %v212
  %v219 = vadd.f32 %v165, %v215
  %v220 = vld [vmem:[%s5] sm:$0x1]
  %v221 = vld [vmem:[%s6] sm:$0x1]
  %vm222 = vcmask 130048
  %v223 = vsel %vm222, %v218, 0.0
  %v224 = vsel %vm222, %v219, 0.0
  %v225 = vadd.f32 %v223, %v224
  %v226 = vrot.slane %v225, 4
  %v227 = vadd.f32 %v225, %v226
  %v228 = vrot.slane %v227, 2
  %v229 = vadd.f32 %v227, %v228
  %v230 = vrot.slane %v229, 1
  %v231 = vadd.f32 %v229, %v230
  %v232 = vmul.f32 %v231, 0.0625
  %v233 = vmul.f32 %v218, %v218
  %v234 = vmul.f32 %v219, %v219
  %v235 = vsel %vm222, %v233, 0.0
  %v236 = vsel %vm222, %v234, 0.0
  %v237 = vadd.f32 %v235, %v236
  %v238 = vrot.slane %v237, 4
  %v239 = vadd.f32 %v237, %v238
  %v240 = vrot.slane %v239, 2
  %v241 = vadd.f32 %v239, %v240
  %v242 = vrot.slane %v241, 1
  %v243 = vadd.f32 %v241, %v242
  %v244 = vmul.f32 %v243, 0.0625
  %v245 = vmul.f32 %v232, %v232
  %v246 = vsub.f32 %v244, %v245
  %v247 = vadd.f32 %v246, 1e-05
  %v248 = vrsqrt.pop %v247
  %v249 = vmul.f32 %v248, %v220
  %v250 = vmul.f32 %v232, %v249
  %v251 = vsub.f32 %v221, %v250
  %v252 = vlaneseq
  %v253 = vshrl.u32 %v252, 7
  %v254 = vsub.s32 0, %v253
  %v255 = vrot.slane %v249, %v254
  %v256 = vmul.f32 %v218, %v255
  %v257 = vmul.f32 %v219, %v255
  %v259 = vlaneseq
  %v260 = vshrl.u32 %v259, 7
  %v261 = vsub.s32 0, %v260
  %v262 = vrot.slane %v251, %v261
  %v264 = vadd.f32 %v256, %v262
  %v265 = vadd.f32 %v257, %v262
  %v266 = vmax.f32 %v264, 0.0
  %v267 = vmax.f32 %v265, 0.0
  %268 = vst.msk [vmem:[#allocation2] sm:$0xff] %vm222, 0.0
  %269 = vst.msk [vmem:[#allocation2 + $0x18] sm:$0xff] %vm222, 0.0
  %270 = vst.msk [vmem:[#allocation2 + $0x8] sm:$0xff] %vm222, %v266
  %271 = vst.msk [vmem:[#allocation2 + $0x10] sm:$0xff] %vm222, %v267
  %v272 = vld [vmem:[#allocation2 + $0x7] sm:$0xff]
  %v273 = vld [vmem:[#allocation2 + $0xf] sm:$0xff]
  %v274 = vmul.f32 %v272, %v58
  %v275 = vmul.f32 %v273, %v63
  %v276 = vld [vmem:[#allocation2 + $0x9] sm:$0xff]
  %v277 = vld [vmem:[#allocation2 + $0x11] sm:$0xff]
  %279 = vset.pattern.permute.xlu0 0
  %280 = vperm.xlu0 %279, %v47
  %v281 = vpop.permute.xlu0 %280
  %284 = vset.pattern.permute.xlu0 0
  %285 = vperm.xlu0 %284, %v48
  %v286 = vpop.permute.xlu0 %285
  %v288 = vmul.f32 %v276, %v281
  %v289 = vmul.f32 %v277, %v286
  %v290 = vpack.c.bf16 %v275, %v274
  %v291 = vld [vmem:[%s7] sm:$0xf]
  %v292 = vld [vmem:[%s7 + $0x4] sm:$0xf]
  %v293 = vpack.c.bf16 %v267, %v266
  %s294 = scalar_lea.vmem %s7, 8
  %v295 = vld [vmem:[%s294] sm:$0xf]
  %v296 = vld [vmem:[%s294 + $0x4] sm:$0xf]
  %v299 = vunpack.c.l.b16 %v295
  %v300 = vunpack.c.l.b16 %v296
  %v301 = vpack.c.b16 %v300, %v299
  %v304 = vsel %vm222, %v293, 0
  %306 = vmatprep.subr.bf16.mxu0 0
  %307 = vmatpush1.bf16.msra.mxu0 %v301
  %308 = vmatprep.subr.bf16.mxu0 0
  %309 = vmatpush1.bf16.msra.mxu0 0
  %310 = vmatprep.subr.bf16.mxu0 0
  %311 = vmatpush1.bf16.msra.mxu0 0
  %312 = vmatprep.subr.bf16.mxu0 0
  %313 = vmatpush1.bf16.msra.mxu0 0
  %314 = vmatprep.subr.bf16.mxu0 0
  %315 = vmatpush1.bf16.msra.mxu0 0
  %316 = vmatprep.subr.bf16.mxu0 0
  %317 = vmatpush1.bf16.msra.mxu0 0
  %318 = vmatprep.subr.bf16.mxu0 0
  %319 = vmatpush1.bf16.msra.mxu0 0
  %320 = vmatprep.subr.bf16.mxu0 0
  %321 = vmatpush1.bf16.msra.mxu0 0
  %322 = vmatprep.subr.bf16.mxu0 0
  %323 = vmatpush1.bf16.msra.mxu0 0
  %324 = vmatprep.subr.bf16.mxu0 0
  %325 = vmatpush1.bf16.msra.mxu0 0
  %326 = vmatprep.subr.bf16.mxu0 0
  %327 = vmatpush1.bf16.msra.mxu0 0
  %328 = vmatprep.subr.bf16.mxu0 0
  %329 = vmatpush1.bf16.msra.mxu0 0
  %330 = vmatprep.subr.bf16.mxu0 0
  %331 = vmatpush1.bf16.msra.mxu0 0
  %332 = vmatprep.subr.bf16.mxu0 0
  %333 = vmatpush1.bf16.msra.mxu0 0
  %334 = vmatprep.subr.bf16.mxu0 0
  %335 = vmatpush1.bf16.msra.mxu0 0
  %336 = vmatprep.subr.bf16.mxu0 0
  %337 = vmatpush1.bf16.msra.mxu0 0
  %338 = vmatprep.mubr.bf16.mxu0 0
  %339 = vmatmul.mubr.bf16.gmra.mrb[0].mxu0 %v304
  %v340 = vpop.f32.mrb[0].mxu0
  %v341 = vadd.f32 0.0, %v340
  %v342 = vpop.f32.mrb[0].mxu0
  %v343 = vpop.f32.mrb[0].mxu0
  %v344 = vadd.f32 0.0, %v343
  %v345 = vpop.f32.mrb[0].mxu0
  %346 = vdwg.mxu0
  %v349 = vunpack.c.l.b16 %v291
  %v350 = vunpack.c.l.b16 %v292
  %v351 = vpack.c.b16 %v350, %v349
  %v354 = vsel %vm222, %v290, 0
  %356 = vmatprep.subr.bf16.mxu0 0
  %357 = vmatpush1.bf16.msra.mxu0 %v351
  %358 = vmatprep.subr.bf16.mxu0 0
  %359 = vmatpush1.bf16.msra.mxu0 0
  %360 = vmatprep.subr.bf16.mxu0 0
  %361 = vmatpush1.bf16.msra.mxu0 0
  %362 = vmatprep.subr.bf16.mxu0 0
  %363 = vmatpush1.bf16.msra.mxu0 0
  %364 = vmatprep.subr.bf16.mxu0 0
  %365 = vmatpush1.bf16.msra.mxu0 0
  %366 = vmatprep.subr.bf16.mxu0 0
  %367 = vmatpush1.bf16.msra.mxu0 0
  %368 = vmatprep.subr.bf16.mxu0 0
  %369 = vmatpush1.bf16.msra.mxu0 0
  %370 = vmatprep.subr.bf16.mxu0 0
  %371 = vmatpush1.bf16.msra.mxu0 0
  %372 = vmatprep.subr.bf16.mxu0 0
  %373 = vmatpush1.bf16.msra.mxu0 0
  %374 = vmatprep.subr.bf16.mxu0 0
  %375 = vmatpush1.bf16.msra.mxu0 0
  %376 = vmatprep.subr.bf16.mxu0 0
  %377 = vmatpush1.bf16.msra.mxu0 0
  %378 = vmatprep.subr.bf16.mxu0 0
  %379 = vmatpush1.bf16.msra.mxu0 0
  %380 = vmatprep.subr.bf16.mxu0 0
  %381 = vmatpush1.bf16.msra.mxu0 0
  %382 = vmatprep.subr.bf16.mxu0 0
  %383 = vmatpush1.bf16.msra.mxu0 0
  %384 = vmatprep.subr.bf16.mxu0 0
  %385 = vmatpush1.bf16.msra.mxu0 0
  %386 = vmatprep.subr.bf16.mxu0 0
  %387 = vmatpush1.bf16.msra.mxu0 0
  %388 = vmatprep.mubr.bf16.mxu0 0
  %389 = vmatmul.mubr.bf16.gmra.mrb[0].mxu0 %v354
  %v390 = vpop.f32.mrb[0].mxu0
  %v391 = vadd.f32 %v341, %v390
  %v392 = vpop.f32.mrb[0].mxu0
  %v393 = vpop.f32.mrb[0].mxu0
  %v394 = vadd.f32 %v344, %v393
  %v395 = vpop.f32.mrb[0].mxu0
  %396 = vdwg.mxu0
  %v397 = vpack.c.bf16 %v289, %v288
  %s398 = scalar_lea.vmem %s7, 16
  %v399 = vld [vmem:[%s398] sm:$0xf]
  %v400 = vld [vmem:[%s398 + $0x4] sm:$0xf]
  %v403 = vunpack.c.l.b16 %v399
  %v404 = vunpack.c.l.b16 %v400
  %v405 = vpack.c.b16 %v404, %v403
  %v408 = vsel %vm222, %v397, 0
  %410 = vmatprep.subr.bf16.mxu0 0
  %411 = vmatpush1.bf16.msra.mxu0 %v405
  %412 = vmatprep.subr.bf16.mxu0 0
  %413 = vmatpush1.bf16.msra.mxu0 0
  %414 = vmatprep.subr.bf16.mxu0 0
  %415 = vmatpush1.bf16.msra.mxu0 0
  %416 = vmatprep.subr.bf16.mxu0 0
  %417 = vmatpush1.bf16.msra.mxu0 0
  %418 = vmatprep.subr.bf16.mxu0 0
  %419 = vmatpush1.bf16.msra.mxu0 0
  %420 = vmatprep.subr.bf16.mxu0 0
  %421 = vmatpush1.bf16.msra.mxu0 0
  %422 = vmatprep.subr.bf16.mxu0 0
  %423 = vmatpush1.bf16.msra.mxu0 0
  %424 = vmatprep.subr.bf16.mxu0 0
  %425 = vmatpush1.bf16.msra.mxu0 0
  %426 = vmatprep.subr.bf16.mxu0 0
  %427 = vmatpush1.bf16.msra.mxu0 0
  %428 = vmatprep.subr.bf16.mxu0 0
  %429 = vmatpush1.bf16.msra.mxu0 0
  %430 = vmatprep.subr.bf16.mxu0 0
  %431 = vmatpush1.bf16.msra.mxu0 0
  %432 = vmatprep.subr.bf16.mxu0 0
  %433 = vmatpush1.bf16.msra.mxu0 0
  %434 = vmatprep.subr.bf16.mxu0 0
  %435 = vmatpush1.bf16.msra.mxu0 0
  %436 = vmatprep.subr.bf16.mxu0 0
  %437 = vmatpush1.bf16.msra.mxu0 0
  %438 = vmatprep.subr.bf16.mxu0 0
  %439 = vmatpush1.bf16.msra.mxu0 0
  %440 = vmatprep.subr.bf16.mxu0 0
  %441 = vmatpush1.bf16.msra.mxu0 0
  %442 = vmatprep.mubr.bf16.mxu0 0
  %443 = vmatmul.mubr.bf16.gmra.mrb[0].mxu0 %v408
  %v444 = vpop.f32.mrb[0].mxu0
  %v445 = vadd.f32 0.0, %v444
  %v446 = vpop.f32.mrb[0].mxu0
  %v447 = vpop.f32.mrb[0].mxu0
  %v448 = vadd.f32 0.0, %v447
  %v449 = vpop.f32.mrb[0].mxu0
  %450 = vdwg.mxu0
  %v451 = vadd.f32 %v391, %v445
  %v452 = vadd.f32 %v394, %v448
  %v453 = vld [vmem:[%s8] sm:$0x1]
  %v454 = vld [vmem:[%s9] sm:$0x1]
  %v455 = vsel %vm222, %v451, 0.0
  %v456 = vsel %vm222, %v452, 0.0
  %v457 = vadd.f32 %v455, %v456
  %v458 = vrot.slane %v457, 4
  %v459 = vadd.f32 %v457, %v458
  %v460 = vrot.slane %v459, 2
  %v461 = vadd.f32 %v459, %v460
  %v462 = vrot.slane %v461, 1
  %v463 = vadd.f32 %v461, %v462
  %v464 = vmul.f32 %v463, 0.0625
  %v465 = vmul.f32 %v451, %v451
  %v466 = vmul.f32 %v452, %v452
  %v467 = vsel %vm222, %v465, 0.0
  %v468 = vsel %vm222, %v466, 0.0
  %v469 = vadd.f32 %v467, %v468
  %v470 = vrot.slane %v469, 4
  %v471 = vadd.f32 %v469, %v470
  %v472 = vrot.slane %v471, 2
  %v473 = vadd.f32 %v471, %v472
  %v474 = vrot.slane %v473, 1
  %v475 = vadd.f32 %v473, %v474
  %v476 = vmul.f32 %v475, 0.0625
  %v477 = vmul.f32 %v464, %v464
  %v478 = vsub.f32 %v476, %v477
  %v479 = vadd.f32 %v478, 1e-05
  %v480 = vrsqrt.pop %v479
  %v481 = vmul.f32 %v480, %v453
  %v482 = vmul.f32 %v464, %v481
  %v483 = vsub.f32 %v454, %v482
  %v484 = vld [vmem:[%s10] sm:$0xf]
  %v486 = vsel %vm76, %v484, 0
  %488 = vmatprep.subr.bf16.mxu0 0
  %489 = vmatpush1.bf16.msra.mxu0 %v486
  %490 = vmatprep.subr.bf16.mxu0 0
  %491 = vmatpush1.bf16.msra.mxu0 0
  %492 = vmatprep.subr.bf16.mxu0 0
  %493 = vmatpush1.bf16.msra.mxu0 0
  %494 = vmatprep.subr.bf16.mxu0 0
  %495 = vmatpush1.bf16.msra.mxu0 0
  %496 = vmatprep.subr.bf16.mxu0 0
  %497 = vmatpush1.bf16.msra.mxu0 0
  %498 = vmatprep.subr.bf16.mxu0 0
  %499 = vmatpush1.bf16.msra.mxu0 0
  %500 = vmatprep.subr.bf16.mxu0 0
  %501 = vmatpush1.bf16.msra.mxu0 0
  %502 = vmatprep.subr.bf16.mxu0 0
  %503 = vmatpush1.bf16.msra.mxu0 0
  %504 = vmatprep.subr.bf16.mxu0 0
  %505 = vmatpush1.bf16.msra.mxu0 0
  %506 = vmatprep.subr.bf16.mxu0 0
  %507 = vmatpush1.bf16.msra.mxu0 0
  %508 = vmatprep.subr.bf16.mxu0 0
  %509 = vmatpush1.bf16.msra.mxu0 0
  %510 = vmatprep.subr.bf16.mxu0 0
  %511 = vmatpush1.bf16.msra.mxu0 0
  %512 = vmatprep.subr.bf16.mxu0 0
  %513 = vmatpush1.bf16.msra.mxu0 0
  %514 = vmatprep.subr.bf16.mxu0 0
  %515 = vmatpush1.bf16.msra.mxu0 0
  %516 = vmatprep.subr.bf16.mxu0 0
  %517 = vmatpush1.bf16.msra.mxu0 0
  %518 = vmatprep.subr.bf16.mxu0 0
  %519 = vmatpush1.bf16.msra.mxu0 0
  %520 = vmatprep.mubr.bf16.mxu0 0
  %521 = vmatmul.mubr.bf16.gmra.mrb[0].mxu0 %v74
  %v522 = vpop.f32.mrb[0].mxu0
  %v523 = vadd.f32 0.0, %v522
  %v524 = vpop.f32.mrb[0].mxu0
  %v525 = vpop.f32.mrb[0].mxu0
  %v526 = vadd.f32 0.0, %v525
  %v527 = vpop.f32.mrb[0].mxu0
  %528 = vdwg.mxu0
  %v529 = vld [vmem:[%s11] sm:$0x1]
  %v530 = vld [vmem:[%s12] sm:$0x1]
  %v531 = vsel %vm222, %v523, 0.0
  %v532 = vsel %vm222, %v526, 0.0
  %v533 = vadd.f32 %v531, %v532
  %v534 = vrot.slane %v533, 4
  %v535 = vadd.f32 %v533, %v534
  %v536 = vrot.slane %v535, 2
  %v537 = vadd.f32 %v535, %v536
  %v538 = vrot.slane %v537, 1
  %v539 = vadd.f32 %v537, %v538
  %v540 = vmul.f32 %v539, 0.0625
  %v541 = vmul.f32 %v523, %v523
  %v542 = vmul.f32 %v526, %v526
  %v543 = vsel %vm222, %v541, 0.0
  %v544 = vsel %vm222, %v542, 0.0
  %v545 = vadd.f32 %v543, %v544
  %v546 = vrot.slane %v545, 4
  %v547 = vadd.f32 %v545, %v546
  %v548 = vrot.slane %v547, 2
  %v549 = vadd.f32 %v547, %v548
  %v550 = vrot.slane %v549, 1
  %v551 = vadd.f32 %v549, %v550
  %v552 = vmul.f32 %v551, 0.0625
  %v553 = vmul.f32 %v540, %v540
  %v554 = vsub.f32 %v552, %v553
  %v555 = vadd.f32 %v554, 1e-05
  %v556 = vrsqrt.pop %v555
  %v557 = vmul.f32 %v556, %v529
  %v558 = vmul.f32 %v540, %v557
  %v559 = vsub.f32 %v530, %v558
  %v560 = vlaneseq
  %v561 = vshrl.u32 %v560, 7
  %v562 = vsub.s32 0, %v561
  %v563 = vrot.slane %v481, %v562
  %v564 = vmul.f32 %v451, %v563
  %v565 = vmul.f32 %v452, %v563
  %v567 = vlaneseq
  %v568 = vshrl.u32 %v567, 7
  %v569 = vsub.s32 0, %v568
  %v570 = vrot.slane %v483, %v569
  %v572 = vadd.f32 %v564, %v570
  %v573 = vadd.f32 %v565, %v570
  %v574 = vlaneseq
  %v575 = vshrl.u32 %v574, 7
  %v576 = vsub.s32 0, %v575
  %v577 = vrot.slane %v557, %v576
  %v578 = vmul.f32 %v523, %v577
  %v579 = vmul.f32 %v526, %v577
  %v581 = vlaneseq
  %v582 = vshrl.u32 %v581, 7
  %v583 = vsub.s32 0, %v582
  %v584 = vrot.slane %v559, %v583
  %v586 = vadd.f32 %v578, %v584
  %v587 = vadd.f32 %v579, %v584
  %v588 = vadd.f32 %v572, %v586
  %v589 = vadd.f32 %v573, %v587
  %v590 = vmax.f32 %v588, 0.0
  %v591 = vmax.f32 %v589, 0.0
  %592 = vst.msk [vmem:[%s13] sm:$0xff] %vm222, %v590
  %593 = vst.msk [vmem:[%s13 + $0x8] sm:$0xff] %vm222, %v591
  // Predicated region
  $region54: #{forward.8} parent=0 // pred_check
    _
  $region55: #{forward.8} parent=0 // pred_check_branch
    %595 = sbr.rel (0) target = $region57
  $region56: #{forward.8} parent=0 // pred_region
    _
  $region57: #{forward.8} parent=0 // pred_fallthru
    _
  // Predicated region
  $region58: #{forward.8} parent=0 // pred_check
    _
  $region59: #{forward.8} parent=0 // pred_check_branch
    %597 = sbr.rel (0) target = $region61
  $region60: #{forward.8} parent=0 // pred_region
    _
  $region61: #{forward.8} parent=0 // pred_fallthru
    _

// kernel: forward.6
$region0: #{forward.6}
  #allocation0 [shape = 'u32[]', space=smem, size = 0x4, offset = 0x4, fixed_abs, tag = 'smem constant byte address 0x4 - core index']
  #allocation1 [shape = 'u32[144,128]{1,0:T(1,128)}', space=vmem, size = 0x12000, scoped, tag = 'internal scratch']
  #allocation2 [shape = 'f32[80,8]{1,0:T(8,128)}', space=vmem, size = 0xa000, scoped, tag = 'scratch operand']
  %s0 = inlined_call_operand.vmem [shape: f32[80,4], index: 0, kind: input, shape index: {}]
  %s1 = inlined_call_operand.vmem [shape: f32[64,1], index: 1, kind: input, shape index: {}]
  %s2 = inlined_call_operand.vmem [shape: f32[64,1], index: 2, kind: input, shape index: {}]
  %s3 = inlined_call_operand.vmem [shape: bf16[3,4,8], index: 3, kind: input, shape index: {}]
  %s4 = inlined_call_operand.vmem [shape: f32[1,8], index: 4, kind: input, shape index: {}]
  %s5 = inlined_call_operand.vmem [shape: f32[1,8], index: 5, kind: input, shape index: {}]
  %s6 = inlined_call_operand.vmem [shape: f32[64,8], index: 6, kind: output, shape index: {}]
  %s7 = sld [smem:[#allocation0]]
  $region34: #{forward.6} parent=0
    _
  %s9 = ssub.s32 1, %s7
  %s10 = scalar_select 0, %s9, %s7
  // Predicated region
  $region2: #{forward.6} parent=0 // pred_check
    _
  $region3: #{forward.6} parent=0 // pred_check_branch
    %12 = sbr.rel (0) target = $region5
  $region4: #{forward.6} parent=0 // pred_region
    _
  $region5: #{forward.6} parent=0 // pred_fallthru
    _
  // Predicated region
  $region6: #{forward.6} parent=0 // pred_check
    _
  $region7: #{forward.6} parent=0 // pred_check_branch
    %14 = sbr.rel (0) target = $region9
  $region8: #{forward.6} parent=0 // pred_region
    _
  $region9: #{forward.6} parent=0 // pred_fallthru
    _
  // Predicated region
  $region10: #{forward.6} parent=0 // pred_check
    _
  $region11: #{forward.6} parent=0 // pred_check_branch
    %16 = sbr.rel (0) target = $region13
  $region12: #{forward.6} parent=0 // pred_region
    _
  $region13: #{forward.6} parent=0 // pred_fallthru
    _
  // Predicated region
  $region14: #{forward.6} parent=0 // pred_check
    _
  $region15: #{forward.6} parent=0 // pred_check_branch
    %18 = sbr.rel (0) target = $region17
  $region16: #{forward.6} parent=0 // pred_region
    _
  $region17: #{forward.6} parent=0 // pred_fallthru
    _
  // Predicated region
  $region18: #{forward.6} parent=0 // pred_check
    _
  $region19: #{forward.6} parent=0 // pred_check_branch
    %20 = sbr.rel (0) target = $region21
  $region20: #{forward.6} parent=0 // pred_region
    _
  $region21: #{forward.6} parent=0 // pred_fallthru
    _
  // Predicated region
  $region22: #{forward.6} parent=0 // pred_check
    _
  $region23: #{forward.6} parent=0 // pred_check_branch
    %22 = sbr.rel (0) target = $region25
  $region24: #{forward.6} parent=0 // pred_region
    _
  $region25: #{forward.6} parent=0 // pred_fallthru
    _
  %v24 = vld [vmem:[%s1] sm:$0xff]
  %v25 = vld [vmem:[%s1 + $0x8] sm:$0xff]
  %v26 = vld [vmem:[%s1 + $0x10] sm:$0xff]
  %v27 = vld [vmem:[%s1 + $0x18] sm:$0xff]
  %v28 = vld [vmem:[%s1 + $0x20] sm:$0xff]
  %v29 = vld [vmem:[%s1 + $0x28] sm:$0xff]
  %v30 = vld [vmem:[%s1 + $0x30] sm:$0xff]
  %v31 = vld [vmem:[%s1 + $0x38] sm:$0xff]
  %v32 = vld [vmem:[%s2] sm:$0xff]
  %v33 = vld [vmem:[%s2 + $0x8] sm:$0xff]
  %v34 = vld [vmem:[%s2 + $0x10] sm:$0xff]
  %v35 = vld [vmem:[%s2 + $0x18] sm:$0xff]
  %v36 = vld [vmem:[%s2 + $0x20] sm:$0xff]
  %v37 = vld [vmem:[%s2 + $0x28] sm:$0xff]
  %v38 = vld [vmem:[%s2 + $0x30] sm:$0xff]
  %v39 = vld [vmem:[%s2 + $0x38] sm:$0xff]
  %v40 = vld [vmem:[%s0 + $0x8] sm:$0xff]
  %v41 = vld [vmem:[%s0 + $0x10] sm:$0xff]
  %v42 = vld [vmem:[%s0 + $0x18] sm:$0xff]
  %v43 = vld [vmem:[%s0 + $0x20] sm:$0xff]
  %v44 = vld [vmem:[%s0 + $0x28] sm:$0xff]
  %v45 = vld [vmem:[%s0 + $0x30] sm:$0xff]
  %v46 = vld [vmem:[%s0 + $0x38] sm:$0xff]
  %v47 = vld [vmem:[%s0 + $0x40] sm:$0xff]
  %v48 = vld [vmem:[%s0 + $0x7] sm:$0xff]
  %v49 = vld [vmem:[%s0 + $0xf] sm:$0xff]
  %v50 = vld [vmem:[%s0 + $0x17] sm:$0xff]
  %v51 = vld [vmem:[%s0 + $0x1f] sm:$0xff]
  %v52 = vld [vmem:[%s0 + $0x27] sm:$0xff]
  %v53 = vld [vmem:[%s0 + $0x2f] sm:$0xff]
  %v54 = vld [vmem:[%s0 + $0x37] sm:$0xff]
  %v55 = vld [vmem:[%s0 + $0x3f] sm:$0xff]
  %57 = vset.pattern.permute.xlu0 0
  %58 = vperm.xlu0 %57, %v24
  %v59 = vpop.permute.xlu0 %58
  %62 = vset.pattern.permute.xlu0 0
  %63 = vperm.xlu0 %62, %v25
  %v64 = vpop.permute.xlu0 %63
  %67 = vset.pattern.permute.xlu0 0
  %68 = vperm.xlu0 %67, %v26
  %v69 = vpop.permute.xlu0 %68
  %72 = vset.pattern.permute.xlu0 0
  %73 = vperm.xlu0 %72, %v27
  %v74 = vpop.permute.xlu0 %73
  %77 = vset.pattern.permute.xlu0 0
  %78 = vperm.xlu0 %77, %v28
  %v79 = vpop.permute.xlu0 %78
  %82 = vset.pattern.permute.xlu0 0
  %83 = vperm.xlu0 %82, %v29
  %v84 = vpop.permute.xlu0 %83
  %87 = vset.pattern.permute.xlu0 0
  %88 = vperm.xlu0 %87, %v30
  %v89 = vpop.permute.xlu0 %88
  %92 = vset.pattern.permute.xlu0 0
  %93 = vperm.xlu0 %92, %v31
  %v94 = vpop.permute.xlu0 %93
  %v96 = vmul.f32 %v48, %v59
  %v97 = vmul.f32 %v49, %v64
  %v98 = vmul.f32 %v50, %v69
  %v99 = vmul.f32 %v51, %v74
  %v100 = vmul.f32 %v52, %v79
  %v101 = vmul.f32 %v53, %v84
  %v102 = vmul.f32 %v54, %v89
  %v103 = vmul.f32 %v55, %v94
  %v104 = vld [vmem:[%s0 + $0x9] sm:$0xff]
  %v105 = vld [vmem:[%s0 + $0x11] sm:$0xff]
  %v106 = vld [vmem:[%s0 + $0x19] sm:$0xff]
  %v107 = vld [vmem:[%s0 + $0x21] sm:$0xff]
  %v108 = vld [vmem:[%s0 + $0x29] sm:$0xff]
  %v109 = vld [vmem:[%s0 + $0x31] sm:$0xff]
  %v110 = vld [vmem:[%s0 + $0x39] sm:$0xff]
  %v111 = vld [vmem:[%s0 + $0x41] sm:$0xff]
  %113 = vset.pattern.permute.xlu0 0
  %114 = vperm.xlu0 %113, %v32
  %v115 = vpop.permute.xlu0 %114
  %118 = vset.pattern.permute.xlu0 0
  %119 = vperm.xlu0 %118, %v33
  %v120 = vpop.permute.xlu0 %119
  %123 = vset.pattern.permute.xlu0 0
  %124 = vperm.xlu0 %123, %v34
  %v125 = vpop.permute.xlu0 %124
  %128 = vset.pattern.permute.xlu0 0
  %129 = vperm.xlu0 %128, %v35
  %v130 = vpop.permute.xlu0 %129
  %133 = vset.pattern.permute.xlu0 0
  %134 = vperm.xlu0 %133, %v36
  %v135 = vpop.permute.xlu0 %134
  %138 = vset.pattern.permute.xlu0 0
  %139 = vperm.xlu0 %138, %v37
  %v140 = vpop.permute.xlu0 %139
  %143 = vset.pattern.permute.xlu0 0
  %144 = vperm.xlu0 %143, %v38
  %v145 = vpop.permute.xlu0 %144
  %148 = vset.pattern.permute.xlu0 0
  %149 = vperm.xlu0 %148, %v39
  %v150 = vpop.permute.xlu0 %149
  %v152 = vmul.f32 %v104, %v115
  %v153 = vmul.f32 %v105, %v120
  %v154 = vmul.f32 %v106, %v125
  %v155 = vmul.f32 %v107, %v130
  %v156 = vmul.f32 %v108, %v135
  %v157 = vmul.f32 %v109, %v140
  %v158 = vmul.f32 %v110, %v145
  %v159 = vmul.f32 %v111, %v150
  %v160 = vpack.c.bf16 %v97, %v96
  %v161 = vpack.c.bf16 %v99, %v98
  %v162 = vpack.c.bf16 %v101, %v100
  %v163 = vpack.c.bf16 %v103, %v102
  %v164 = vld [vmem:[%s3] sm:$0x3]
  %v165 = vpack.c.bf16 %v41, %v40
  %v166 = vpack.c.bf16 %v43, %v42
  %v167 = vpack.c.bf16 %v45, %v44
  %v168 = vpack.c.bf16 %v47, %v46
  %s169 = scalar_lea.vmem %s3, 2
  %v170 = vld [vmem:[%s169] sm:$0x3]
  %vm171 = vcmask 31744
  %v173 = vsel %vm171, %v165, 0
  %v176 = vsel %vm171, %v166, 0
  %v179 = vsel %vm171, %v167, 0
  %v182 = vsel %vm171, %v168, 0
  %vm184 = vcmask 1041408
  %v186 = vsel %vm184, %v170, 0
  %188 = vmatprep.subr.bf16.mxu0 0
  %189 = vmatpush1.bf16.msra.mxu0 %v186
  %190 = vmatprep.subr.bf16.mxu0 0
  %191 = vmatpush1.bf16.msra.mxu0 0
  %192 = vmatprep.subr.bf16.mxu0 0
  %193 = vmatpush1.bf16.msra.mxu0 0
  %194 = vmatprep.subr.bf16.mxu0 0
  %195 = vmatpush1.bf16.msra.mxu0 0
  %196 = vmatprep.subr.bf16.mxu0 0
  %197 = vmatpush1.bf16.msra.mxu0 0
  %198 = vmatprep.subr.bf16.mxu0 0
  %199 = vmatpush1.bf16.msra.mxu0 0
  %200 = vmatprep.subr.bf16.mxu0 0
  %201 = vmatpush1.bf16.msra.mxu0 0
  %202 = vmatprep.subr.bf16.mxu0 0
  %203 = vmatpush1.bf16.msra.mxu0 0
  %204 = vmatprep.subr.bf16.mxu0 0
  %205 = vmatpush1.bf16.msra.mxu0 0
  %206 = vmatprep.subr.bf16.mxu0 0
  %207 = vmatpush1.bf16.msra.mxu0 0
  %208 = vmatprep.subr.bf16.mxu0 0
  %209 = vmatpush1.bf16.msra.mxu0 0
  %210 = vmatprep.subr.bf16.mxu0 0
  %211 = vmatpush1.bf16.msra.mxu0 0
  %212 = vmatprep.subr.bf16.mxu0 0
  %213 = vmatpush1.bf16.msra.mxu0 0
  %214 = vmatprep.subr.bf16.mxu0 0
  %215 = vmatpush1.bf16.msra.mxu0 0
  %216 = vmatprep.subr.bf16.mxu0 0
  %217 = vmatpush1.bf16.msra.mxu0 0
  %218 = vmatprep.subr.bf16.mxu0 0
  %219 = vmatpush1.bf16.msra.mxu0 0
  %220 = vmatprep.mubr.bf16.mxu0 0
  %221 = vmatmul.mubr.bf16.gmra.mrb[0].mxu0 %v173
  %v222 = vpop.f32.mrb[0].mxu0
  %v223 = vadd.f32 0.0, %v222
  %v224 = vpop.f32.mrb[0].mxu0
  %v225 = vpop.f32.mrb[0].mxu0
  %v226 = vadd.f32 0.0, %v225
  %v227 = vpop.f32.mrb[0].mxu0
  %228 = vmatprep.mubr.bf16.mxu0 0
  %229 = vmatmul.mubr.bf16.gmra.mrb[0].mxu0 %v176
  %v230 = vpop.f32.mrb[0].mxu0
  %v231 = vadd.f32 0.0, %v230
  %v232 = vpop.f32.mrb[0].mxu0
  %v233 = vpop.f32.mrb[0].mxu0
  %v234 = vadd.f32 0.0, %v233
  %v235 = vpop.f32.mrb[0].mxu0
  %236 = vmatprep.mubr.bf16.mxu0 0
  %237 = vmatmul.mubr.bf16.gmra.mrb[0].mxu0 %v179
  %v238 = vpop.f32.mrb[0].mxu0
  %v239 = vadd.f32 0.0, %v238
  %v240 = vpop.f32.mrb[0].mxu0
  %v241 = vpop.f32.mrb[0].mxu0
  %v242 = vadd.f32 0.0, %v241
  %v243 = vpop.f32.mrb[0].mxu0
  %244 = vmatprep.mubr.bf16.mxu0 0
  %245 = vmatmul.mubr.bf16.gmra.mrb[0].mxu0 %v182
  %v246 = vpop.f32.mrb[0].mxu0
  %v247 = vadd.f32 0.0, %v246
  %v248 = vpop.f32.mrb[0].mxu0
  %v249 = vpop.f32.mrb[0].mxu0
  %v250 = vadd.f32 0.0, %v249
  %v251 = vpop.f32.mrb[0].mxu0
  %252 = vdwg.mxu0
  %v254 = vsel %vm171, %v160, 0
  %v257 = vsel %vm171, %v161, 0
  %v260 = vsel %vm171, %v162, 0
  %v263 = vsel %vm171, %v163, 0
  %v266 = vsel %vm184, %v164, 0
  %268 = vmatprep.subr.bf16.mxu0 0
  %269 = vmatpush1.bf16.msra.mxu0 %v266
  %270 = vmatprep.subr.bf16.mxu0 0
  %271 = vmatpush1.bf16.msra.mxu0 0
  %272 = vmatprep.subr.bf16.mxu0 0
  %273 = vmatpush1.bf16.msra.mxu0 0
  %274 = vmatprep.subr.bf16.mxu0 0
  %275 = vmatpush1.bf16.msra.mxu0 0
  %276 = vmatprep.subr.bf16.mxu0 0
  %277 = vmatpush1.bf16.msra.mxu0 0
  %278 = vmatprep.subr.bf16.mxu0 0
  %279 = vmatpush1.bf16.msra.mxu0 0
  %280 = vmatprep.subr.bf16.mxu0 0
  %281 = vmatpush1.bf16.msra.mxu0 0
  %282 = vmatprep.subr.bf16.mxu0 0
  %283 = vmatpush1.bf16.msra.mxu0 0
  %284 = vmatprep.subr.bf16.mxu0 0
  %285 = vmatpush1.bf16.msra.mxu0 0
  %286 = vmatprep.subr.bf16.mxu0 0
  %287 = vmatpush1.bf16.msra.mxu0 0
  %288 = vmatprep.subr.bf16.mxu0 0
  %289 = vmatpush1.bf16.msra.mxu0 0
  %290 = vmatprep.subr.bf16.mxu0 0
  %291 = vmatpush1.bf16.msra.mxu0 0
  %292 = vmatprep.subr.bf16.mxu0 0
  %293 = vmatpush1.bf16.msra.mxu0 0
  %294 = vmatprep.subr.bf16.mxu0 0
  %295 = vmatpush1.bf16.msra.mxu0 0
  %296 = vmatprep.subr.bf16.mxu0 0
  %297 = vmatpush1.bf16.msra.mxu0 0
  %298 = vmatprep.subr.bf16.mxu0 0
  %299 = vmatpush1.bf16.msra.mxu0 0
  %300 = vmatprep.mubr.bf16.mxu0 0
  %301 = vmatmul.mubr.bf16.gmra.mrb[0].mxu0 %v254
  %v302 = vpop.f32.mrb[0].mxu0
  %v303 = vadd.f32 %v223, %v302
  %v304 = vpop.f32.mrb[0].mxu0
  %v305 = vpop.f32.mrb[0].mxu0
  %v306 = vadd.f32 %v226, %v305
  %v307 = vpop.f32.mrb[0].mxu0
  %308 = vmatprep.mubr.bf16.mxu0 0
  %309 = vmatmul.mubr.bf16.gmra.mrb[0].mxu0 %v257
  %v310 = vpop.f32.mrb[0].mxu0
  %v311 = vadd.f32 %v231, %v310
  %v312 = vpop.f32.mrb[0].mxu0
  %v313 = vpop.f32.mrb[0].mxu0
  %v314 = vadd.f32 %v234, %v313
  %v315 = vpop.f32.mrb[0].mxu0
  %316 = vmatprep.mubr.bf16.mxu0 0
  %317 = vmatmul.mubr.bf16.gmra.mrb[0].mxu0 %v260
  %v318 = vpop.f32.mrb[0].mxu0
  %v319 = vadd.f32 %v239, %v318
  %v320 = vpop.f32.mrb[0].mxu0
  %v321 = vpop.f32.mrb[0].mxu0
  %v322 = vadd.f32 %v242, %v321
  %v323 = vpop.f32.mrb[0].mxu0
  %324 = vmatprep.mubr.bf16.mxu0 0
  %325 = vmatmul.mubr.bf16.gmra.mrb[0].mxu0 %v263
  %v326 = vpop.f32.mrb[0].mxu0
  %v327 = vadd.f32 %v247, %v326
  %v328 = vpop.f32.mrb[0].mxu0
  %v329 = vpop.f32.mrb[0].mxu0
  %v330 = vadd.f32 %v250, %v329
  %v331 = vpop.f32.mrb[0].mxu0
  %332 = vdwg.mxu0
  %v333 = vpack.c.bf16 %v153, %v152
  %v334 = vpack.c.bf16 %v155, %v154
  %v335 = vpack.c.bf16 %v157, %v156
  %v336 = vpack.c.bf16 %v159, %v158
  %s337 = scalar_lea.vmem %s3, 4
  %v338 = vld [vmem:[%s337] sm:$0x3]
  %v340 = vsel %vm171, %v333, 0
  %v343 = vsel %vm171, %v334, 0
  %v346 = vsel %vm171, %v335, 0
  %v349 = vsel %vm171, %v336, 0
  %v352 = vsel %vm184, %v338, 0
  %354 = vmatprep.subr.bf16.mxu0 0
  %355 = vmatpush1.bf16.msra.mxu0 %v352
  %356 = vmatprep.subr.bf16.mxu0 0
  %357 = vmatpush1.bf16.msra.mxu0 0
  %358 = vmatprep.subr.bf16.mxu0 0
  %359 = vmatpush1.bf16.msra.mxu0 0
  %360 = vmatprep.subr.bf16.mxu0 0
  %361 = vmatpush1.bf16.msra.mxu0 0
  %362 = vmatprep.subr.bf16.mxu0 0
  %363 = vmatpush1.bf16.msra.mxu0 0
  %364 = vmatprep.subr.bf16.mxu0 0
  %365 = vmatpush1.bf16.msra.mxu0 0
  %366 = vmatprep.subr.bf16.mxu0 0
  %367 = vmatpush1.bf16.msra.mxu0 0
  %368 = vmatprep.subr.bf16.mxu0 0
  %369 = vmatpush1.bf16.msra.mxu0 0
  %370 = vmatprep.subr.bf16.mxu0 0
  %371 = vmatpush1.bf16.msra.mxu0 0
  %372 = vmatprep.subr.bf16.mxu0 0
  %373 = vmatpush1.bf16.msra.mxu0 0
  %374 = vmatprep.subr.bf16.mxu0 0
  %375 = vmatpush1.bf16.msra.mxu0 0
  %376 = vmatprep.subr.bf16.mxu0 0
  %377 = vmatpush1.bf16.msra.mxu0 0
  %378 = vmatprep.subr.bf16.mxu0 0
  %379 = vmatpush1.bf16.msra.mxu0 0
  %380 = vmatprep.subr.bf16.mxu0 0
  %381 = vmatpush1.bf16.msra.mxu0 0
  %382 = vmatprep.subr.bf16.mxu0 0
  %383 = vmatpush1.bf16.msra.mxu0 0
  %384 = vmatprep.subr.bf16.mxu0 0
  %385 = vmatpush1.bf16.msra.mxu0 0
  %386 = vmatprep.mubr.bf16.mxu0 0
  %387 = vmatmul.mubr.bf16.gmra.mrb[0].mxu0 %v340
  %v388 = vpop.f32.mrb[0].mxu0
  %v389 = vadd.f32 0.0, %v388
  %v390 = vpop.f32.mrb[0].mxu0
  %v391 = vpop.f32.mrb[0].mxu0
  %v392 = vadd.f32 0.0, %v391
  %v393 = vpop.f32.mrb[0].mxu0
  %394 = vmatprep.mubr.bf16.mxu0 0
  %395 = vmatmul.mubr.bf16.gmra.mrb[0].mxu0 %v343
  %v396 = vpop.f32.mrb[0].mxu0
  %v397 = vadd.f32 0.0, %v396
  %v398 = vpop.f32.mrb[0].mxu0
  %v399 = vpop.f32.mrb[0].mxu0
  %v400 = vadd.f32 0.0, %v399
  %v401 = vpop.f32.mrb[0].mxu0
  %402 = vmatprep.mubr.bf16.mxu0 0
  %403 = vmatmul.mubr.bf16.gmra.mrb[0].mxu0 %v346
  %v404 = vpop.f32.mrb[0].mxu0
  %v405 = vadd.f32 0.0, %v404
  %v406 = vpop.f32.mrb[0].mxu0
  %v407 = vpop.f32.mrb[0].mxu0
  %v408 = vadd.f32 0.0, %v407
  %v409 = vpop.f32.mrb[0].mxu0
  %410 = vmatprep.mubr.bf16.mxu0 0
  %411 = vmatmul.mubr.bf16.gmra.mrb[0].mxu0 %v349
  %v412 = vpop.f32.mrb[0].mxu0
  %v413 = vadd.f32 0.0, %v412
  %v414 = vpop.f32.mrb[0].mxu0
  %v415 = vpop.f32.mrb[0].mxu0
  %v416 = vadd.f32 0.0, %v415
  %v417 = vpop.f32.mrb[0].mxu0
  %418 = vdwg.mxu0
  %v419 = vadd.f32 %v303, %v389
  %v420 = vadd.f32 %v306, %v392
  %v421 = vadd.f32 %v311, %v397
  %v422 = vadd.f32 %v314, %v400
  %v423 = vadd.f32 %v319, %v405
  %v424 = vadd.f32 %v322, %v408
  %v425 = vadd.f32 %v327, %v413
  %v426 = vadd.f32 %v330, %v416
  %v427 = vld [vmem:[%s4] sm:$0x1]
  %v428 = vld [vmem:[%s5] sm:$0x1]
  %vm429 = vcmask 64512
  %v430 = vsel %vm429, %v419, 0.0
  %v431 = vsel %vm429, %v420, 0.0
  %v432 = vadd.f32 %v430, %v431
  %v433 = vsel %vm429, %v421, 0.0
  %v434 = vadd.f32 %v432, %v433
  %v435 = vsel %vm429, %v422, 0.0
  %v436 = vadd.f32 %v434, %v435
  %v437 = vsel %vm429, %v423, 0.0
  %v438 = vadd.f32 %v436, %v437
  %v439 = vsel %vm429, %v424, 0.0
  %v440 = vadd.f32 %v438, %v439
  %v441 = vsel %vm429, %v425, 0.0
  %v442 = vadd.f32 %v440, %v441
  %v443 = vsel %vm429, %v426, 0.0
  %v444 = vadd.f32 %v442, %v443
  %v445 = vrot.slane %v444, 4
  %v446 = vadd.f32 %v444, %v445
  %v447 = vrot.slane %v446, 2
  %v448 = vadd.f32 %v446, %v447
  %v449 = vrot.slane %v448, 1
  %v450 = vadd.f32 %v448, %v449
  %v451 = vmul.f32 %v450, 0.015625
  %v452 = vmul.f32 %v419, %v419
  %v453 = vmul.f32 %v420, %v420
  %v454 = vmul.f32 %v421, %v421
  %v455 = vmul.f32 %v422, %v422
  %v456 = vmul.f32 %v423, %v423
  %v457 = vmul.f32 %v424, %v424
  %v458 = vmul.f32 %v425, %v425
  %v459 = vmul.f32 %v426, %v426
  %v460 = vsel %vm429, %v452, 0.0
  %v461 = vsel %vm429, %v453, 0.0
  %v462 = vadd.f32 %v460, %v461
  %v463 = vsel %vm429, %v454, 0.0
  %v464 = vadd.f32 %v462, %v463
  %v465 = vsel %vm429, %v455, 0.0
  %v466 = vadd.f32 %v464, %v465
  %v467 = vsel %vm429, %v456, 0.0
  %v468 = vadd.f32 %v466, %v467
  %v469 = vsel %vm429, %v457, 0.0
  %v470 = vadd.f32 %v468, %v469
  %v471 = vsel %vm429, %v458, 0.0
  %v472 = vadd.f32 %v470, %v471
  %v473 = vsel %vm429, %v459, 0.0
  %v474 = vadd.f32 %v472, %v473
  %v475 = vrot.slane %v474, 4
  %v476 = vadd.f32 %v474, %v475
  %v477 = vrot.slane %v476, 2
  %v478 = vadd.f32 %v476, %v477
  %v479 = vrot.slane %v478, 1
  %v480 = vadd.f32 %v478, %v479
  %v481 = vmul.f32 %v480, 0.015625
  %v482 = vmul.f32 %v451, %v451
  %v483 = vsub.f32 %v481, %v482
  %v484 = vadd.f32 %v483, 1e-05
  %v485 = vrsqrt.pop %v484
  %v486 = vmul.f32 %v485, %v427
  %v487 = vmul.f32 %v451, %v486
  %v488 = vsub.f32 %v428, %v487
  %v489 = vlaneseq
  %v490 = vshrl.u32 %v489, 7
  %v491 = vsub.s32 0, %v490
  %v492 = vrot.slane %v486, %v491
  %v493 = vmul.f32 %v419, %v492
  %v494 = vmul.f32 %v420, %v492
  %v495 = vmul.f32 %v421, %v492
  %v496 = vmul.f32 %v422, %v492
  %v497 = vmul.f32 %v423, %v492
  %v498 = vmul.f32 %v424, %v492
  %v499 = vmul.f32 %v425, %v492
  %v500 = vmul.f32 %v426, %v492
  %v502 = vlaneseq
  %v503 = vshrl.u32 %v502, 7
  %v504 = vsub.s32 0, %v503
  %v505 = vrot.slane %v488, %v504
  %v507 = vadd.f32 %v493, %v505
  %v508 = vadd.f32 %v494, %v505
  %v509 = vadd.f32 %v495, %v505
  %v510 = vadd.f32 %v496, %v505
  %v511 = vadd.f32 %v497, %v505
  %v512 = vadd.f32 %v498, %v505
  %v513 = vadd.f32 %v499, %v505
  %v514 = vadd.f32 %v500, %v505
  %v515 = vmax.f32 %v507, 0.0
  %v516 = vmax.f32 %v508, 0.0
  %v517 = vmax.f32 %v509, 0.0
  %v518 = vmax.f32 %v510, 0.0
  %v519 = vmax.f32 %v511, 0.0
  %v520 = vmax.f32 %v512, 0.0
  %v521 = vmax.f32 %v513, 0.0
  %v522 = vmax.f32 %v514, 0.0
  %523 = vst.msk [vmem:[#allocation2] sm:$0xff] %vm429, 0.0
  %524 = vst.msk [vmem:[#allocation2 + $0x48] sm:$0xff] %vm429, 0.0
  %525 = vst.msk [vmem:[#allocation2 + $0x8] sm:$0xff] %vm429, %v515
  %526 = vst.msk [vmem:[#allocation2 + $0x10] sm:$0xff] %vm429, %v516
  %527 = vst.msk [vmem:[#allocation2 + $0x18] sm:$0xff] %vm429, %v517
  %528 = vst.msk [vmem:[#allocation2 + $0x20] sm:$0xff] %vm429, %v518
  %529 = vst.msk [vmem:[#allocation2 + $0x28] sm:$0xff] %vm429, %v519
  %530 = vst.msk [vmem:[#allocation2 + $0x30] sm:$0xff] %vm429, %v520
  %531 = vst.msk [vmem:[#allocation2 + $0x38] sm:$0xff] %vm429, %v521
  %532 = vst.msk [vmem:[#allocation2 + $0x40] sm:$0xff] %vm429, %v522
  %v533 = vld [vmem:[#allocation2 + $0x7] sm:$0xff]
  %v534 = vld [vmem:[#allocation2 + $0xf] sm:$0xff]
  %v535 = vld [vmem:[#allocation2 + $0x17] sm:$0xff]
  %v536 = vld [vmem:[#allocation2 + $0x1f] sm:$0xff]
  %v537 = vld [vmem:[#allocation2 + $0x27] sm:$0xff]
  %v538 = vld [vmem:[#allocation2 + $0x2f] sm:$0xff]
  %v539 = vld [vmem:[#allocation2 + $0x37] sm:$0xff]
  %v540 = vld [vmem:[#allocation2 + $0x3f] sm:$0xff]
  %v541 = vmul.f32 %v533, %v59
  %v542 = vmul.f32 %v534, %v64
  %v543 = vmul.f32 %v535, %v69
  %v544 = vmul.f32 %v536, %v74
  %v545 = vmul.f32 %v537, %v79
  %v546 = vmul.f32 %v538, %v84
  %v547 = vmul.f32 %v539, %v89
  %v548 = vmul.f32 %v540, %v94
  %v549 = vld [vmem:[#allocation2 + $0x9] sm:$0xff]
  %v550 = vld [vmem:[#allocation2 + $0x11] sm:$0xff]
  %v551 = vld [vmem:[#allocation2 + $0x19] sm:$0xff]
  %v552 = vld [vmem:[#allocation2 + $0x21] sm:$0xff]
  %v553 = vld [vmem:[#allocation2 + $0x29] sm:$0xff]
  %v554 = vld [vmem:[#allocation2 + $0x31] sm:$0xff]
  %v555 = vld [vmem:[#allocation2 + $0x39] sm:$0xff]
  %v556 = vld [vmem:[#allocation2 + $0x41] sm:$0xff]
  %v557 = vmul.f32 %v549, %v115
  %v558 = vmul.f32 %v550, %v120
  %v559 = vmul.f32 %v551, %v125
  %v560 = vmul.f32 %v552, %v130
  %v561 = vmul.f32 %v553, %v135
  %v562 = vmul.f32 %v554, %v140
  %v563 = vmul.f32 %v555, %v145
  %v564 = vmul.f32 %v556, %v150
  %v565 = vmax.f32 %v541, %v515
  %v566 = vmax.f32 %v542, %v516
  %v567 = vmax.f32 %v543, %v517
  %v568 = vmax.f32 %v544, %v518
  %v569 = vmax.f32 %v545, %v519
  %v570 = vmax.f32 %v546, %v520
  %v571 = vmax.f32 %v547, %v521
  %v572 = vmax.f32 %v548, %v522
  %v573 = vmax.f32 %v565, %v557
  %v574 = vmax.f32 %v566, %v558
  %v575 = vmax.f32 %v567, %v559
  %v576 = vmax.f32 %v568, %v560
  %v577 = vmax.f32 %v569, %v561
  %v578 = vmax.f32 %v570, %v562
  %v579 = vmax.f32 %v571, %v563
  %v580 = vmax.f32 %v572, %v564
  %581 = vst.msk [vmem:[%s6] sm:$0xff] %vm429, %v573
  %582 = vst.msk [vmem:[%s6 + $0x8] sm:$0xff] %vm429, %v574
  %583 = vst.msk [vmem:[%s6 + $0x10] sm:$0xff] %vm429, %v575
  %584 = vst.msk [vmem:[%s6 + $0x18] sm:$0xff] %vm429, %v576
  %585 = vst.msk [vmem:[%s6 + $0x20] sm:$0xff] %vm429, %v577
  %586 = vst.msk [vmem:[%s6 + $0x28] sm:$0xff] %vm429, %v578
  %587 = vst.msk [vmem:[%s6 + $0x30] sm:$0xff] %vm429, %v579
  %588 = vst.msk [vmem:[%s6 + $0x38] sm:$0xff] %vm429, %v580
  // Predicated region
  $region26: #{forward.6} parent=0 // pred_check
    _
  $region27: #{forward.6} parent=0 // pred_check_branch
    %590 = sbr.rel (0) target = $region29
  $region28: #{forward.6} parent=0 // pred_region
    _
  $region29: #{forward.6} parent=0 // pred_fallthru
    _
  // Predicated region
  $region30: #{forward.6} parent=0 // pred_check
    _
  $region31: #{forward.6} parent=0 // pred_check_branch
    %592 = sbr.rel (0) target = $region33
  $region32: #{forward.6} parent=0 // pred_region
    _
  $region33: #{forward.6} parent=0 // pred_fallthru
    _

// kernel: forward.9
$region0: #{forward.9}
  #allocation0 [shape = 'u32[]', space=smem, size = 0x4, offset = 0x4, fixed_abs, tag = 'smem constant byte address 0x4 - core index']
  #allocation1 [shape = 'u32[144,128]{1,0:T(1,128)}', space=vmem, size = 0x12000, scoped, tag = 'internal scratch']
  #allocation2 [shape = 'f32[24,32]{1,0:T(8,128)}', space=vmem, size = 0x3000, scoped, tag = 'scratch operand']
  %s0 = inlined_call_operand.vmem [shape: f32[8,16], index: 0, kind: input, shape index: {}]
  %s1 = inlined_call_operand.vmem [shape: f32[16,16], index: 1, kind: input, shape index: {}]
  %s2 = inlined_call_operand.vmem [shape: f32[8,1], index: 2, kind: input, shape index: {}]
  %s3 = inlined_call_operand.vmem [shape: f32[8,1], index: 3, kind: input, shape index: {}]
  %s4 = inlined_call_operand.vmem [shape: bf16[3,16,32], index: 4, kind: input, shape index: {}]
  %s5 = inlined_call_operand.vmem [shape: f32[1,32], index: 5, kind: input, shape index: {}]
  %s6 = inlined_call_operand.vmem [shape: f32[1,32], index: 6, kind: input, shape index: {}]
  %s7 = inlined_call_operand.vmem [shape: bf16[3,32,32], index: 7, kind: input, shape index: {}]
  %s8 = inlined_call_operand.vmem [shape: f32[1,32], index: 8, kind: input, shape index: {}]
  %s9 = inlined_call_operand.vmem [shape: f32[1,32], index: 9, kind: input, shape index: {}]
  %s10 = inlined_call_operand.vmem [shape: bf16[16,32], index: 10, kind: input, shape index: {}]
  %s11 = inlined_call_operand.vmem [shape: f32[1,32], index: 11, kind: input, shape index: {}]
  %s12 = inlined_call_operand.vmem [shape: f32[1,32], index: 12, kind: input, shape index: {}]
  %s13 = inlined_call_operand.vmem [shape: f32[8,32], index: 13, kind: output, shape index: {}]
  %s14 = sld [smem:[#allocation0]]
  $region62: #{forward.9} parent=0
    _
  %s16 = ssub.s32 1, %s14
  %s17 = scalar_select 0, %s16, %s14
  // Predicated region
  $region2: #{forward.9} parent=0 // pred_check
    _
  $region3: #{forward.9} parent=0 // pred_check_branch
    %19 = sbr.rel (0) target = $region5
  $region4: #{forward.9} parent=0 // pred_region
    _
  $region5: #{forward.9} parent=0 // pred_fallthru
    _
  // Predicated region
  $region6: #{forward.9} parent=0 // pred_check
    _
  $region7: #{forward.9} parent=0 // pred_check_branch
    %21 = sbr.rel (0) target = $region9
  $region8: #{forward.9} parent=0 // pred_region
    _
  $region9: #{forward.9} parent=0 // pred_fallthru
    _
  // Predicated region
  $region10: #{forward.9} parent=0 // pred_check
    _
  $region11: #{forward.9} parent=0 // pred_check_branch
    %23 = sbr.rel (0) target = $region13
  $region12: #{forward.9} parent=0 // pred_region
    _
  $region13: #{forward.9} parent=0 // pred_fallthru
    _
  // Predicated region
  $region14: #{forward.9} parent=0 // pred_check
    _
  $region15: #{forward.9} parent=0 // pred_check_branch
    %25 = sbr.rel (0) target = $region17
  $region16: #{forward.9} parent=0 // pred_region
    _
  $region17: #{forward.9} parent=0 // pred_fallthru
    _
  // Predicated region
  $region18: #{forward.9} parent=0 // pred_check
    _
  $region19: #{forward.9} parent=0 // pred_check_branch
    %27 = sbr.rel (0) target = $region21
  $region20: #{forward.9} parent=0 // pred_region
    _
  $region21: #{forward.9} parent=0 // pred_fallthru
    _
  // Predicated region
  $region22: #{forward.9} parent=0 // pred_check
    _
  $region23: #{forward.9} parent=0 // pred_check_branch
    %29 = sbr.rel (0) target = $region25
  $region24: #{forward.9} parent=0 // pred_region
    _
  $region25: #{forward.9} parent=0 // pred_fallthru
    _
  // Predicated region
  $region26: #{forward.9} parent=0 // pred_check
    _
  $region27: #{forward.9} parent=0 // pred_check_branch
    %31 = sbr.rel (0) target = $region29
  $region28: #{forward.9} parent=0 // pred_region
    _
  $region29: #{forward.9} parent=0 // pred_fallthru
    _
  // Predicated region
  $region30: #{forward.9} parent=0 // pred_check
    _
  $region31: #{forward.9} parent=0 // pred_check_branch
    %33 = sbr.rel (0) target = $region33
  $region32: #{forward.9} parent=0 // pred_region
    _
  $region33: #{forward.9} parent=0 // pred_fallthru
    _
  // Predicated region
  $region34: #{forward.9} parent=0 // pred_check
    _
  $region35: #{forward.9} parent=0 // pred_check_branch
    %35 = sbr.rel (0) target = $region37
  $region36: #{forward.9} parent=0 // pred_region
    _
  $region37: #{forward.9} parent=0 // pred_fallthru
    _
  // Predicated region
  $region38: #{forward.9} parent=0 // pred_check
    _
  $region39: #{forward.9} parent=0 // pred_check_branch
    %37 = sbr.rel (0) target = $region41
  $region40: #{forward.9} parent=0 // pred_region
    _
  $region41: #{forward.9} parent=0 // pred_fallthru
    _
  // Predicated region
  $region42: #{forward.9} parent=0 // pred_check
    _
  $region43: #{forward.9} parent=0 // pred_check_branch
    %39 = sbr.rel (0) target = $region45
  $region44: #{forward.9} parent=0 // pred_region
    _
  $region45: #{forward.9} parent=0 // pred_fallthru
    _
  // Predicated region
  $region46: #{forward.9} parent=0 // pred_check
    _
  $region47: #{forward.9} parent=0 // pred_check_branch
    %41 = sbr.rel (0) target = $region49
  $region48: #{forward.9} parent=0 // pred_region
    _
  $region49: #{forward.9} parent=0 // pred_fallthru
    _
  // Predicated region
  $region50: #{forward.9} parent=0 // pred_check
    _
  $region51: #{forward.9} parent=0 // pred_check_branch
    %43 = sbr.rel (0) target = $region53
  $region52: #{forward.9} parent=0 // pred_region
    _
  $region53: #{forward.9} parent=0 // pred_fallthru
    _
  %v45 = vld [vmem:[%s2] sm:$0xff]
  %v46 = vld [vmem:[%s3] sm:$0xff]
  %v47 = vld [vmem:[%s0] sm:$0xff]
  %v48 = vld [vmem:[%s1 + $0x8] sm:$0xff]
  %v49 = vld [vmem:[%s1 + $0x7] sm:$0xff]
  %51 = vset.pattern.permute.xlu0 0
  %52 = vperm.xlu0 %51, %v45
  %v53 = vpop.permute.xlu0 %52
  %v55 = vmul.f32 %v49, %v53
  %v56 = vpack.c.bf16 %v55, %v55
  %v57 = vld [vmem:[%s4] sm:$0xf]
  %v58 = vld [vmem:[%s4 + $0x4] sm:$0xf]
  %v59 = vpack.c.bf16 %v47, %v47
  %s60 = scalar_lea.vmem %s4, 8
  %v61 = vld [vmem:[%s60] sm:$0xf]
  %v62 = vld [vmem:[%s60 + $0x4] sm:$0xf]
  %v65 = vunpack.c.l.b16 %v61
  %v66 = vunpack.c.l.b16 %v62
  %v67 = vpack.c.b16 %v66, %v65
  %vm69 = vcmask 130048
  %v71 = vsel %vm69, %v59, 0
  %73 = vmatprep.subr.bf16.mxu0 0
  %74 = vmatpush1.bf16.msra.mxu0 %v67
  %75 = vmatprep.subr.bf16.mxu0 0
  %76 = vmatpush1.bf16.msra.mxu0 0
  %77 = vmatprep.subr.bf16.mxu0 0
  %78 = vmatpush1.bf16.msra.mxu0 0
  %79 = vmatprep.subr.bf16.mxu0 0
  %80 = vmatpush1.bf16.msra.mxu0 0
  %81 = vmatprep.subr.bf16.mxu0 0
  %82 = vmatpush1.bf16.msra.mxu0 0
  %83 = vmatprep.subr.bf16.mxu0 0
  %84 = vmatpush1.bf16.msra.mxu0 0
  %85 = vmatprep.subr.bf16.mxu0 0
  %86 = vmatpush1.bf16.msra.mxu0 0
  %87 = vmatprep.subr.bf16.mxu0 0
  %88 = vmatpush1.bf16.msra.mxu0 0
  %89 = vmatprep.subr.bf16.mxu0 0
  %90 = vmatpush1.bf16.msra.mxu0 0
  %91 = vmatprep.subr.bf16.mxu0 0
  %92 = vmatpush1.bf16.msra.mxu0 0
  %93 = vmatprep.subr.bf16.mxu0 0
  %94 = vmatpush1.bf16.msra.mxu0 0
  %95 = vmatprep.subr.bf16.mxu0 0
  %96 = vmatpush1.bf16.msra.mxu0 0
  %97 = vmatprep.subr.bf16.mxu0 0
  %98 = vmatpush1.bf16.msra.mxu0 0
  %99 = vmatprep.subr.bf16.mxu0 0
  %100 = vmatpush1.bf16.msra.mxu0 0
  %101 = vmatprep.subr.bf16.mxu0 0
  %102 = vmatpush1.bf16.msra.mxu0 0
  %103 = vmatprep.subr.bf16.mxu0 0
  %104 = vmatpush1.bf16.msra.mxu0 0
  %105 = vmatprep.mubr.bf16.mxu0 0
  %106 = vmatmul.mubr.bf16.gmra.mrb[0].mxu0 %v71
  %v107 = vpop.f32.mrb[0].mxu0
  %v108 = vadd.f32 0.0, %v107
  %v109 = vpop.f32.mrb[0].mxu0
  %v110 = vpop.f32.mrb[0].mxu0
  %v111 = vpop.f32.mrb[0].mxu0
  %112 = vdwg.mxu0
  %v115 = vunpack.c.l.b16 %v57
  %v116 = vunpack.c.l.b16 %v58
  %v117 = vpack.c.b16 %v116, %v115
  %v120 = vsel %vm69, %v56, 0
  %122 = vmatprep.subr.bf16.mxu0 0
  %123 = vmatpush1.bf16.msra.mxu0 %v117
  %124 = vmatprep.subr.bf16.mxu0 0
  %125 = vmatpush1.bf16.msra.mxu0 0
  %126 = vmatprep.subr.bf16.mxu0 0
  %127 = vmatpush1.bf16.msra.mxu0 0
  %128 = vmatprep.subr.bf16.mxu0 0
  %129 = vmatpush1.bf16.msra.mxu0 0
  %130 = vmatprep.subr.bf16.mxu0 0
  %131 = vmatpush1.bf16.msra.mxu0 0
  %132 = vmatprep.subr.bf16.mxu0 0
  %133 = vmatpush1.bf16.msra.mxu0 0
  %134 = vmatprep.subr.bf16.mxu0 0
  %135 = vmatpush1.bf16.msra.mxu0 0
  %136 = vmatprep.subr.bf16.mxu0 0
  %137 = vmatpush1.bf16.msra.mxu0 0
  %138 = vmatprep.subr.bf16.mxu0 0
  %139 = vmatpush1.bf16.msra.mxu0 0
  %140 = vmatprep.subr.bf16.mxu0 0
  %141 = vmatpush1.bf16.msra.mxu0 0
  %142 = vmatprep.subr.bf16.mxu0 0
  %143 = vmatpush1.bf16.msra.mxu0 0
  %144 = vmatprep.subr.bf16.mxu0 0
  %145 = vmatpush1.bf16.msra.mxu0 0
  %146 = vmatprep.subr.bf16.mxu0 0
  %147 = vmatpush1.bf16.msra.mxu0 0
  %148 = vmatprep.subr.bf16.mxu0 0
  %149 = vmatpush1.bf16.msra.mxu0 0
  %150 = vmatprep.subr.bf16.mxu0 0
  %151 = vmatpush1.bf16.msra.mxu0 0
  %152 = vmatprep.subr.bf16.mxu0 0
  %153 = vmatpush1.bf16.msra.mxu0 0
  %154 = vmatprep.mubr.bf16.mxu0 0
  %155 = vmatmul.mubr.bf16.gmra.mrb[0].mxu0 %v120
  %v156 = vpop.f32.mrb[0].mxu0
  %v157 = vadd.f32 %v108, %v156
  %v158 = vpop.f32.mrb[0].mxu0
  %v159 = vpop.f32.mrb[0].mxu0
  %v160 = vpop.f32.mrb[0].mxu0
  %161 = vdwg.mxu0
  %v162 = vpack.c.bf16 %v48, %v48
  %s163 = scalar_lea.vmem %s4, 16
  %v164 = vld [vmem:[%s163] sm:$0xf]
  %v165 = vld [vmem:[%s163 + $0x4] sm:$0xf]
  %v168 = vunpack.c.l.b16 %v164
  %v169 = vunpack.c.l.b16 %v165
  %v170 = vpack.c.b16 %v169, %v168
  %v173 = vsel %vm69, %v162, 0
  %175 = vmatprep.subr.bf16.mxu0 0
  %176 = vmatpush1.bf16.msra.mxu0 %v170
  %177 = vmatprep.subr.bf16.mxu0 0
  %178 = vmatpush1.bf16.msra.mxu0 0
  %179 = vmatprep.subr.bf16.mxu0 0
  %180 = vmatpush1.bf16.msra.mxu0 0
  %181 = vmatprep.subr.bf16.mxu0 0
  %182 = vmatpush1.bf16.msra.mxu0 0
  %183 = vmatprep.subr.bf16.mxu0 0
  %184 = vmatpush1.bf16.msra.mxu0 0
  %185 = vmatprep.subr.bf16.mxu0 0
  %186 = vmatpush1.bf16.msra.mxu0 0
  %187 = vmatprep.subr.bf16.mxu0 0
  %188 = vmatpush1.bf16.msra.mxu0 0
  %189 = vmatprep.subr.bf16.mxu0 0
  %190 = vmatpush1.bf16.msra.mxu0 0
  %191 = vmatprep.subr.bf16.mxu0 0
  %192 = vmatpush1.bf16.msra.mxu0 0
  %193 = vmatprep.subr.bf16.mxu0 0
  %194 = vmatpush1.bf16.msra.mxu0 0
  %195 = vmatprep.subr.bf16.mxu0 0
  %196 = vmatpush1.bf16.msra.mxu0 0
  %197 = vmatprep.subr.bf16.mxu0 0
  %198 = vmatpush1.bf16.msra.mxu0 0
  %199 = vmatprep.subr.bf16.mxu0 0
  %200 = vmatpush1.bf16.msra.mxu0 0
  %201 = vmatprep.subr.bf16.mxu0 0
  %202 = vmatpush1.bf16.msra.mxu0 0
  %203 = vmatprep.subr.bf16.mxu0 0
  %204 = vmatpush1.bf16.msra.mxu0 0
  %205 = vmatprep.subr.bf16.mxu0 0
  %206 = vmatpush1.bf16.msra.mxu0 0
  %207 = vmatprep.mubr.bf16.mxu0 0
  %208 = vmatmul.mubr.bf16.gmra.mrb[0].mxu0 %v173
  %v209 = vpop.f32.mrb[0].mxu0
  %v210 = vadd.f32 0.0, %v209
  %v211 = vpop.f32.mrb[0].mxu0
  %v212 = vpop.f32.mrb[0].mxu0
  %v213 = vpop.f32.mrb[0].mxu0
  %214 = vdwg.mxu0
  %v215 = vadd.f32 %v157, %v210
  %v216 = vld [vmem:[%s5] sm:$0x1]
  %v217 = vld [vmem:[%s6] sm:$0x1]
  %vm218 = vcmask 261120
  %v219 = vsel %vm218, %v215, 0.0
  %v220 = vrot.slane %v219, 4
  %v221 = vadd.f32 %v219, %v220
  %v222 = vrot.slane %v221, 2
  %v223 = vadd.f32 %v221, %v222
  %v224 = vrot.slane %v223, 1
  %v225 = vadd.f32 %v223, %v224
  %v226 = vmul.f32 %v225, 0.125
  %v227 = vmul.f32 %v215, %v215
  %v228 = vsel %vm218, %v227, 0.0
  %v229 = vrot.slane %v228, 4
  %v230 = vadd.f32 %v228, %v229
  %v231 = vrot.slane %v230, 2
  %v232 = vadd.f32 %v230, %v231
  %v233 = vrot.slane %v232, 1
  %v234 = vadd.f32 %v232, %v233
  %v235 = vmul.f32 %v234, 0.125
  %v236 = vmul.f32 %v226, %v226
  %v237 = vsub.f32 %v235, %v236
  %v238 = vadd.f32 %v237, 1e-05
  %v239 = vrsqrt.pop %v238
  %v240 = vmul.f32 %v239, %v216
  %v241 = vmul.f32 %v226, %v240
  %v242 = vsub.f32 %v217, %v241
  %v243 = vlaneseq
  %v244 = vshrl.u32 %v243, 7
  %v245 = vsub.s32 0, %v244
  %v246 = vrot.slane %v240, %v245
  %v247 = vmul.f32 %v215, %v246
  %v249 = vlaneseq
  %v250 = vshrl.u32 %v249, 7
  %v251 = vsub.s32 0, %v250
  %v252 = vrot.slane %v242, %v251
  %v254 = vadd.f32 %v247, %v252
  %v255 = vmax.f32 %v254, 0.0
  %256 = vst.msk [vmem:[#allocation2] sm:$0xff] %vm218, 0.0
  %257 = vst.msk [vmem:[#allocation2 + $0x10] sm:$0xff] %vm218, 0.0
  %258 = vst.msk [vmem:[#allocation2 + $0x8] sm:$0xff] %vm218, %v255
  %v259 = vld [vmem:[#allocation2 + $0x7] sm:$0xff]
  %v260 = vmul.f32 %v259, %v53
  %v261 = vld [vmem:[#allocation2 + $0x9] sm:$0xff]
  %263 = vset.pattern.permute.xlu0 0
  %264 = vperm.xlu0 %263, %v46
  %v265 = vpop.permute.xlu0 %264
  %v267 = vmul.f32 %v261, %v265
  %v268 = vpack.c.bf16 %v260, %v260
  %v269 = vld [vmem:[%s7] sm:$0xf]
  %v270 = vld [vmem:[%s7 + $0x4] sm:$0xf]
  %v271 = vld [vmem:[%s7 + $0x8] sm:$0xf]
  %v272 = vld [vmem:[%s7 + $0xc] sm:$0xf]
  %v273 = vpack.c.bf16 %v255, %v255
  %s274 = scalar_lea.vmem %s7, 16
  %v275 = vld [vmem:[%s274] sm:$0xf]
  %v276 = vld [vmem:[%s274 + $0x4] sm:$0xf]
  %v277 = vld [vmem:[%s274 + $0x8] sm:$0xf]
  %v278 = vld [vmem:[%s274 + $0xc] sm:$0xf]
  %v283 = vunpack.c.l.b16 %v275
  %v284 = vunpack.c.l.b16 %v276
  %v285 = vunpack.c.l.b16 %v277
  %v286 = vunpack.c.l.b16 %v278
  %v287 = vpack.c.b16 %v284, %v283
  %v288 = vpack.c.b16 %v286, %v285
  %v292 = vsel %vm218, %v273, 0
  %294 = vmatprep.subr.bf16.mxu0 0
  %295 = vmatpush1.bf16.msra.mxu0 %v287
  %296 = vmatprep.subr.bf16.mxu0 0
  %297 = vmatpush1.bf16.msra.mxu0 %v288
  %298 = vmatprep.subr.bf16.mxu0 0
  %299 = vmatpush1.bf16.msra.mxu0 0
  %300 = vmatprep.subr.bf16.mxu0 0
  %301 = vmatpush1.bf16.msra.mxu0 0
  %302 = vmatprep.subr.bf16.mxu0 0
  %303 = vmatpush1.bf16.msra.mxu0 0
  %304 = vmatprep.subr.bf16.mxu0 0
  %305 = vmatpush1.bf16.msra.mxu0 0
  %306 = vmatprep.subr.bf16.mxu0 0
  %307 = vmatpush1.bf16.msra.mxu0 0
  %308 = vmatprep.subr.bf16.mxu0 0
  %309 = vmatpush1.bf16.msra.mxu0 0
  %310 = vmatprep.subr.bf16.mxu0 0
  %311 = vmatpush1.bf16.msra.mxu0 0
  %312 = vmatprep.subr.bf16.mxu0 0
  %313 = vmatpush1.bf16.msra.mxu0 0
  %314 = vmatprep.subr.bf16.mxu0 0
  %315 = vmatpush1.bf16.msra.mxu0 0
  %316 = vmatprep.subr.bf16.mxu0 0
  %317 = vmatpush1.bf16.msra.mxu0 0
  %318 = vmatprep.subr.bf16.mxu0 0
  %319 = vmatpush1.bf16.msra.mxu0 0
  %320 = vmatprep.subr.bf16.mxu0 0
  %321 = vmatpush1.bf16.msra.mxu0 0
  %322 = vmatprep.subr.bf16.mxu0 0
  %323 = vmatpush1.bf16.msra.mxu0 0
  %324 = vmatprep.subr.bf16.mxu0 0
  %325 = vmatpush1.bf16.msra.mxu0 0
  %326 = vmatprep.mubr.bf16.mxu0 0
  %327 = vmatmul.mubr.bf16.gmra.mrb[0].mxu0 %v292
  %v328 = vpop.f32.mrb[0].mxu0
  %v329 = vadd.f32 0.0, %v328
  %v330 = vpop.f32.mrb[0].mxu0
  %v331 = vpop.f32.mrb[0].mxu0
  %v332 = vpop.f32.mrb[0].mxu0
  %333 = vdwg.mxu0
  %v338 = vunpack.c.l.b16 %v269
  %v339 = vunpack.c.l.b16 %v270
  %v340 = vunpack.c.l.b16 %v271
  %v341 = vunpack.c.l.b16 %v272
  %v342 = vpack.c.b16 %v339, %v338
  %v343 = vpack.c.b16 %v341, %v340
  %v347 = vsel %vm218, %v268, 0
  %349 = vmatprep.subr.bf16.mxu0 0
  %350 = vmatpush1.bf16.msra.mxu0 %v342
  %351 = vmatprep.subr.bf16.mxu0 0
  %352 = vmatpush1.bf16.msra.mxu0 %v343
  %353 = vmatprep.subr.bf16.mxu0 0
  %354 = vmatpush1.bf16.msra.mxu0 0
  %355 = vmatprep.subr.bf16.mxu0 0
  %356 = vmatpush1.bf16.msra.mxu0 0
  %357 = vmatprep.subr.bf16.mxu0 0
  %358 = vmatpush1.bf16.msra.mxu0 0
  %359 = vmatprep.subr.bf16.mxu0 0
  %360 = vmatpush1.bf16.msra.mxu0 0
  %361 = vmatprep.subr.bf16.mxu0 0
  %362 = vmatpush1.bf16.msra.mxu0 0
  %363 = vmatprep.subr.bf16.mxu0 0
  %364 = vmatpush1.bf16.msra.mxu0 0
  %365 = vmatprep.subr.bf16.mxu0 0
  %366 = vmatpush1.bf16.msra.mxu0 0
  %367 = vmatprep.subr.bf16.mxu0 0
  %368 = vmatpush1.bf16.msra.mxu0 0
  %369 = vmatprep.subr.bf16.mxu0 0
  %370 = vmatpush1.bf16.msra.mxu0 0
  %371 = vmatprep.subr.bf16.mxu0 0
  %372 = vmatpush1.bf16.msra.mxu0 0
  %373 = vmatprep.subr.bf16.mxu0 0
  %374 = vmatpush1.bf16.msra.mxu0 0
  %375 = vmatprep.subr.bf16.mxu0 0
  %376 = vmatpush1.bf16.msra.mxu0 0
  %377 = vmatprep.subr.bf16.mxu0 0
  %378 = vmatpush1.bf16.msra.mxu0 0
  %379 = vmatprep.subr.bf16.mxu0 0
  %380 = vmatpush1.bf16.msra.mxu0 0
  %381 = vmatprep.mubr.bf16.mxu0 0
  %382 = vmatmul.mubr.bf16.gmra.mrb[0].mxu0 %v347
  %v383 = vpop.f32.mrb[0].mxu0
  %v384 = vadd.f32 %v329, %v383
  %v385 = vpop.f32.mrb[0].mxu0
  %v386 = vpop.f32.mrb[0].mxu0
  %v387 = vpop.f32.mrb[0].mxu0
  %388 = vdwg.mxu0
  %v389 = vpack.c.bf16 %v267, %v267
  %s390 = scalar_lea.vmem %s7, 32
  %v391 = vld [vmem:[%s390] sm:$0xf]
  %v392 = vld [vmem:[%s390 + $0x4] sm:$0xf]
  %v393 = vld [vmem:[%s390 + $0x8] sm:$0xf]
  %v394 = vld [vmem:[%s390 + $0xc] sm:$0xf]
  %v399 = vunpack.c.l.b16 %v391
  %v400 = vunpack.c.l.b16 %v392
  %v401 = vunpack.c.l.b16 %v393
  %v402 = vunpack.c.l.b16 %v394
  %v403 = vpack.c.b16 %v400, %v399
  %v404 = vpack.c.b16 %v402, %v401
  %v408 = vsel %vm218, %v389, 0
  %410 = vmatprep.subr.bf16.mxu0 0
  %411 = vmatpush1.bf16.msra.mxu0 %v403
  %412 = vmatprep.subr.bf16.mxu0 0
  %413 = vmatpush1.bf16.msra.mxu0 %v404
  %414 = vmatprep.subr.bf16.mxu0 0
  %415 = vmatpush1.bf16.msra.mxu0 0
  %416 = vmatprep.subr.bf16.mxu0 0
  %417 = vmatpush1.bf16.msra.mxu0 0
  %418 = vmatprep.subr.bf16.mxu0 0
  %419 = vmatpush1.bf16.msra.mxu0 0
  %420 = vmatprep.subr.bf16.mxu0 0
  %421 = vmatpush1.bf16.msra.mxu0 0
  %422 = vmatprep.subr.bf16.mxu0 0
  %423 = vmatpush1.bf16.msra.mxu0 0
  %424 = vmatprep.subr.bf16.mxu0 0
  %425 = vmatpush1.bf16.msra.mxu0 0
  %426 = vmatprep.subr.bf16.mxu0 0
  %427 = vmatpush1.bf16.msra.mxu0 0
  %428 = vmatprep.subr.bf16.mxu0 0
  %429 = vmatpush1.bf16.msra.mxu0 0
  %430 = vmatprep.subr.bf16.mxu0 0
  %431 = vmatpush1.bf16.msra.mxu0 0
  %432 = vmatprep.subr.bf16.mxu0 0
  %433 = vmatpush1.bf16.msra.mxu0 0
  %434 = vmatprep.subr.bf16.mxu0 0
  %435 = vmatpush1.bf16.msra.mxu0 0
  %436 = vmatprep.subr.bf16.mxu0 0
  %437 = vmatpush1.bf16.msra.mxu0 0
  %438 = vmatprep.subr.bf16.mxu0 0
  %439 = vmatpush1.bf16.msra.mxu0 0
  %440 = vmatprep.subr.bf16.mxu0 0
  %441 = vmatpush1.bf16.msra.mxu0 0
  %442 = vmatprep.mubr.bf16.mxu0 0
  %443 = vmatmul.mubr.bf16.gmra.mrb[0].mxu0 %v408
  %v444 = vpop.f32.mrb[0].mxu0
  %v445 = vadd.f32 0.0, %v444
  %v446 = vpop.f32.mrb[0].mxu0
  %v447 = vpop.f32.mrb[0].mxu0
  %v448 = vpop.f32.mrb[0].mxu0
  %449 = vdwg.mxu0
  %v450 = vadd.f32 %v384, %v445
  %v451 = vld [vmem:[%s8] sm:$0x1]
  %v452 = vld [vmem:[%s9] sm:$0x1]
  %v453 = vsel %vm218, %v450, 0.0
  %v454 = vrot.slane %v453, 4
  %v455 = vadd.f32 %v453, %v454
  %v456 = vrot.slane %v455, 2
  %v457 = vadd.f32 %v455, %v456
  %v458 = vrot.slane %v457, 1
  %v459 = vadd.f32 %v457, %v458
  %v460 = vmul.f32 %v459, 0.125
  %v461 = vmul.f32 %v450, %v450
  %v462 = vsel %vm218, %v461, 0.0
  %v463 = vrot.slane %v462, 4
  %v464 = vadd.f32 %v462, %v463
  %v465 = vrot.slane %v464, 2
  %v466 = vadd.f32 %v464, %v465
  %v467 = vrot.slane %v466, 1
  %v468 = vadd.f32 %v466, %v467
  %v469 = vmul.f32 %v468, 0.125
  %v470 = vmul.f32 %v460, %v460
  %v471 = vsub.f32 %v469, %v470
  %v472 = vadd.f32 %v471, 1e-05
  %v473 = vrsqrt.pop %v472
  %v474 = vmul.f32 %v473, %v451
  %v475 = vmul.f32 %v460, %v474
  %v476 = vsub.f32 %v452, %v475
  %v477 = vld [vmem:[%s10] sm:$0xf]
  %v478 = vld [vmem:[%s10 + $0x4] sm:$0xf]
  %v481 = vunpack.c.l.b16 %v477
  %v482 = vunpack.c.l.b16 %v478
  %v483 = vpack.c.b16 %v482, %v481
  %485 = vmatprep.subr.bf16.mxu0 0
  %486 = vmatpush1.bf16.msra.mxu0 %v483
  %487 = vmatprep.subr.bf16.mxu0 0
  %488 = vmatpush1.bf16.msra.mxu0 0
  %489 = vmatprep.subr.bf16.mxu0 0
  %490 = vmatpush1.bf16.msra.mxu0 0
  %491 = vmatprep.subr.bf16.mxu0 0
  %492 = vmatpush1.bf16.msra.mxu0 0
  %493 = vmatprep.subr.bf16.mxu0 0
  %494 = vmatpush1.bf16.msra.mxu0 0
  %495 = vmatprep.subr.bf16.mxu0 0
  %496 = vmatpush1.bf16.msra.mxu0 0
  %497 = vmatprep.subr.bf16.mxu0 0
  %498 = vmatpush1.bf16.msra.mxu0 0
  %499 = vmatprep.subr.bf16.mxu0 0
  %500 = vmatpush1.bf16.msra.mxu0 0
  %501 = vmatprep.subr.bf16.mxu0 0
  %502 = vmatpush1.bf16.msra.mxu0 0
  %503 = vmatprep.subr.bf16.mxu0 0
  %504 = vmatpush1.bf16.msra.mxu0 0
  %505 = vmatprep.subr.bf16.mxu0 0
  %506 = vmatpush1.bf16.msra.mxu0 0
  %507 = vmatprep.subr.bf16.mxu0 0
  %508 = vmatpush1.bf16.msra.mxu0 0
  %509 = vmatprep.subr.bf16.mxu0 0
  %510 = vmatpush1.bf16.msra.mxu0 0
  %511 = vmatprep.subr.bf16.mxu0 0
  %512 = vmatpush1.bf16.msra.mxu0 0
  %513 = vmatprep.subr.bf16.mxu0 0
  %514 = vmatpush1.bf16.msra.mxu0 0
  %515 = vmatprep.subr.bf16.mxu0 0
  %516 = vmatpush1.bf16.msra.mxu0 0
  %517 = vmatprep.mubr.bf16.mxu0 0
  %518 = vmatmul.mubr.bf16.gmra.mrb[0].mxu0 %v71
  %v519 = vpop.f32.mrb[0].mxu0
  %v520 = vadd.f32 0.0, %v519
  %v521 = vpop.f32.mrb[0].mxu0
  %v522 = vpop.f32.mrb[0].mxu0
  %v523 = vpop.f32.mrb[0].mxu0
  %524 = vdwg.mxu0
  %v525 = vld [vmem:[%s11] sm:$0x1]
  %v526 = vld [vmem:[%s12] sm:$0x1]
  %v527 = vsel %vm218, %v520, 0.0
  %v528 = vrot.slane %v527, 4
  %v529 = vadd.f32 %v527, %v528
  %v530 = vrot.slane %v529, 2
  %v531 = vadd.f32 %v529, %v530
  %v532 = vrot.slane %v531, 1
  %v533 = vadd.f32 %v531, %v532
  %v534 = vmul.f32 %v533, 0.125
  %v535 = vmul.f32 %v520, %v520
  %v536 = vsel %vm218, %v535, 0.0
  %v537 = vrot.slane %v536, 4
  %v538 = vadd.f32 %v536, %v537
  %v539 = vrot.slane %v538, 2
  %v540 = vadd.f32 %v538, %v539
  %v541 = vrot.slane %v540, 1
  %v542 = vadd.f32 %v540, %v541
  %v543 = vmul.f32 %v542, 0.125
  %v544 = vmul.f32 %v534, %v534
  %v545 = vsub.f32 %v543, %v544
  %v546 = vadd.f32 %v545, 1e-05
  %v547 = vrsqrt.pop %v546
  %v548 = vmul.f32 %v547, %v525
  %v549 = vmul.f32 %v534, %v548
  %v550 = vsub.f32 %v526, %v549
  %v551 = vlaneseq
  %v552 = vshrl.u32 %v551, 7
  %v553 = vsub.s32 0, %v552
  %v554 = vrot.slane %v474, %v553
  %v555 = vmul.f32 %v450, %v554
  %v557 = vlaneseq
  %v558 = vshrl.u32 %v557, 7
  %v559 = vsub.s32 0, %v558
  %v560 = vrot.slane %v476, %v559
  %v562 = vadd.f32 %v555, %v560
  %v563 = vlaneseq
  %v564 = vshrl.u32 %v563, 7
  %v565 = vsub.s32 0, %v564
  %v566 = vrot.slane %v548, %v565
  %v567 = vmul.f32 %v520, %v566
  %v569 = vlaneseq
  %v570 = vshrl.u32 %v569, 7
  %v571 = vsub.s32 0, %v570
  %v572 = vrot.slane %v550, %v571
  %v574 = vadd.f32 %v567, %v572
  %v575 = vadd.f32 %v562, %v574
  %v576 = vmax.f32 %v575, 0.0
  %577 = vst.msk [vmem:[%s13] sm:$0xff] %vm218, %v576
  // Predicated region
  $region54: #{forward.9} parent=0 // pred_check
    _
  $region55: #{forward.9} parent=0 // pred_check_branch
    %579 = sbr.rel (0) target = $region57
  $region56: #{forward.9} parent=0 // pred_region
    _
  $region57: #{forward.9} parent=0 // pred_fallthru
    _
  // Predicated region
  $region58: #{forward.9} parent=0 // pred_check
    _
  $region59: #{forward.9} parent=0 // pred_check_branch
    %581 = sbr.rel (0) target = $region61
  $region60: #{forward.9} parent=0 // pred_region
    _
  $region61: #{forward.9} parent=0 // pred_fallthru
    _

// kernel: forward.11
$region0: #{forward.11}
  #allocation0 [shape = 'u32[]', space=smem, size = 0x4, offset = 0x4, fixed_abs, tag = 'smem constant byte address 0x4 - core index']
  #allocation1 [shape = 'u32[144,128]{1,0:T(1,128)}', space=vmem, size = 0x12000, scoped, tag = 'internal scratch']
  %s0 = inlined_call_operand.vmem [shape: f32[2,2,64], index: 0, kind: input, shape index: {}]
  %s1 = inlined_call_operand.vmem [shape: bf16[64,64], index: 1, kind: input, shape index: {}]
  %s2 = inlined_call_operand.vmem [shape: f32[1,64], index: 2, kind: input, shape index: {}]
  %s3 = inlined_call_operand.vmem [shape: bf16[64,32], index: 3, kind: input, shape index: {}]
  %s4 = inlined_call_operand.vmem [shape: f32[1,32], index: 4, kind: input, shape index: {}]
  %s5 = inlined_call_operand.hbm [shape: f32[2,32], index: 5, kind: output, shape index: {}]
  %s6 = sld [smem:[#allocation0]]
  $region30: #{forward.11} parent=0
    _
  %s8 = ssub.s32 1, %s6
  %s9 = scalar_select 0, %s8, %s6
  $region1: #{forward.11} parent=0
    #allocation2 [shape = 'u8[1024]{0}', space=vmem, size = 0x400, scoped, tag = 'output window, operand 0, single buffered']
    #allocation3 [shape = 's32[1]{0}', space=sflag, size = 0x4, scoped, tag = 'scoped memory for forward.11']
    %10 = vsyncpa [#allocation3], 0
    // Predicated region
    $region2: #{forward.11} parent=1 // pred_check
      _
    $region3: #{forward.11} parent=1 // pred_check_branch
      %12 = sbr.rel (0) target = $region5
    $region4: #{forward.11} parent=1 // pred_region
      _
    $region5: #{forward.11} parent=1 // pred_fallthru
      _
    // Predicated region
    $region6: #{forward.11} parent=1 // pred_check
      _
    $region7: #{forward.11} parent=1 // pred_check_branch
      %14 = sbr.rel (0) target = $region9
    $region8: #{forward.11} parent=1 // pred_region
      _
    $region9: #{forward.11} parent=1 // pred_fallthru
      _
    // Predicated region
    $region10: #{forward.11} parent=1 // pred_check
      _
    $region11: #{forward.11} parent=1 // pred_check_branch
      %16 = sbr.rel (0) target = $region13
    $region12: #{forward.11} parent=1 // pred_region
      _
    $region13: #{forward.11} parent=1 // pred_fallthru
      _
    // Predicated region
    $region14: #{forward.11} parent=1 // pred_check
      _
    $region15: #{forward.11} parent=1 // pred_check_branch
      %18 = sbr.rel (0) target = $region17
    $region16: #{forward.11} parent=1 // pred_region
      _
    $region17: #{forward.11} parent=1 // pred_fallthru
      _
    // Predicated region
    $region18: #{forward.11} parent=1 // pred_check
      _
    $region19: #{forward.11} parent=1 // pred_check_branch
      %20 = sbr.rel (0) target = $region21
    $region20: #{forward.11} parent=1 // pred_region
      _
    $region21: #{forward.11} parent=1 // pred_fallthru
      _
    %v22 = vld [vmem:[%s0] sm:$0x3]
    %v23 = vld [vmem:[%s0 + $0x2] sm:$0x3]
    %vm24 = vcmask 517120
    %v25 = vsel %vm24, %v22, 0.0
    %v26 = vrot.slane %v25, 4
    %v27 = vadd.f32 %v25, %v26
    %v28 = vrot.slane %v27, 2
    %v29 = vadd.f32 %v27, %v28
    %v30 = vrot.slane %v29, 1
    %v31 = vadd.f32 %v29, %v30
    %v32 = vsel %vm24, %v23, 0.0
    %v33 = vrot.slane %v32, 4
    %v34 = vadd.f32 %v32, %v33
    %v35 = vrot.slane %v34, 2
    %v36 = vadd.f32 %v34, %v35
    %v37 = vrot.slane %v36, 1
    %v38 = vadd.f32 %v36, %v37
    %v39 = vmul.f32 %v31, 0.5
    %v40 = vmul.f32 %v38, 0.5
    %v41 = vpack.c.bf16 %v39, %v39
    %v42 = vpack.c.bf16 %v40, %v40
    %v43 = vld [vmem:[%s1] sm:$0xf]
    %v44 = vld [vmem:[%s1 + $0x4] sm:$0xf]
    %v45 = vld [vmem:[%s1 + $0x8] sm:$0xf]
    %v46 = vld [vmem:[%s1 + $0xc] sm:$0xf]
    %v47 = vld [vmem:[%s1 + $0x10] sm:$0xf]
    %v48 = vld [vmem:[%s1 + $0x14] sm:$0xf]
    %v49 = vld [vmem:[%s1 + $0x18] sm:$0xf]
    %v50 = vld [vmem:[%s1 + $0x1c] sm:$0xf]
    %v51 = vld [vmem:[%s2] sm:$0x1]
    %v53 = vlaneseq
    %v54 = vshrl.u32 %v53, 7
    %v55 = vsub.s32 0, %v54
    %v56 = vrot.slane %v51, %v55
    %v60 = vunpack.c.l.b16 %v41
    %v61 = vunpack.c.l.b16 %v42
    %vm62 = vcmask 1041409
    %v63 = vsel %vm62, %v61, %v60
    %v64 = vpack.c.b16 %v63, %v63
    %v73 = vunpack.c.l.b16 %v43
    %v74 = vunpack.c.l.b16 %v44
    %v75 = vunpack.c.l.b16 %v45
    %v76 = vunpack.c.l.b16 %v46
    %v77 = vunpack.c.l.b16 %v47
    %v78 = vunpack.c.l.b16 %v48
    %v79 = vunpack.c.l.b16 %v49
    %v80 = vunpack.c.l.b16 %v50
    %v81 = vpack.c.b16 %v74, %v73
    %v82 = vpack.c.b16 %v76, %v75
    %v83 = vpack.c.b16 %v78, %v77
    %v84 = vpack.c.b16 %v80, %v79
    %vm89 = vcmask 523264
    %v91 = vsel %vm89, %v64, 0
    %93 = vmatprep.subr.bf16.mxu0 0
    %94 = vmatpush1.bf16.msra.mxu0 %v81
    %95 = vmatprep.subr.bf16.mxu0 0
    %96 = vmatpush1.bf16.msra.mxu0 %v82
    %97 = vmatprep.subr.bf16.mxu0 0
    %98 = vmatpush1.bf16.msra.mxu0 %v83
    %99 = vmatprep.subr.bf16.mxu0 0
    %100 = vmatpush1.bf16.msra.mxu0 %v84
    %101 = vmatprep.subr.bf16.mxu0 0
    %102 = vmatpush1.bf16.msra.mxu0 0
    %103 = vmatprep.subr.bf16.mxu0 0
    %104 = vmatpush1.bf16.msra.mxu0 0
    %105 = vmatprep.subr.bf16.mxu0 0
    %106 = vmatpush1.bf16.msra.mxu0 0
    %107 = vmatprep.subr.bf16.mxu0 0
    %108 = vmatpush1.bf16.msra.mxu0 0
    %109 = vmatprep.subr.bf16.mxu0 0
    %110 = vmatpush1.bf16.msra.mxu0 0
    %111 = vmatprep.subr.bf16.mxu0 0
    %112 = vmatpush1.bf16.msra.mxu0 0
    %113 = vmatprep.subr.bf16.mxu0 0
    %114 = vmatpush1.bf16.msra.mxu0 0
    %115 = vmatprep.subr.bf16.mxu0 0
    %116 = vmatpush1.bf16.msra.mxu0 0
    %117 = vmatprep.subr.bf16.mxu0 0
    %118 = vmatpush1.bf16.msra.mxu0 0
    %119 = vmatprep.subr.bf16.mxu0 0
    %120 = vmatpush1.bf16.msra.mxu0 0
    %121 = vmatprep.subr.bf16.mxu0 0
    %122 = vmatpush1.bf16.msra.mxu0 0
    %123 = vmatprep.subr.bf16.mxu0 0
    %124 = vmatpush1.bf16.msra.mxu0 0
    %125 = vmatprep.mubr.bf16.mxu0 0
    %126 = vmatmul.mubr.bf16.gmra.mrb[0].mxu0 %v91
    %v127 = vpop.f32.mrb[0].mxu0
    %v128 = vadd.f32 %v56, %v127
    %v129 = vpop.f32.mrb[0].mxu0
    %v130 = vpop.f32.mrb[0].mxu0
    %v131 = vpop.f32.mrb[0].mxu0
    %132 = vdwg.mxu0
    %v133 = vmax.f32 %v128, 0.0
    %v134 = vpack.c.bf16 %v133, %v133
    %v135 = vld [vmem:[%s3] sm:$0xf]
    %v136 = vld [vmem:[%s3 + $0x4] sm:$0xf]
    %v137 = vld [vmem:[%s3 + $0x8] sm:$0xf]
    %v138 = vld [vmem:[%s3 + $0xc] sm:$0xf]
    %v139 = vld [vmem:[%s3 + $0x10] sm:$0xf]
    %v140 = vld [vmem:[%s3 + $0x14] sm:$0xf]
    %v141 = vld [vmem:[%s3 + $0x18] sm:$0xf]
    %v142 = vld [vmem:[%s3 + $0x1c] sm:$0xf]
    %v143 = vld [vmem:[%s4] sm:$0x1]
    %v145 = vlaneseq
    %v146 = vshrl.u32 %v145, 7
    %v147 = vsub.s32 0, %v146
    %v148 = vrot.slane %v143, %v147
    %v158 = vunpack.c.l.b16 %v135
    %v159 = vunpack.c.l.b16 %v136
    %v160 = vunpack.c.l.b16 %v137
    %v161 = vunpack.c.l.b16 %v138
    %v162 = vunpack.c.l.b16 %v139
    %v163 = vunpack.c.l.b16 %v140
    %v164 = vunpack.c.l.b16 %v141
    %v165 = vunpack.c.l.b16 %v142
    %v166 = vpack.c.b16 %v159, %v158
    %v167 = vpack.c.b16 %v161, %v160
    %v168 = vpack.c.b16 %v163, %v162
    %v169 = vpack.c.b16 %v165, %v164
    %v175 = vsel %vm89, %v134, 0
    %177 = vmatprep.subr.bf16.mxu0 0
    %178 = vmatpush1.bf16.msra.mxu0 %v166
    %179 = vmatprep.subr.bf16.mxu0 0
    %180 = vmatpush1.bf16.msra.mxu0 %v167
    %181 = vmatprep.subr.bf16.mxu0 0
    %182 = vmatpush1.bf16.msra.mxu0 %v168
    %183 = vmatprep.subr.bf16.mxu0 0
    %184 = vmatpush1.bf16.msra.mxu0 %v169
    %185 = vmatprep.subr.bf16.mxu0 0
    %186 = vmatpush1.bf16.msra.mxu0 0
    %187 = vmatprep.subr.bf16.mxu0 0
    %188 = vmatpush1.bf16.msra.mxu0 0
    %189 = vmatprep.subr.bf16.mxu0 0
    %190 = vmatpush1.bf16.msra.mxu0 0
    %191 = vmatprep.subr.bf16.mxu0 0
    %192 = vmatpush1.bf16.msra.mxu0 0
    %193 = vmatprep.subr.bf16.mxu0 0
    %194 = vmatpush1.bf16.msra.mxu0 0
    %195 = vmatprep.subr.bf16.mxu0 0
    %196 = vmatpush1.bf16.msra.mxu0 0
    %197 = vmatprep.subr.bf16.mxu0 0
    %198 = vmatpush1.bf16.msra.mxu0 0
    %199 = vmatprep.subr.bf16.mxu0 0
    %200 = vmatpush1.bf16.msra.mxu0 0
    %201 = vmatprep.subr.bf16.mxu0 0
    %202 = vmatpush1.bf16.msra.mxu0 0
    %203 = vmatprep.subr.bf16.mxu0 0
    %204 = vmatpush1.bf16.msra.mxu0 0
    %205 = vmatprep.subr.bf16.mxu0 0
    %206 = vmatpush1.bf16.msra.mxu0 0
    %207 = vmatprep.subr.bf16.mxu0 0
    %208 = vmatpush1.bf16.msra.mxu0 0
    %209 = vmatprep.mubr.bf16.mxu0 0
    %210 = vmatmul.mubr.bf16.gmra.mrb[0].mxu0 %v175
    %v211 = vpop.f32.mrb[0].mxu0
    %v212 = vadd.f32 %v148, %v211
    %v213 = vpop.f32.mrb[0].mxu0
    %v214 = vpop.f32.mrb[0].mxu0
    %v215 = vpop.f32.mrb[0].mxu0
    %216 = vdwg.mxu0
    %v217 = vmul.f32 %v212, %v212
    %vm218 = vcmask 254976
    %v219 = vsel %vm218, %v217, 0.0
    %220 = vadd.xlane.f32.xlu0 %v219
    %v221 = vpop.xlane.xlu0 %220
    %v222 = vmax.f32 %v221, 1e-24
    %v223 = vrsqrt.pop %v222
    %v224 = vmul.f32 %v212, %v223
    %225 = vst.msk [vmem:[#allocation2] sm:$0x3] %vm218, %v224
    // Predicated region
    $region22: #{forward.11} parent=1 // pred_check
      _
    $region23: #{forward.11} parent=1 // pred_check_branch
      %227 = sbr.rel (0) target = $region25
    $region24: #{forward.11} parent=1 // pred_region
      %s229 = ssub.s32 32, 32
      %230 = vsyncadd [#allocation3], %s229
      %s232 = sshll.u32 [#allocation2], 4
      %s233 = int_to_ptr.vmem [resolvable:$true] %s232
      %235 = dma.vmem_to_hbm [thread:$0]  %s233, 32, %s5, [#allocation3]
    $region25: #{forward.11} parent=1 // pred_fallthru
      _
    // Predicated region
    $region26: #{forward.11} parent=1 // pred_check
      _
    $region27: #{forward.11} parent=1 // pred_check_branch
      %237 = sbr.rel (0) target = $region29
    $region28: #{forward.11} parent=1 // pred_region
      %238 = dma.done [#allocation3], 32
    $region29: #{forward.11} parent=1 // pred_fallthru
      _
    %239 = vsyncpa [#allocation3], 1

// kernel: forward.10
$region0: #{forward.10}
  #allocation0 [shape = 'u32[]', space=smem, size = 0x4, offset = 0x4, fixed_abs, tag = 'smem constant byte address 0x4 - core index']
  #allocation1 [shape = 'u32[144,128]{1,0:T(1,128)}', space=vmem, size = 0x12000, scoped, tag = 'internal scratch']
  #allocation2 [shape = 'f32[20,64]{1,0:T(8,128)}', space=vmem, size = 0x3000, scoped, tag = 'scratch operand']
  %s0 = inlined_call_operand.vmem [shape: f32[4,32], index: 0, kind: input, shape index: {}]
  %s1 = inlined_call_operand.vmem [shape: f32[12,32], index: 1, kind: input, shape index: {}]
  %s2 = inlined_call_operand.vmem [shape: f32[4,1], index: 2, kind: input, shape index: {}]
  %s3 = inlined_call_operand.vmem [shape: f32[4,1], index: 3, kind: input, shape index: {}]
  %s4 = inlined_call_operand.vmem [shape: bf16[3,32,64], index: 4, kind: input, shape index: {}]
  %s5 = inlined_call_operand.vmem [shape: f32[1,64], index: 5, kind: input, shape index: {}]
  %s6 = inlined_call_operand.vmem [shape: f32[1,64], index: 6, kind: input, shape index: {}]
  %s7 = inlined_call_operand.vmem [shape: bf16[3,64,64], index: 7, kind: input, shape index: {}]
  %s8 = inlined_call_operand.vmem [shape: f32[1,64], index: 8, kind: input, shape index: {}]
  %s9 = inlined_call_operand.vmem [shape: f32[1,64], index: 9, kind: input, shape index: {}]
  %s10 = inlined_call_operand.vmem [shape: bf16[32,64], index: 10, kind: input, shape index: {}]
  %s11 = inlined_call_operand.vmem [shape: f32[1,64], index: 11, kind: input, shape index: {}]
  %s12 = inlined_call_operand.vmem [shape: f32[1,64], index: 12, kind: input, shape index: {}]
  %s13 = inlined_call_operand.vmem [shape: f32[4,64], index: 13, kind: output, shape index: {}]
  %s14 = sld [smem:[#allocation0]]
  $region62: #{forward.10} parent=0
    _
  %s16 = ssub.s32 1, %s14
  %s17 = scalar_select 0, %s16, %s14
  // Predicated region
  $region2: #{forward.10} parent=0 // pred_check
    _
  $region3: #{forward.10} parent=0 // pred_check_branch
    %19 = sbr.rel (0) target = $region5
  $region4: #{forward.10} parent=0 // pred_region
    _
  $region5: #{forward.10} parent=0 // pred_fallthru
    _
  // Predicated region
  $region6: #{forward.10} parent=0 // pred_check
    _
  $region7: #{forward.10} parent=0 // pred_check_branch
    %21 = sbr.rel (0) target = $region9
  $region8: #{forward.10} parent=0 // pred_region
    _
  $region9: #{forward.10} parent=0 // pred_fallthru
    _
  // Predicated region
  $region10: #{forward.10} parent=0 // pred_check
    _
  $region11: #{forward.10} parent=0 // pred_check_branch
    %23 = sbr.rel (0) target = $region13
  $region12: #{forward.10} parent=0 // pred_region
    _
  $region13: #{forward.10} parent=0 // pred_fallthru
    _
  // Predicated region
  $region14: #{forward.10} parent=0 // pred_check
    _
  $region15: #{forward.10} parent=0 // pred_check_branch
    %25 = sbr.rel (0) target = $region17
  $region16: #{forward.10} parent=0 // pred_region
    _
  $region17: #{forward.10} parent=0 // pred_fallthru
    _
  // Predicated region
  $region18: #{forward.10} parent=0 // pred_check
    _
  $region19: #{forward.10} parent=0 // pred_check_branch
    %27 = sbr.rel (0) target = $region21
  $region20: #{forward.10} parent=0 // pred_region
    _
  $region21: #{forward.10} parent=0 // pred_fallthru
    _
  // Predicated region
  $region22: #{forward.10} parent=0 // pred_check
    _
  $region23: #{forward.10} parent=0 // pred_check_branch
    %29 = sbr.rel (0) target = $region25
  $region24: #{forward.10} parent=0 // pred_region
    _
  $region25: #{forward.10} parent=0 // pred_fallthru
    _
  // Predicated region
  $region26: #{forward.10} parent=0 // pred_check
    _
  $region27: #{forward.10} parent=0 // pred_check_branch
    %31 = sbr.rel (0) target = $region29
  $region28: #{forward.10} parent=0 // pred_region
    _
  $region29: #{forward.10} parent=0 // pred_fallthru
    _
  // Predicated region
  $region30: #{forward.10} parent=0 // pred_check
    _
  $region31: #{forward.10} parent=0 // pred_check_branch
    %33 = sbr.rel (0) target = $region33
  $region32: #{forward.10} parent=0 // pred_region
    _
  $region33: #{forward.10} parent=0 // pred_fallthru
    _
  // Predicated region
  $region34: #{forward.10} parent=0 // pred_check
    _
  $region35: #{forward.10} parent=0 // pred_check_branch
    %35 = sbr.rel (0) target = $region37
  $region36: #{forward.10} parent=0 // pred_region
    _
  $region37: #{forward.10} parent=0 // pred_fallthru
    _
  // Predicated region
  $region38: #{forward.10} parent=0 // pred_check
    _
  $region39: #{forward.10} parent=0 // pred_check_branch
    %37 = sbr.rel (0) target = $region41
  $region40: #{forward.10} parent=0 // pred_region
    _
  $region41: #{forward.10} parent=0 // pred_fallthru
    _
  // Predicated region
  $region42: #{forward.10} parent=0 // pred_check
    _
  $region43: #{forward.10} parent=0 // pred_check_branch
    %39 = sbr.rel (0) target = $region45
  $region44: #{forward.10} parent=0 // pred_region
    _
  $region45: #{forward.10} parent=0 // pred_fallthru
    _
  // Predicated region
  $region46: #{forward.10} parent=0 // pred_check
    _
  $region47: #{forward.10} parent=0 // pred_check_branch
    %41 = sbr.rel (0) target = $region49
  $region48: #{forward.10} parent=0 // pred_region
    _
  $region49: #{forward.10} parent=0 // pred_fallthru
    _
  // Predicated region
  $region50: #{forward.10} parent=0 // pred_check
    _
  $region51: #{forward.10} parent=0 // pred_check_branch
    %43 = sbr.rel (0) target = $region53
  $region52: #{forward.10} parent=0 // pred_region
    _
  $region53: #{forward.10} parent=0 // pred_fallthru
    _
  %v45 = vld [vmem:[%s2] sm:$0xf]
  %v46 = vld [vmem:[%s3] sm:$0xf]
  %v47 = vld [vmem:[%s0] sm:$0xf]
  %v48 = vld [vmem:[%s1 + $0x8] sm:$0xf]
  %v49 = vld [vmem:[%s1 + $0x7] sm:$0xf]
  %51 = vset.pattern.permute.xlu0 0
  %52 = vperm.xlu0 %51, %v45
  %v53 = vpop.permute.xlu0 %52
  %v55 = vmul.f32 %v49, %v53
  %v56 = vpack.c.bf16 %v55, %v55
  %v57 = vld [vmem:[%s4] sm:$0xf]
  %v58 = vld [vmem:[%s4 + $0x4] sm:$0xf]
  %v59 = vld [vmem:[%s4 + $0x8] sm:$0xf]
  %v60 = vld [vmem:[%s4 + $0xc] sm:$0xf]
  %v61 = vpack.c.bf16 %v47, %v47
  %s62 = scalar_lea.vmem %s4, 16
  %v63 = vld [vmem:[%s62] sm:$0xf]
  %v64 = vld [vmem:[%s62 + $0x4] sm:$0xf]
  %v65 = vld [vmem:[%s62 + $0x8] sm:$0xf]
  %v66 = vld [vmem:[%s62 + $0xc] sm:$0xf]
  %v71 = vunpack.c.l.b16 %v63
  %v72 = vunpack.c.l.b16 %v64
  %v73 = vunpack.c.l.b16 %v65
  %v74 = vunpack.c.l.b16 %v66
  %v75 = vpack.c.b16 %v72, %v71
  %v76 = vpack.c.b16 %v74, %v73
  %vm79 = vcmask 261120
  %v81 = vsel %vm79, %v61, 0
  %83 = vmatprep.subr.bf16.mxu0 0
  %84 = vmatpush1.bf16.msra.mxu0 %v75
  %85 = vmatprep.subr.bf16.mxu0 0
  %86 = vmatpush1.bf16.msra.mxu0 %v76
  %87 = vmatprep.subr.bf16.mxu0 0
  %88 = vmatpush1.bf16.msra.mxu0 0
  %89 = vmatprep.subr.bf16.mxu0 0
  %90 = vmatpush1.bf16.msra.mxu0 0
  %91 = vmatprep.subr.bf16.mxu0 0
  %92 = vmatpush1.bf16.msra.mxu0 0
  %93 = vmatprep.subr.bf16.mxu0 0
  %94 = vmatpush1.bf16.msra.mxu0 0
  %95 = vmatprep.subr.bf16.mxu0 0
  %96 = vmatpush1.bf16.msra.mxu0 0
  %97 = vmatprep.subr.bf16.mxu0 0
  %98 = vmatpush1.bf16.msra.mxu0 0
  %99 = vmatprep.subr.bf16.mxu0 0
  %100 = vmatpush1.bf16.msra.mxu0 0
  %101 = vmatprep.subr.bf16.mxu0 0
  %102 = vmatpush1.bf16.msra.mxu0 0
  %103 = vmatprep.subr.bf16.mxu0 0
  %104 = vmatpush1.bf16.msra.mxu0 0
  %105 = vmatprep.subr.bf16.mxu0 0
  %106 = vmatpush1.bf16.msra.mxu0 0
  %107 = vmatprep.subr.bf16.mxu0 0
  %108 = vmatpush1.bf16.msra.mxu0 0
  %109 = vmatprep.subr.bf16.mxu0 0
  %110 = vmatpush1.bf16.msra.mxu0 0
  %111 = vmatprep.subr.bf16.mxu0 0
  %112 = vmatpush1.bf16.msra.mxu0 0
  %113 = vmatprep.subr.bf16.mxu0 0
  %114 = vmatpush1.bf16.msra.mxu0 0
  %115 = vmatprep.mubr.bf16.mxu0 0
  %116 = vmatmul.mubr.bf16.gmra.mrb[0].mxu0 %v81
  %v117 = vpop.f32.mrb[0].mxu0
  %v118 = vadd.f32 0.0, %v117
  %v119 = vpop.f32.mrb[0].mxu0
  %v120 = vpop.f32.mrb[0].mxu0
  %v121 = vpop.f32.mrb[0].mxu0
  %122 = vdwg.mxu0
  %v127 = vunpack.c.l.b16 %v57
  %v128 = vunpack.c.l.b16 %v58
  %v129 = vunpack.c.l.b16 %v59
  %v130 = vunpack.c.l.b16 %v60
  %v131 = vpack.c.b16 %v128, %v127
  %v132 = vpack.c.b16 %v130, %v129
  %v136 = vsel %vm79, %v56, 0
  %138 = vmatprep.subr.bf16.mxu0 0
  %139 = vmatpush1.bf16.msra.mxu0 %v131
  %140 = vmatprep.subr.bf16.mxu0 0
  %141 = vmatpush1.bf16.msra.mxu0 %v132
  %142 = vmatprep.subr.bf16.mxu0 0
  %143 = vmatpush1.bf16.msra.mxu0 0
  %144 = vmatprep.subr.bf16.mxu0 0
  %145 = vmatpush1.bf16.msra.mxu0 0
  %146 = vmatprep.subr.bf16.mxu0 0
  %147 = vmatpush1.bf16.msra.mxu0 0
  %148 = vmatprep.subr.bf16.mxu0 0
  %149 = vmatpush1.bf16.msra.mxu0 0
  %150 = vmatprep.subr.bf16.mxu0 0
  %151 = vmatpush1.bf16.msra.mxu0 0
  %152 = vmatprep.subr.bf16.mxu0 0
  %153 = vmatpush1.bf16.msra.mxu0 0
  %154 = vmatprep.subr.bf16.mxu0 0
  %155 = vmatpush1.bf16.msra.mxu0 0
  %156 = vmatprep.subr.bf16.mxu0 0
  %157 = vmatpush1.bf16.msra.mxu0 0
  %158 = vmatprep.subr.bf16.mxu0 0
  %159 = vmatpush1.bf16.msra.mxu0 0
  %160 = vmatprep.subr.bf16.mxu0 0
  %161 = vmatpush1.bf16.msra.mxu0 0
  %162 = vmatprep.subr.bf16.mxu0 0
  %163 = vmatpush1.bf16.msra.mxu0 0
  %164 = vmatprep.subr.bf16.mxu0 0
  %165 = vmatpush1.bf16.msra.mxu0 0
  %166 = vmatprep.subr.bf16.mxu0 0
  %167 = vmatpush1.bf16.msra.mxu0 0
  %168 = vmatprep.subr.bf16.mxu0 0
  %169 = vmatpush1.bf16.msra.mxu0 0
  %170 = vmatprep.mubr.bf16.mxu0 0
  %171 = vmatmul.mubr.bf16.gmra.mrb[0].mxu0 %v136
  %v172 = vpop.f32.mrb[0].mxu0
  %v173 = vadd.f32 %v118, %v172
  %v174 = vpop.f32.mrb[0].mxu0
  %v175 = vpop.f32.mrb[0].mxu0
  %v176 = vpop.f32.mrb[0].mxu0
  %177 = vdwg.mxu0
  %v178 = vpack.c.bf16 %v48, %v48
  %s179 = scalar_lea.vmem %s4, 32
  %v180 = vld [vmem:[%s179] sm:$0xf]
  %v181 = vld [vmem:[%s179 + $0x4] sm:$0xf]
  %v182 = vld [vmem:[%s179 + $0x8] sm:$0xf]
  %v183 = vld [vmem:[%s179 + $0xc] sm:$0xf]
  %v188 = vunpack.c.l.b16 %v180
  %v189 = vunpack.c.l.b16 %v181
  %v190 = vunpack.c.l.b16 %v182
  %v191 = vunpack.c.l.b16 %v183
  %v192 = vpack.c.b16 %v189, %v188
  %v193 = vpack.c.b16 %v191, %v190
  %v197 = vsel %vm79, %v178, 0
  %199 = vmatprep.subr.bf16.mxu0 0
  %200 = vmatpush1.bf16.msra.mxu0 %v192
  %201 = vmatprep.subr.bf16.mxu0 0
  %202 = vmatpush1.bf16.msra.mxu0 %v193
  %203 = vmatprep.subr.bf16.mxu0 0
  %204 = vmatpush1.bf16.msra.mxu0 0
  %205 = vmatprep.subr.bf16.mxu0 0
  %206 = vmatpush1.bf16.msra.mxu0 0
  %207 = vmatprep.subr.bf16.mxu0 0
  %208 = vmatpush1.bf16.msra.mxu0 0
  %209 = vmatprep.subr.bf16.mxu0 0
  %210 = vmatpush1.bf16.msra.mxu0 0
  %211 = vmatprep.subr.bf16.mxu0 0
  %212 = vmatpush1.bf16.msra.mxu0 0
  %213 = vmatprep.subr.bf16.mxu0 0
  %214 = vmatpush1.bf16.msra.mxu0 0
  %215 = vmatprep.subr.bf16.mxu0 0
  %216 = vmatpush1.bf16.msra.mxu0 0
  %217 = vmatprep.subr.bf16.mxu0 0
  %218 = vmatpush1.bf16.msra.mxu0 0
  %219 = vmatprep.subr.bf16.mxu0 0
  %220 = vmatpush1.bf16.msra.mxu0 0
  %221 = vmatprep.subr.bf16.mxu0 0
  %222 = vmatpush1.bf16.msra.mxu0 0
  %223 = vmatprep.subr.bf16.mxu0 0
  %224 = vmatpush1.bf16.msra.mxu0 0
  %225 = vmatprep.subr.bf16.mxu0 0
  %226 = vmatpush1.bf16.msra.mxu0 0
  %227 = vmatprep.subr.bf16.mxu0 0
  %228 = vmatpush1.bf16.msra.mxu0 0
  %229 = vmatprep.subr.bf16.mxu0 0
  %230 = vmatpush1.bf16.msra.mxu0 0
  %231 = vmatprep.mubr.bf16.mxu0 0
  %232 = vmatmul.mubr.bf16.gmra.mrb[0].mxu0 %v197
  %v233 = vpop.f32.mrb[0].mxu0
  %v234 = vadd.f32 0.0, %v233
  %v235 = vpop.f32.mrb[0].mxu0
  %v236 = vpop.f32.mrb[0].mxu0
  %v237 = vpop.f32.mrb[0].mxu0
  %238 = vdwg.mxu0
  %v239 = vadd.f32 %v173, %v234
  %v240 = vld [vmem:[%s5] sm:$0x1]
  %v241 = vld [vmem:[%s6] sm:$0x1]
  %vm242 = vcmask 519168
  %v243 = vsel %vm242, %v239, 0.0
  %v244 = vrot.slane %v243, 4
  %v245 = vadd.f32 %v243, %v244
  %v246 = vrot.slane %v245, 2
  %v247 = vadd.f32 %v245, %v246
  %v248 = vrot.slane %v247, 1
  %v249 = vadd.f32 %v247, %v248
  %v250 = vmul.f32 %v249, 0.25
  %v251 = vmul.f32 %v239, %v239
  %v252 = vsel %vm242, %v251, 0.0
  %v253 = vrot.slane %v252, 4
  %v254 = vadd.f32 %v252, %v253
  %v255 = vrot.slane %v254, 2
  %v256 = vadd.f32 %v254, %v255
  %v257 = vrot.slane %v256, 1
  %v258 = vadd.f32 %v256, %v257
  %v259 = vmul.f32 %v258, 0.25
  %v260 = vmul.f32 %v250, %v250
  %v261 = vsub.f32 %v259, %v260
  %v262 = vadd.f32 %v261, 1e-05
  %v263 = vrsqrt.pop %v262
  %v264 = vmul.f32 %v263, %v240
  %v265 = vmul.f32 %v250, %v264
  %v266 = vsub.f32 %v241, %v265
  %v267 = vlaneseq
  %v268 = vshrl.u32 %v267, 7
  %v269 = vsub.s32 0, %v268
  %v270 = vrot.slane %v264, %v269
  %v271 = vmul.f32 %v239, %v270
  %v273 = vlaneseq
  %v274 = vshrl.u32 %v273, 7
  %v275 = vsub.s32 0, %v274
  %v276 = vrot.slane %v266, %v275
  %v278 = vadd.f32 %v271, %v276
  %v279 = vmax.f32 %v278, 0.0
  %vm280 = vcmask 523264
  %281 = vst.msk [vmem:[#allocation2] sm:$0xff] %vm280, 0.0
  %282 = vst.msk [vmem:[#allocation2 + $0xc] sm:$0xff] %vm280, 0.0
  %283 = vst.msk [vmem:[#allocation2 + $0x8] sm:$0xf] %vm242, %v279
  %v284 = vld [vmem:[#allocation2 + $0x7] sm:$0xf]
  %v285 = vmul.f32 %v284, %v53
  %v286 = vld [vmem:[#allocation2 + $0x9] sm:$0xf]
  %288 = vset.pattern.permute.xlu0 0
  %289 = vperm.xlu0 %288, %v46
  %v290 = vpop.permute.xlu0 %289
  %v292 = vmul.f32 %v286, %v290
  %v293 = vpack.c.bf16 %v285, %v285
  %v294 = vld [vmem:[%s7] sm:$0xf]
  %v295 = vld [vmem:[%s7 + $0x4] sm:$0xf]
  %v296 = vld [vmem:[%s7 + $0x8] sm:$0xf]
  %v297 = vld [vmem:[%s7 + $0xc] sm:$0xf]
  %v298 = vld [vmem:[%s7 + $0x10] sm:$0xf]
  %v299 = vld [vmem:[%s7 + $0x14] sm:$0xf]
  %v300 = vld [vmem:[%s7 + $0x18] sm:$0xf]
  %v301 = vld [vmem:[%s7 + $0x1c] sm:$0xf]
  %v302 = vpack.c.bf16 %v279, %v279
  %s303 = scalar_lea.vmem %s7, 32
  %v304 = vld [vmem:[%s303] sm:$0xf]
  %v305 = vld [vmem:[%s303 + $0x4] sm:$0xf]
  %v306 = vld [vmem:[%s303 + $0x8] sm:$0xf]
  %v307 = vld [vmem:[%s303 + $0xc] sm:$0xf]
  %v308 = vld [vmem:[%s303 + $0x10] sm:$0xf]
  %v309 = vld [vmem:[%s303 + $0x14] sm:$0xf]
  %v310 = vld [vmem:[%s303 + $0x18] sm:$0xf]
  %v311 = vld [vmem:[%s303 + $0x1c] sm:$0xf]
  %v320 = vunpack.c.l.b16 %v304
  %v321 = vunpack.c.l.b16 %v305
  %v322 = vunpack.c.l.b16 %v306
  %v323 = vunpack.c.l.b16 %v307
  %v324 = vunpack.c.l.b16 %v308
  %v325 = vunpack.c.l.b16 %v309
  %v326 = vunpack.c.l.b16 %v310
  %v327 = vunpack.c.l.b16 %v311
  %v328 = vpack.c.b16 %v321, %v320
  %v329 = vpack.c.b16 %v323, %v322
  %v330 = vpack.c.b16 %v325, %v324
  %v331 = vpack.c.b16 %v327, %v326
  %v337 = vsel %vm280, %v302, 0
  %339 = vmatprep.subr.bf16.mxu0 0
  %340 = vmatpush1.bf16.msra.mxu0 %v328
  %341 = vmatprep.subr.bf16.mxu0 0
  %342 = vmatpush1.bf16.msra.mxu0 %v329
  %343 = vmatprep.subr.bf16.mxu0 0
  %344 = vmatpush1.bf16.msra.mxu0 %v330
  %345 = vmatprep.subr.bf16.mxu0 0
  %346 = vmatpush1.bf16.msra.mxu0 %v331
  %347 = vmatprep.subr.bf16.mxu0 0
  %348 = vmatpush1.bf16.msra.mxu0 0
  %349 = vmatprep.subr.bf16.mxu0 0
  %350 = vmatpush1.bf16.msra.mxu0 0
  %351 = vmatprep.subr.bf16.mxu0 0
  %352 = vmatpush1.bf16.msra.mxu0 0
  %353 = vmatprep.subr.bf16.mxu0 0
  %354 = vmatpush1.bf16.msra.mxu0 0
  %355 = vmatprep.subr.bf16.mxu0 0
  %356 = vmatpush1.bf16.msra.mxu0 0
  %357 = vmatprep.subr.bf16.mxu0 0
  %358 = vmatpush1.bf16.msra.mxu0 0
  %359 = vmatprep.subr.bf16.mxu0 0
  %360 = vmatpush1.bf16.msra.mxu0 0
  %361 = vmatprep.subr.bf16.mxu0 0
  %362 = vmatpush1.bf16.msra.mxu0 0
  %363 = vmatprep.subr.bf16.mxu0 0
  %364 = vmatpush1.bf16.msra.mxu0 0
  %365 = vmatprep.subr.bf16.mxu0 0
  %366 = vmatpush1.bf16.msra.mxu0 0
  %367 = vmatprep.subr.bf16.mxu0 0
  %368 = vmatpush1.bf16.msra.mxu0 0
  %369 = vmatprep.subr.bf16.mxu0 0
  %370 = vmatpush1.bf16.msra.mxu0 0
  %371 = vmatprep.mubr.bf16.mxu0 0
  %372 = vmatmul.mubr.bf16.gmra.mrb[0].mxu0 %v337
  %v373 = vpop.f32.mrb[0].mxu0
  %v374 = vadd.f32 0.0, %v373
  %v375 = vpop.f32.mrb[0].mxu0
  %v376 = vpop.f32.mrb[0].mxu0
  %v377 = vpop.f32.mrb[0].mxu0
  %378 = vdwg.mxu0
  %v387 = vunpack.c.l.b16 %v294
  %v388 = vunpack.c.l.b16 %v295
  %v389 = vunpack.c.l.b16 %v296
  %v390 = vunpack.c.l.b16 %v297
  %v391 = vunpack.c.l.b16 %v298
  %v392 = vunpack.c.l.b16 %v299
  %v393 = vunpack.c.l.b16 %v300
  %v394 = vunpack.c.l.b16 %v301
  %v395 = vpack.c.b16 %v388, %v387
  %v396 = vpack.c.b16 %v390, %v389
  %v397 = vpack.c.b16 %v392, %v391
  %v398 = vpack.c.b16 %v394, %v393
  %v404 = vsel %vm280, %v293, 0
  %406 = vmatprep.subr.bf16.mxu0 0
  %407 = vmatpush1.bf16.msra.mxu0 %v395
  %408 = vmatprep.subr.bf16.mxu0 0
  %409 = vmatpush1.bf16.msra.mxu0 %v396
  %410 = vmatprep.subr.bf16.mxu0 0
  %411 = vmatpush1.bf16.msra.mxu0 %v397
  %412 = vmatprep.subr.bf16.mxu0 0
  %413 = vmatpush1.bf16.msra.mxu0 %v398
  %414 = vmatprep.subr.bf16.mxu0 0
  %415 = vmatpush1.bf16.msra.mxu0 0
  %416 = vmatprep.subr.bf16.mxu0 0
  %417 = vmatpush1.bf16.msra.mxu0 0
  %418 = vmatprep.subr.bf16.mxu0 0
  %419 = vmatpush1.bf16.msra.mxu0 0
  %420 = vmatprep.subr.bf16.mxu0 0
  %421 = vmatpush1.bf16.msra.mxu0 0
  %422 = vmatprep.subr.bf16.mxu0 0
  %423 = vmatpush1.bf16.msra.mxu0 0
  %424 = vmatprep.subr.bf16.mxu0 0
  %425 = vmatpush1.bf16.msra.mxu0 0
  %426 = vmatprep.subr.bf16.mxu0 0
  %427 = vmatpush1.bf16.msra.mxu0 0
  %428 = vmatprep.subr.bf16.mxu0 0
  %429 = vmatpush1.bf16.msra.mxu0 0
  %430 = vmatprep.subr.bf16.mxu0 0
  %431 = vmatpush1.bf16.msra.mxu0 0
  %432 = vmatprep.subr.bf16.mxu0 0
  %433 = vmatpush1.bf16.msra.mxu0 0
  %434 = vmatprep.subr.bf16.mxu0 0
  %435 = vmatpush1.bf16.msra.mxu0 0
  %436 = vmatprep.subr.bf16.mxu0 0
  %437 = vmatpush1.bf16.msra.mxu0 0
  %438 = vmatprep.mubr.bf16.mxu0 0
  %439 = vmatmul.mubr.bf16.gmra.mrb[0].mxu0 %v404
  %v440 = vpop.f32.mrb[0].mxu0
  %v441 = vadd.f32 %v374, %v440
  %v442 = vpop.f32.mrb[0].mxu0
  %v443 = vpop.f32.mrb[0].mxu0
  %v444 = vpop.f32.mrb[0].mxu0
  %445 = vdwg.mxu0
  %v446 = vpack.c.bf16 %v292, %v292
  %s447 = scalar_lea.vmem %s7, 64
  %v448 = vld [vmem:[%s447] sm:$0xf]
  %v449 = vld [vmem:[%s447 + $0x4] sm:$0xf]
  %v450 = vld [vmem:[%s447 + $0x8] sm:$0xf]
  %v451 = vld [vmem:[%s447 + $0xc] sm:$0xf]
  %v452 = vld [vmem:[%s447 + $0x10] sm:$0xf]
  %v453 = vld [vmem:[%s447 + $0x14] sm:$0xf]
  %v454 = vld [vmem:[%s447 + $0x18] sm:$0xf]
  %v455 = vld [vmem:[%s447 + $0x1c] sm:$0xf]
  %v464 = vunpack.c.l.b16 %v448
  %v465 = vunpack.c.l.b16 %v449
  %v466 = vunpack.c.l.b16 %v450
  %v467 = vunpack.c.l.b16 %v451
  %v468 = vunpack.c.l.b16 %v452
  %v469 = vunpack.c.l.b16 %v453
  %v470 = vunpack.c.l.b16 %v454
  %v471 = vunpack.c.l.b16 %v455
  %v472 = vpack.c.b16 %v465, %v464
  %v473 = vpack.c.b16 %v467, %v466
  %v474 = vpack.c.b16 %v469, %v468
  %v475 = vpack.c.b16 %v471, %v470
  %v481 = vsel %vm280, %v446, 0
  %483 = vmatprep.subr.bf16.mxu0 0
  %484 = vmatpush1.bf16.msra.mxu0 %v472
  %485 = vmatprep.subr.bf16.mxu0 0
  %486 = vmatpush1.bf16.msra.mxu0 %v473
  %487 = vmatprep.subr.bf16.mxu0 0
  %488 = vmatpush1.bf16.msra.mxu0 %v474
  %489 = vmatprep.subr.bf16.mxu0 0
  %490 = vmatpush1.bf16.msra.mxu0 %v475
  %491 = vmatprep.subr.bf16.mxu0 0
  %492 = vmatpush1.bf16.msra.mxu0 0
  %493 = vmatprep.subr.bf16.mxu0 0
  %494 = vmatpush1.bf16.msra.mxu0 0
  %495 = vmatprep.subr.bf16.mxu0 0
  %496 = vmatpush1.bf16.msra.mxu0 0
  %497 = vmatprep.subr.bf16.mxu0 0
  %498 = vmatpush1.bf16.msra.mxu0 0
  %499 = vmatprep.subr.bf16.mxu0 0
  %500 = vmatpush1.bf16.msra.mxu0 0
  %501 = vmatprep.subr.bf16.mxu0 0
  %502 = vmatpush1.bf16.msra.mxu0 0
  %503 = vmatprep.subr.bf16.mxu0 0
  %504 = vmatpush1.bf16.msra.mxu0 0
  %505 = vmatprep.subr.bf16.mxu0 0
  %506 = vmatpush1.bf16.msra.mxu0 0
  %507 = vmatprep.subr.bf16.mxu0 0
  %508 = vmatpush1.bf16.msra.mxu0 0
  %509 = vmatprep.subr.bf16.mxu0 0
  %510 = vmatpush1.bf16.msra.mxu0 0
  %511 = vmatprep.subr.bf16.mxu0 0
  %512 = vmatpush1.bf16.msra.mxu0 0
  %513 = vmatprep.subr.bf16.mxu0 0
  %514 = vmatpush1.bf16.msra.mxu0 0
  %515 = vmatprep.mubr.bf16.mxu0 0
  %516 = vmatmul.mubr.bf16.gmra.mrb[0].mxu0 %v481
  %v517 = vpop.f32.mrb[0].mxu0
  %v518 = vadd.f32 0.0, %v517
  %v519 = vpop.f32.mrb[0].mxu0
  %v520 = vpop.f32.mrb[0].mxu0
  %v521 = vpop.f32.mrb[0].mxu0
  %522 = vdwg.mxu0
  %v523 = vadd.f32 %v441, %v518
  %v524 = vld [vmem:[%s8] sm:$0x1]
  %v525 = vld [vmem:[%s9] sm:$0x1]
  %v526 = vsel %vm242, %v523, 0.0
  %v527 = vrot.slane %v526, 4
  %v528 = vadd.f32 %v526, %v527
  %v529 = vrot.slane %v528, 2
  %v530 = vadd.f32 %v528, %v529
  %v531 = vrot.slane %v530, 1
  %v532 = vadd.f32 %v530, %v531
  %v533 = vmul.f32 %v532, 0.25
  %v534 = vmul.f32 %v523, %v523
  %v535 = vsel %vm242, %v534, 0.0
  %v536 = vrot.slane %v535, 4
  %v537 = vadd.f32 %v535, %v536
  %v538 = vrot.slane %v537, 2
  %v539 = vadd.f32 %v537, %v538
  %v540 = vrot.slane %v539, 1
  %v541 = vadd.f32 %v539, %v540
  %v542 = vmul.f32 %v541, 0.25
  %v543 = vmul.f32 %v533, %v533
  %v544 = vsub.f32 %v542, %v543
  %v545 = vadd.f32 %v544, 1e-05
  %v546 = vrsqrt.pop %v545
  %v547 = vmul.f32 %v546, %v524
  %v548 = vmul.f32 %v533, %v547
  %v549 = vsub.f32 %v525, %v548
  %v550 = vld [vmem:[%s10] sm:$0xf]
  %v551 = vld [vmem:[%s10 + $0x4] sm:$0xf]
  %v552 = vld [vmem:[%s10 + $0x8] sm:$0xf]
  %v553 = vld [vmem:[%s10 + $0xc] sm:$0xf]
  %v558 = vunpack.c.l.b16 %v550
  %v559 = vunpack.c.l.b16 %v551
  %v560 = vunpack.c.l.b16 %v552
  %v561 = vunpack.c.l.b16 %v553
  %v562 = vpack.c.b16 %v559, %v558
  %v563 = vpack.c.b16 %v561, %v560
  %566 = vmatprep.subr.bf16.mxu0 0
  %567 = vmatpush1.bf16.msra.mxu0 %v562
  %568 = vmatprep.subr.bf16.mxu0 0
  %569 = vmatpush1.bf16.msra.mxu0 %v563
  %570 = vmatprep.subr.bf16.mxu0 0
  %571 = vmatpush1.bf16.msra.mxu0 0
  %572 = vmatprep.subr.bf16.mxu0 0
  %573 = vmatpush1.bf16.msra.mxu0 0
  %574 = vmatprep.subr.bf16.mxu0 0
  %575 = vmatpush1.bf16.msra.mxu0 0
  %576 = vmatprep.subr.bf16.mxu0 0
  %577 = vmatpush1.bf16.msra.mxu0 0
  %578 = vmatprep.subr.bf16.mxu0 0
  %579 = vmatpush1.bf16.msra.mxu0 0
  %580 = vmatprep.subr.bf16.mxu0 0
  %581 = vmatpush1.bf16.msra.mxu0 0
  %582 = vmatprep.subr.bf16.mxu0 0
  %583 = vmatpush1.bf16.msra.mxu0 0
  %584 = vmatprep.subr.bf16.mxu0 0
  %585 = vmatpush1.bf16.msra.mxu0 0
  %586 = vmatprep.subr.bf16.mxu0 0
  %587 = vmatpush1.bf16.msra.mxu0 0
  %588 = vmatprep.subr.bf16.mxu0 0
  %589 = vmatpush1.bf16.msra.mxu0 0
  %590 = vmatprep.subr.bf16.mxu0 0
  %591 = vmatpush1.bf16.msra.mxu0 0
  %592 = vmatprep.subr.bf16.mxu0 0
  %593 = vmatpush1.bf16.msra.mxu0 0
  %594 = vmatprep.subr.bf16.mxu0 0
  %595 = vmatpush1.bf16.msra.mxu0 0
  %596 = vmatprep.subr.bf16.mxu0 0
  %597 = vmatpush1.bf16.msra.mxu0 0
  %598 = vmatprep.mubr.bf16.mxu0 0
  %599 = vmatmul.mubr.bf16.gmra.mrb[0].mxu0 %v81
  %v600 = vpop.f32.mrb[0].mxu0
  %v601 = vadd.f32 0.0, %v600
  %v602 = vpop.f32.mrb[0].mxu0
  %v603 = vpop.f32.mrb[0].mxu0
  %v604 = vpop.f32.mrb[0].mxu0
  %605 = vdwg.mxu0
  %v606 = vld [vmem:[%s11] sm:$0x1]
  %v607 = vld [vmem:[%s12] sm:$0x1]
  %v608 = vsel %vm242, %v601, 0.0
  %v609 = vrot.slane %v608, 4
  %v610 = vadd.f32 %v608, %v609
  %v611 = vrot.slane %v610, 2
  %v612 = vadd.f32 %v610, %v611
  %v613 = vrot.slane %v612, 1
  %v614 = vadd.f32 %v612, %v613
  %v615 = vmul.f32 %v614, 0.25
  %v616 = vmul.f32 %v601, %v601
  %v617 = vsel %vm242, %v616, 0.0
  %v618 = vrot.slane %v617, 4
  %v619 = vadd.f32 %v617, %v618
  %v620 = vrot.slane %v619, 2
  %v621 = vadd.f32 %v619, %v620
  %v622 = vrot.slane %v621, 1
  %v623 = vadd.f32 %v621, %v622
  %v624 = vmul.f32 %v623, 0.25
  %v625 = vmul.f32 %v615, %v615
  %v626 = vsub.f32 %v624, %v625
  %v627 = vadd.f32 %v626, 1e-05
  %v628 = vrsqrt.pop %v627
  %v629 = vmul.f32 %v628, %v606
  %v630 = vmul.f32 %v615, %v629
  %v631 = vsub.f32 %v607, %v630
  %v632 = vlaneseq
  %v633 = vshrl.u32 %v632, 7
  %v634 = vsub.s32 0, %v633
  %v635 = vrot.slane %v547, %v634
  %v636 = vmul.f32 %v523, %v635
  %v638 = vlaneseq
  %v639 = vshrl.u32 %v638, 7
  %v640 = vsub.s32 0, %v639
  %v641 = vrot.slane %v549, %v640
  %v643 = vadd.f32 %v636, %v641
  %v644 = vlaneseq
  %v645 = vshrl.u32 %v644, 7
  %v646 = vsub.s32 0, %v645
  %v647 = vrot.slane %v629, %v646
  %v648 = vmul.f32 %v601, %v647
  %v650 = vlaneseq
  %v651 = vshrl.u32 %v650, 7
  %v652 = vsub.s32 0, %v651
  %v653 = vrot.slane %v631, %v652
  %v655 = vadd.f32 %v648, %v653
  %v656 = vadd.f32 %v643, %v655
  %v657 = vmax.f32 %v656, 0.0
  %658 = vst.msk [vmem:[%s13] sm:$0xf] %vm242, %v657
  // Predicated region
  $region54: #{forward.10} parent=0 // pred_check
    _
  $region55: #{forward.10} parent=0 // pred_check_branch
    %660 = sbr.rel (0) target = $region57
  $region56: #{forward.10} parent=0 // pred_region
    _
  $region57: #{forward.10} parent=0 // pred_fallthru
    _
  // Predicated region
  $region58: #{forward.10} parent=0 // pred_check
    _
  $region59: #{forward.10} parent=0 // pred_check_branch
    %662 = sbr.rel (0) target = $region61
  $region60: #{forward.10} parent=0 // pred_region
    _
  $region61: #{forward.10} parent=0 // pred_fallthru
    _

</llo_original>
